<compile_context>
chip_gen: v5e
topology: v5e:2x2
jax: 0.10.0
libtpu: 0.0.40
codegen_flags: <defaults>
</compile_context>

<pallas_src>
import functools
import math

import jax
import jax.numpy as jnp
from jax import lax
from jax.experimental import pallas as pl
from jax.experimental.pallas import tpu as pltpu


_PARAM_ORDER = (
    "wq", "bq", "wk", "bk", "wv", "bv", "wo", "bo",
    "ln1_g", "ln1_b", "w1", "b1", "w2", "b2", "ln2_g", "ln2_b",
)
_WEIGHT_KEYS = frozenset({"wq", "wk", "wv", "wo", "w1", "w2"})


def _layer_norm(x, gamma, beta, eps=1e-5):
    mu = jnp.mean(x, axis=-1, keepdims=True)
    var = jnp.mean((x - mu) ** 2, axis=-1, keepdims=True)
    return (x - mu) * lax.rsqrt(var + eps) * gamma + beta


def encoder_layer_kernel(
    x_ref,
    wq_ref, bq_ref, wk_ref, bk_ref, wv_ref, bv_ref, wo_ref, bo_ref,
    ln1_g_ref, ln1_b_ref,
    w1_ref, b1_ref, w2_ref, b2_ref,
    ln2_g_ref, ln2_b_ref,
    o_ref,
    k_scr, v_scr,
    *, num_heads, tq,
):
    qi = pl.program_id(1)
    S = x_ref.shape[1]
    D = x_ref.shape[2]
    H = num_heads
    dh = D // H
    scale = 1.0 / math.sqrt(dh)

    # ---- K/V projections: ONCE per batch element, cached across q blocks ----
    @pl.when(qi == 0)
    def _():
        xb = x_ref[0].astype(jnp.bfloat16)                        # (S, D)
        k = jnp.dot(xb, wk_ref[...],
                    preferred_element_type=jnp.float32) + bk_ref[...]
        v = jnp.dot(xb, wv_ref[...],
                    preferred_element_type=jnp.float32) + bv_ref[...]
        # head-major relayout happens once per batch, not once per q block
        k_scr[...] = k.reshape(S, H, dh).transpose(1, 0, 2).astype(jnp.bfloat16)
        v_scr[...] = v.reshape(S, H, dh).transpose(1, 0, 2).astype(jnp.bfloat16)

    # ---- query rows for this block, sliced straight from the resident ref ---
    q_start = pl.multiple_of(qi * tq, tq)
    xq = x_ref[0, pl.ds(q_start, tq), :].astype(jnp.float32)       # (TQ, D)

    # 1/sqrt(dh) folded into q once (bf16 GEMM, f32 accumulation)
    q = (jnp.dot(xq.astype(jnp.bfloat16), wq_ref[...],
                 preferred_element_type=jnp.float32) + bq_ref[...]) * scale
    qh = q.reshape(tq, H, dh).transpose(1, 0, 2).astype(jnp.bfloat16)  # (H,TQ,dh)
    # TODO(synk): the per-step Q/ctx head transposes are small (TQ rows) but
    # could be removed entirely with lax.dot_general batch dims / pltpu.einshape.

    kh = k_scr[...]                                                # (H, S, dh)
    vh = v_scr[...]                                                # (H, S, dh)

    s = jnp.einsum("hqd,hkd->hqk", qh, kh,
                   preferred_element_type=jnp.float32)             # (H, TQ, S)
    s = s - jnp.max(s, axis=-1, keepdims=True)                     # stable softmax
    e = jnp.exp(s)
    p = e * pl.reciprocal(jnp.sum(e, axis=-1, keepdims=True), approx=True)
    ctx = jnp.einsum("hqk,hkd->hqd", p.astype(jnp.bfloat16), vh,
                     preferred_element_type=jnp.float32)           # (H, TQ, dh)
    ctx = ctx.transpose(1, 0, 2).reshape(tq, D)                    # concat heads

    attn_out = (jnp.dot(ctx.astype(jnp.bfloat16), wo_ref[...],
                        preferred_element_type=jnp.float32) + bo_ref[...])

    # dropout (eval mode) is identity
    y = xq + attn_out
    y = _layer_norm(y, ln1_g_ref[...], ln1_b_ref[...])

    # ---- position-wise FFN (query-blocked, so (TQ, DFF) stays small) --------
    hdn = jnp.dot(y.astype(jnp.bfloat16), w1_ref[...],
                  preferred_element_type=jnp.float32) + b1_ref[...]
    hdn = jnp.maximum(hdn, 0.0)                                    # ReLU
    ff_out = jnp.dot(hdn.astype(jnp.bfloat16), w2_ref[...],
                     preferred_element_type=jnp.float32) + b2_ref[...]

    z = _layer_norm(y + ff_out, ln2_g_ref[...], ln2_b_ref[...])
    o_ref[0] = z.astype(o_ref.dtype)
    # TODO(synk): for very long S, stream K/V in TK blocks with online softmax
    # (flash-style third "arbitrary" grid axis) so the (H,TQ,S) score tensor
    # never materializes and the x block can shrink to (1, TQ, D).


def _vmem_capacity_bytes():
    try:
        info = pltpu.get_tpu_info()
        cap = getattr(info, "vmem_capacity_bytes", None)
        if cap:
            return int(cap)
    except Exception:
        pass
    return 128 * 1024 * 1024


def _pick_query_block(S, D, H, dff, budget_bytes):
    cands = [c for c in (512, 256, 128) if S % c == 0]
    if not cands:
        return S
    for tq in cands:
        need = (2 * H * tq * S * 4        # scores + exp temp (f32)
                + tq * dff * 4            # FFN hidden
                + 8 * tq * D * 4)         # q / ctx / y / residual temporaries
        if need <= budget_bytes:
            return tq
    return cands[-1]


def encoder_layer(x, params, num_heads, tq=None):
    B, S, D = x.shape
    assert D % num_heads == 0, "d_model must be divisible by num_heads"
    dh = D // num_heads
    dff = params["w1"].shape[1]

    # weights in bf16 (MXU-native); biases / LN params stay f32
    param_vals = []
    for key in _PARAM_ORDER:
        p = jnp.asarray(params[key])
        p = p.astype(jnp.bfloat16 if key in _WEIGHT_KEYS else jnp.float32)
        param_vals.append(p)

    cap = _vmem_capacity_bytes()
    usable = int(cap * 0.85)                       # headroom for compiler scratch

    wt_bytes = sum(int(p.size) * p.dtype.itemsize for p in param_vals)
    kv_scratch = 2 * S * D * 2                     # bf16 K/V cache (persistent)
    x_resident = 2 * S * D * 4                     # double-buffered x block
    kv_temp = 2 * S * D * 4                        # f32 K/V projection temporaries

    if tq is None:
        budget = max(usable - (wt_bytes + kv_scratch + x_resident + kv_temp),
                     4 * 1024 * 1024)
        tq = _pick_query_block(S, D, num_heads, dff, budget)
    assert S % tq == 0
    n_q = S // tq

    interm = 2 * num_heads * tq * S * 4 + tq * dff * 4 + 8 * tq * D * 4
    est = int(1.5 * (2 * wt_bytes + kv_scratch + x_resident + kv_temp
                     + 2 * tq * D * 4 + interm))
    vmem_limit = int(min(max(est, 32 * 1024 * 1024), usable))

    out_shape = jax.ShapeDtypeStruct((B, S, D), x.dtype)
    kernel = functools.partial(encoder_layer_kernel, num_heads=num_heads, tq=tq)
    scratch_shapes = [pltpu.VMEM((num_heads, S, dh), jnp.bfloat16),   # K cache
                      pltpu.VMEM((num_heads, S, dh), jnp.bfloat16)]   # V cache
    compiler_params = pltpu.CompilerParams(
        # q axis carries the K/V scratch across steps -> must be "arbitrary";
        # the batch axis stays "parallel" so megacore chips split work on B.
        dimension_semantics=("parallel", "arbitrary"),
        vmem_limit_bytes=vmem_limit,
    )

    def build(single_buffer_params):
        def param_spec(p):
            nd = p.ndim
            idx = lambda b, q, _nd=nd: (0,) * _nd
            if single_buffer_params:
                return pl.BlockSpec(p.shape, idx, pipeline_mode=pl.Buffered(1))
            return pl.BlockSpec(p.shape, idx)

        in_specs = [pl.BlockSpec((1, S, D), lambda b, q: (b, 0, 0))]
        in_specs += [param_spec(p) for p in param_vals]
        out_specs = pl.BlockSpec((1, tq, D), lambda b, q: (b, q, 0))
        return pl.pallas_call(
            kernel,
            out_shape=out_shape,
            grid=(B, n_q),
            in_specs=in_specs,
            out_specs=out_specs,
            scratch_shapes=scratch_shapes,
            compiler_params=compiler_params,
        )

    try:
        return build(True)(x, *param_vals)
    except Exception:
        # Fallback: drop the single-buffer hint if this JAX rejects pipeline_mode.
        return build(False)(x, *param_vals)


def encoder_layer_reference(x, params, num_heads):
    """Pure-JAX f32 reference (same math as the PyTorch module in eval mode)."""
    B, S, D = x.shape
    dh = D // num_heads

    def attn(xb):
        q = xb @ params["wq"] + params["bq"][0]
        k = xb @ params["wk"] + params["bk"][0]
        v = xb @ params["wv"] + params["bv"][0]
        q = q.reshape(S, num_heads, dh).transpose(1, 0, 2)
        k = k.reshape(S, num_heads, dh).transpose(1, 0, 2)
        v = v.reshape(S, num_heads, dh).transpose(1, 0, 2)
        s = jnp.einsum("hqd,hkd->hqk", q, k) / jnp.sqrt(float(dh))
        p = jax.nn.softmax(s, axis=-1)
        ctx = jnp.einsum("hqk,hkd->hqd", p, v).transpose(1, 0, 2).reshape(S, D)
        return ctx @ params["wo"] + params["bo"][0]

    def ln(xb, g, b, eps=1e-5):
        mu = xb.mean(-1, keepdims=True)
        var = ((xb - mu) ** 2).mean(-1, keepdims=True)
        return (xb - mu) / jnp.sqrt(var + eps) * g[0] + b[0]

    def one(xb):
        y = ln(xb + attn(xb), params["ln1_g"], params["ln1_b"])
        h = jnp.maximum(y @ params["w1"] + params["b1"][0], 0.0)
        f = h @ params["w2"] + params["b2"][0]
        return ln(y + f, params["ln2_g"], params["ln2_b"])

    return jax.vmap(one)(x)


if __name__ == "__main__":
    B, S, D, H, DFF = 2, 8, 32, 4, 64

    key = jax.random.PRNGKey(0)
    keys = jax.random.split(key, 16)

    def nrm(k, shape, scale=0.1):
        return (scale * jax.random.normal(k, shape)).astype(jnp.float32)

    params = {
        "wq": nrm(keys[0], (D, D)),   "bq": nrm(keys[1], (1, D)),
        "wk": nrm(keys[2], (D, D)),   "bk": nrm(keys[3], (1, D)),
        "wv": nrm(keys[4], (D, D)),   "bv": nrm(keys[5], (1, D)),
        "wo": nrm(keys[6], (D, D)),   "bo": nrm(keys[7], (1, D)),
        "ln1_g": jnp.ones((1, D), jnp.float32),
        "ln1_b": jnp.zeros((1, D), jnp.float32),
        "w1": nrm(keys[8], (D, DFF)), "b1": nrm(keys[9], (1, DFF)),
        "w2": nrm(keys[10], (DFF, D)), "b2": nrm(keys[11], (1, D)),
        "ln2_g": jnp.ones((1, D), jnp.float32),
        "ln2_b": jnp.zeros((1, D), jnp.float32),
    }

    x = jax.random.normal(keys[12], (B, S, D), dtype=jnp.float32)

    out = jax.block_until_ready(encoder_layer(x, params, H))
    ref = jax.block_until_ready(encoder_layer_reference(x, params, H))

    assert out.shape == (B, S, D), out.shape
    # tolerance accounts for bf16 MXU operands (f32 accumulation) and the EUP
    # approx reciprocal in the softmax normalization
    assert jnp.allclose(out, ref, rtol=2e-2, atol=2e-2), "mismatch vs reference"
    print("KERNEL_OK")
</pallas_src>

<mosaic_0001>
module attributes {stable_mosaic.version = 11 : i64} {
  func.func @encoder_layer_kernel(%arg0: i32, %arg1: i32, %arg2: memref<1x8x32xf32, #tpu.memory_space<vmem>>, %arg3: memref<32x32xbf16, #tpu.memory_space<vmem>>, %arg4: memref<1x32xf32, #tpu.memory_space<vmem>>, %arg5: memref<32x32xbf16, #tpu.memory_space<vmem>>, %arg6: memref<1x32xf32, #tpu.memory_space<vmem>>, %arg7: memref<32x32xbf16, #tpu.memory_space<vmem>>, %arg8: memref<1x32xf32, #tpu.memory_space<vmem>>, %arg9: memref<32x32xbf16, #tpu.memory_space<vmem>>, %arg10: memref<1x32xf32, #tpu.memory_space<vmem>>, %arg11: memref<1x32xf32, #tpu.memory_space<vmem>>, %arg12: memref<1x32xf32, #tpu.memory_space<vmem>>, %arg13: memref<32x64xbf16, #tpu.memory_space<vmem>>, %arg14: memref<1x64xf32, #tpu.memory_space<vmem>>, %arg15: memref<64x32xbf16, #tpu.memory_space<vmem>>, %arg16: memref<1x32xf32, #tpu.memory_space<vmem>>, %arg17: memref<1x32xf32, #tpu.memory_space<vmem>>, %arg18: memref<1x32xf32, #tpu.memory_space<vmem>>, %arg19: memref<1x8x32xf32, #tpu.memory_space<vmem>>, %arg20: memref<4x8x8xbf16, #tpu.memory_space<vmem>>, %arg21: memref<4x8x8xbf16, #tpu.memory_space<vmem>>) attributes {dimension_semantics = [#tpu.dimension_semantics<parallel>, #tpu.dimension_semantics<arbitrary>], iteration_bounds = array<i64: 2, 1>, scalar_prefetch = 0 : i64, scratch_operands = 2 : i64, tpu.core_type = #tpu.core_type<tc>, window_params = [{transform_indices = @transform_0, window_bounds = array<i64: 1, 8, 32>}, {pipeline_mode = #tpu.pipeline_mode<synchronous>, transform_indices = @transform_1, window_bounds = array<i64: 32, 32>}, {pipeline_mode = #tpu.pipeline_mode<synchronous>, transform_indices = @transform_2, window_bounds = array<i64: 1, 32>}, {pipeline_mode = #tpu.pipeline_mode<synchronous>, transform_indices = @transform_3, window_bounds = array<i64: 32, 32>}, {pipeline_mode = #tpu.pipeline_mode<synchronous>, transform_indices = @transform_4, window_bounds = array<i64: 1, 32>}, {pipeline_mode = #tpu.pipeline_mode<synchronous>, transform_indices = @transform_5, window_bounds = array<i64: 32, 32>}, {pipeline_mode = #tpu.pipeline_mode<synchronous>, transform_indices = @transform_6, window_bounds = array<i64: 1, 32>}, {pipeline_mode = #tpu.pipeline_mode<synchronous>, transform_indices = @transform_7, window_bounds = array<i64: 32, 32>}, {pipeline_mode = #tpu.pipeline_mode<synchronous>, transform_indices = @transform_8, window_bounds = array<i64: 1, 32>}, {pipeline_mode = #tpu.pipeline_mode<synchronous>, transform_indices = @transform_9, window_bounds = array<i64: 1, 32>}, {pipeline_mode = #tpu.pipeline_mode<synchronous>, transform_indices = @transform_10, window_bounds = array<i64: 1, 32>}, {pipeline_mode = #tpu.pipeline_mode<synchronous>, transform_indices = @transform_11, window_bounds = array<i64: 32, 64>}, {pipeline_mode = #tpu.pipeline_mode<synchronous>, transform_indices = @transform_12, window_bounds = array<i64: 1, 64>}, {pipeline_mode = #tpu.pipeline_mode<synchronous>, transform_indices = @transform_13, window_bounds = array<i64: 64, 32>}, {pipeline_mode = #tpu.pipeline_mode<synchronous>, transform_indices = @transform_14, window_bounds = array<i64: 1, 32>}, {pipeline_mode = #tpu.pipeline_mode<synchronous>, transform_indices = @transform_15, window_bounds = array<i64: 1, 32>}, {pipeline_mode = #tpu.pipeline_mode<synchronous>, transform_indices = @transform_16, window_bounds = array<i64: 1, 32>}, {transform_indices = @transform_17, window_bounds = array<i64: 1, 8, 32>}]} {
    %c0_i32 = arith.constant 0 : i32
    %0 = arith.cmpi eq, %arg1, %c0_i32 : i32
    %1 = arith.extui %0 : i1 to i32
    %c0_i32_0 = arith.constant 0 : i32
    %2 = arith.cmpi ne, %1, %c0_i32_0 : i32
    scf.if %2 {
      %c0_54 = arith.constant 0 : index
      %c0_55 = arith.constant 0 : index
      %c0_56 = arith.constant 0 : index
      %109 = vector.load %arg2[%c0_54, %c0_55, %c0_56] : memref<1x8x32xf32, #tpu.memory_space<vmem>>, vector<1x8x32xf32>
      %110 = vector.shape_cast %109 : vector<1x8x32xf32> to vector<8x32xf32>
      %111 = arith.truncf %110 : vector<8x32xf32> to vector<8x32xbf16>
      %c0_57 = arith.constant 0 : index
      %c0_58 = arith.constant 0 : index
      %112 = vector.load %arg5[%c0_57, %c0_58] : memref<32x32xbf16, #tpu.memory_space<vmem>>, vector<32x32xbf16>
      %cst_59 = arith.constant dense<0.000000e+00> : vector<8x32xf32>
      %113 = tpu.matmul %111, %112, %cst_59 {dimension_numbers = #tpu.dot_dimension_numbers<[1], [0], [0], [1], [0, 0, 1, 1], [], []>} : vector<8x32xbf16>, vector<32x32xbf16>, vector<8x32xf32> -> vector<8x32xf32>
      %c0_60 = arith.constant 0 : index
      %c0_61 = arith.constant 0 : index
      %114 = vector.load %arg6[%c0_60, %c0_61] : memref<1x32xf32, #tpu.memory_space<vmem>>, vector<1x32xf32>
      %115 = vector.broadcast %114 : vector<1x32xf32> to vector<8x32xf32>
      %116 = arith.addf %113, %115 : vector<8x32xf32>
      %c0_62 = arith.constant 0 : index
      %c0_63 = arith.constant 0 : index
      %117 = vector.load %arg7[%c0_62, %c0_63] : memref<32x32xbf16, #tpu.memory_space<vmem>>, vector<32x32xbf16>
      %cst_64 = arith.constant dense<0.000000e+00> : vector<8x32xf32>
      %118 = tpu.matmul %111, %117, %cst_64 {dimension_numbers = #tpu.dot_dimension_numbers<[1], [0], [0], [1], [0, 0, 1, 1], [], []>} : vector<8x32xbf16>, vector<32x32xbf16>, vector<8x32xf32> -> vector<8x32xf32>
      %c0_65 = arith.constant 0 : index
      %c0_66 = arith.constant 0 : index
      %119 = vector.load %arg8[%c0_65, %c0_66] : memref<1x32xf32, #tpu.memory_space<vmem>>, vector<1x32xf32>
      %120 = vector.broadcast %119 : vector<1x32xf32> to vector<8x32xf32>
      %121 = arith.addf %118, %120 : vector<8x32xf32>
      %122 = vector.shape_cast %116 : vector<8x32xf32> to vector<8x4x8xf32>
      %123 = tpu.transpose %122, [1, 0, 2] : vector<8x4x8xf32> -> vector<4x8x8xf32>
      %124 = arith.truncf %123 : vector<4x8x8xf32> to vector<4x8x8xbf16>
      %c0_67 = arith.constant 0 : index
      %c0_68 = arith.constant 0 : index
      %c0_69 = arith.constant 0 : index
      %125 = vector.load %arg20[%c0_67, %c0_68, %c0_69] : memref<4x8x8xbf16, #tpu.memory_space<vmem>>, vector<4x8x8xbf16>
      tpu.vector_store %arg20[%c0_67, %c0_68, %c0_69], %124 {strides = array<i32>} : memref<4x8x8xbf16, #tpu.memory_space<vmem>>, vector<4x8x8xbf16>,
      %126 = vector.shape_cast %121 : vector<8x32xf32> to vector<8x4x8xf32>
      %127 = tpu.transpose %126, [1, 0, 2] : vector<8x4x8xf32> -> vector<4x8x8xf32>
      %128 = arith.truncf %127 : vector<4x8x8xf32> to vector<4x8x8xbf16>
      %c0_70 = arith.constant 0 : index
      %c0_71 = arith.constant 0 : index
      %c0_72 = arith.constant 0 : index
      %129 = vector.load %arg21[%c0_70, %c0_71, %c0_72] : memref<4x8x8xbf16, #tpu.memory_space<vmem>>, vector<4x8x8xbf16>
      tpu.vector_store %arg21[%c0_70, %c0_71, %c0_72], %128 {strides = array<i32>} : memref<4x8x8xbf16, #tpu.memory_space<vmem>>, vector<4x8x8xbf16>,
    } else {
    }
    %c8_i32 = arith.constant 8 : i32
    %3 = arith.muli %arg1, %c8_i32 : i32
    %4 = tpu.assume_multiple %3, 8 : i32
    %c0 = arith.constant 0 : index
    %5 = arith.index_cast %4 : i32 to index
    %c0_1 = arith.constant 0 : index
    %6 = vector.load %arg2[%c0, %5, %c0_1] : memref<1x8x32xf32, #tpu.memory_space<vmem>>, vector<1x8x32xf32>
    %7 = vector.shape_cast %6 : vector<1x8x32xf32> to vector<8x32xf32>
    %8 = arith.truncf %7 : vector<8x32xf32> to vector<8x32xbf16>
    %c0_2 = arith.constant 0 : index
    %c0_3 = arith.constant 0 : index
    %9 = vector.load %arg3[%c0_2, %c0_3] : memref<32x32xbf16, #tpu.memory_space<vmem>>, vector<32x32xbf16>
    %cst = arith.constant dense<0.000000e+00> : vector<8x32xf32>
    %10 = tpu.matmul %8, %9, %cst {dimension_numbers = #tpu.dot_dimension_numbers<[1], [0], [0], [1], [0, 0, 1, 1], [], []>} : vector<8x32xbf16>, vector<32x32xbf16>, vector<8x32xf32> -> vector<8x32xf32>
    %c0_4 = arith.constant 0 : index
    %c0_5 = arith.constant 0 : index
    %11 = vector.load %arg4[%c0_4, %c0_5] : memref<1x32xf32, #tpu.memory_space<vmem>>, vector<1x32xf32>
    %12 = vector.broadcast %11 : vector<1x32xf32> to vector<8x32xf32>
    %13 = arith.addf %10, %12 : vector<8x32xf32>
    %cst_6 = arith.constant 0.353553385 : f32
    %14 = vector.broadcast %cst_6 : f32 to vector<8x32xf32>
    %15 = arith.mulf %13, %14 : vector<8x32xf32>
    %16 = vector.shape_cast %15 : vector<8x32xf32> to vector<8x4x8xf32>
    %17 = tpu.transpose %16, [1, 0, 2] : vector<8x4x8xf32> -> vector<4x8x8xf32>
    %18 = arith.truncf %17 : vector<4x8x8xf32> to vector<4x8x8xbf16>
    %c0_7 = arith.constant 0 : index
    %c0_8 = arith.constant 0 : index
    %c0_9 = arith.constant 0 : index
    %19 = vector.load %arg20[%c0_7, %c0_8, %c0_9] : memref<4x8x8xbf16, #tpu.memory_space<vmem>>, vector<4x8x8xbf16>
    %c0_10 = arith.constant 0 : index
    %c0_11 = arith.constant 0 : index
    %c0_12 = arith.constant 0 : index
    %20 = vector.load %arg21[%c0_10, %c0_11, %c0_12] : memref<4x8x8xbf16, #tpu.memory_space<vmem>>, vector<4x8x8xbf16>
    "tpu.trace_start"() <{level = 10 : i32, message = "hqd,hkd->hqk"}> : () -> ()
    %cst_13 = arith.constant dense<0.000000e+00> : vector<4x8x8xf32>
    %21 = tpu.matmul %18, %19, %cst_13 {dimension_numbers = #tpu.dot_dimension_numbers<[2], [2], [1], [1], [0, 0, 0, 1, 1, 1], [0], [0]>} : vector<4x8x8xbf16>, vector<4x8x8xbf16>, vector<4x8x8xf32> -> vector<4x8x8xf32>
    "tpu.trace_stop"() : () -> ()
    %cst_14 = arith.constant dense<0xFF800000> : vector<4x8xf32>
    %22 = vector.multi_reduction <maximumf>, %21, %cst_14 [2] : vector<4x8x8xf32> to vector<4x8xf32>
    %23 = vector.shape_cast %22 : vector<4x8xf32> to vector<4x8x1xf32>
    %24 = vector.broadcast %23 : vector<4x8x1xf32> to vector<4x8x8xf32>
    %25 = arith.subf %21, %24 : vector<4x8x8xf32>
    %26 = math.exp %25 : vector<4x8x8xf32>
    %cst_15 = arith.constant dense<0.000000e+00> : vector<4x8xf32>
    %27 = vector.multi_reduction <add>, %26, %cst_15 [2] : vector<4x8x8xf32> to vector<4x8xf32>
    %28 = vector.shape_cast %27 : vector<4x8xf32> to vector<4x8x1xf32>
    %29 = tpu.reciprocal %28 {approx = true} : vector<4x8x1xf32> -> vector<4x8x1xf32>
    %30 = vector.broadcast %29 : vector<4x8x1xf32> to vector<4x8x8xf32>
    %31 = arith.mulf %26, %30 : vector<4x8x8xf32>
    %32 = arith.truncf %31 : vector<4x8x8xf32> to vector<4x8x8xbf16>
    "tpu.trace_start"() <{level = 10 : i32, message = "hqk,hkd->hqd"}> : () -> ()
    %cst_16 = arith.constant dense<0.000000e+00> : vector<4x8x8xf32>
    %33 = tpu.matmul %32, %20, %cst_16 {dimension_numbers = #tpu.dot_dimension_numbers<[2], [1], [1], [2], [0, 0, 0, 1, 1, 2], [0], [0]>} : vector<4x8x8xbf16>, vector<4x8x8xbf16>, vector<4x8x8xf32> -> vector<4x8x8xf32>
    "tpu.trace_stop"() : () -> ()
    %34 = tpu.transpose %33, [1, 0, 2] : vector<4x8x8xf32> -> vector<8x4x8xf32>
    %35 = vector.shape_cast %34 : vector<8x4x8xf32> to vector<8x32xf32>
    %36 = arith.truncf %35 : vector<8x32xf32> to vector<8x32xbf16>
    %c0_17 = arith.constant 0 : index
    %c0_18 = arith.constant 0 : index
    %37 = vector.load %arg9[%c0_17, %c0_18] : memref<32x32xbf16, #tpu.memory_space<vmem>>, vector<32x32xbf16>
    %cst_19 = arith.constant dense<0.000000e+00> : vector<8x32xf32>
    %38 = tpu.matmul %36, %37, %cst_19 {dimension_numbers = #tpu.dot_dimension_numbers<[1], [0], [0], [1], [0, 0, 1, 1], [], []>} : vector<8x32xbf16>, vector<32x32xbf16>, vector<8x32xf32> -> vector<8x32xf32>
    %c0_20 = arith.constant 0 : index
    %c0_21 = arith.constant 0 : index
    %39 = vector.load %arg10[%c0_20, %c0_21] : memref<1x32xf32, #tpu.memory_space<vmem>>, vector<1x32xf32>
    %40 = vector.broadcast %39 : vector<1x32xf32> to vector<8x32xf32>
    %41 = arith.addf %38, %40 : vector<8x32xf32>
    %42 = arith.addf %7, %41 : vector<8x32xf32>
    %c0_22 = arith.constant 0 : index
    %c0_23 = arith.constant 0 : index
    %43 = vector.load %arg11[%c0_22, %c0_23] : memref<1x32xf32, #tpu.memory_space<vmem>>, vector<1x32xf32>
    %c0_24 = arith.constant 0 : index
    %c0_25 = arith.constant 0 : index
    %44 = vector.load %arg12[%c0_24, %c0_25] : memref<1x32xf32, #tpu.memory_space<vmem>>, vector<1x32xf32>
    %cst_26 = arith.constant dense<0.000000e+00> : vector<8xf32>
    %45 = vector.multi_reduction <add>, %42, %cst_26 [1] : vector<8x32xf32> to vector<8xf32>
    %46 = vector.shape_cast %45 : vector<8xf32> to vector<8x1xf32>
    %cst_27 = arith.constant 3.200000e+01 : f32
    %47 = vector.broadcast %cst_27 : f32 to vector<8x1xf32>
    %48 = arith.divf %46, %47 : vector<8x1xf32>
    %49 = vector.broadcast %48 : vector<8x1xf32> to vector<8x32xf32>
    %50 = arith.subf %42, %49 : vector<8x32xf32>
    %51 = arith.mulf %50, %50 : vector<8x32xf32>
    %cst_28 = arith.constant dense<0.000000e+00> : vector<8xf32>
    %52 = vector.multi_reduction <add>, %51, %cst_28 [1] : vector<8x32xf32> to vector<8xf32>
    %53 = vector.shape_cast %52 : vector<8xf32> to vector<8x1xf32>
    %cst_29 = arith.constant 3.200000e+01 : f32
    %54 = vector.broadcast %cst_29 : f32 to vector<8x1xf32>
    %55 = arith.divf %53, %54 : vector<8x1xf32>
    %56 = vector.broadcast %48 : vector<8x1xf32> to vector<8x32xf32>
    %57 = arith.subf %42, %56 : vector<8x32xf32>
    %cst_30 = arith.constant 9.99999974E-6 : f32
    %58 = vector.broadcast %cst_30 : f32 to vector<8x1xf32>
    %59 = arith.addf %55, %58 : vector<8x1xf32>
    %60 = math.rsqrt %59 : vector<8x1xf32>
    %61 = vector.broadcast %60 : vector<8x1xf32> to vector<8x32xf32>
    %62 = arith.mulf %57, %61 : vector<8x32xf32>
    %63 = vector.broadcast %43 : vector<1x32xf32> to vector<8x32xf32>
    %64 = arith.mulf %62, %63 : vector<8x32xf32>
    %65 = vector.broadcast %44 : vector<1x32xf32> to vector<8x32xf32>
    %66 = arith.addf %64, %65 : vector<8x32xf32>
    %67 = arith.truncf %66 : vector<8x32xf32> to vector<8x32xbf16>
    %c0_31 = arith.constant 0 : index
    %c0_32 = arith.constant 0 : index
    %68 = vector.load %arg13[%c0_31, %c0_32] : memref<32x64xbf16, #tpu.memory_space<vmem>>, vector<32x64xbf16>
    %cst_33 = arith.constant dense<0.000000e+00> : vector<8x64xf32>
    %69 = tpu.matmul %67, %68, %cst_33 {dimension_numbers = #tpu.dot_dimension_numbers<[1], [0], [0], [1], [0, 0, 1, 1], [], []>} : vector<8x32xbf16>, vector<32x64xbf16>, vector<8x64xf32> -> vector<8x64xf32>
    %c0_34 = arith.constant 0 : index
    %c0_35 = arith.constant 0 : index
    %70 = vector.load %arg14[%c0_34, %c0_35] : memref<1x64xf32, #tpu.memory_space<vmem>>, vector<1x64xf32>
    %71 = vector.broadcast %70 : vector<1x64xf32> to vector<8x64xf32>
    %72 = arith.addf %69, %71 : vector<8x64xf32>
    %cst_36 = arith.constant 0.000000e+00 : f32
    %73 = vector.broadcast %cst_36 : f32 to vector<8x64xf32>
    %74 = arith.maximumf %72, %73 : vector<8x64xf32>
    %75 = arith.truncf %74 : vector<8x64xf32> to vector<8x64xbf16>
    %c0_37 = arith.constant 0 : index
    %c0_38 = arith.constant 0 : index
    %76 = vector.load %arg15[%c0_37, %c0_38] : memref<64x32xbf16, #tpu.memory_space<vmem>>, vector<64x32xbf16>
    %cst_39 = arith.constant dense<0.000000e+00> : vector<8x32xf32>
    %77 = tpu.matmul %75, %76, %cst_39 {dimension_numbers = #tpu.dot_dimension_numbers<[1], [0], [0], [1], [0, 0, 1, 1], [], []>} : vector<8x64xbf16>, vector<64x32xbf16>, vector<8x32xf32> -> vector<8x32xf32>
    %c0_40 = arith.constant 0 : index
    %c0_41 = arith.constant 0 : index
    %78 = vector.load %arg16[%c0_40, %c0_41] : memref<1x32xf32, #tpu.memory_space<vmem>>, vector<1x32xf32>
    %79 = vector.broadcast %78 : vector<1x32xf32> to vector<8x32xf32>
    %80 = arith.addf %77, %79 : vector<8x32xf32>
    %81 = arith.addf %66, %80 : vector<8x32xf32>
    %c0_42 = arith.constant 0 : index
    %c0_43 = arith.constant 0 : index
    %82 = vector.load %arg17[%c0_42, %c0_43] : memref<1x32xf32, #tpu.memory_space<vmem>>, vector<1x32xf32>
    %c0_44 = arith.constant 0 : index
    %c0_45 = arith.constant 0 : index
    %83 = vector.load %arg18[%c0_44, %c0_45] : memref<1x32xf32, #tpu.memory_space<vmem>>, vector<1x32xf32>
    %cst_46 = arith.constant dense<0.000000e+00> : vector<8xf32>
    %84 = vector.multi_reduction <add>, %81, %cst_46 [1] : vector<8x32xf32> to vector<8xf32>
    %85 = vector.shape_cast %84 : vector<8xf32> to vector<8x1xf32>
    %cst_47 = arith.constant 3.200000e+01 : f32
    %86 = vector.broadcast %cst_47 : f32 to vector<8x1xf32>
    %87 = arith.divf %85, %86 : vector<8x1xf32>
    %88 = vector.broadcast %87 : vector<8x1xf32> to vector<8x32xf32>
    %89 = arith.subf %81, %88 : vector<8x32xf32>
    %90 = arith.mulf %89, %89 : vector<8x32xf32>
    %cst_48 = arith.constant dense<0.000000e+00> : vector<8xf32>
    %91 = vector.multi_reduction <add>, %90, %cst_48 [1] : vector<8x32xf32> to vector<8xf32>
    %92 = vector.shape_cast %91 : vector<8xf32> to vector<8x1xf32>
    %cst_49 = arith.constant 3.200000e+01 : f32
    %93 = vector.broadcast %cst_49 : f32 to vector<8x1xf32>
    %94 = arith.divf %92, %93 : vector<8x1xf32>
    %95 = vector.broadcast %87 : vector<8x1xf32> to vector<8x32xf32>
    %96 = arith.subf %81, %95 : vector<8x32xf32>
    %cst_50 = arith.constant 9.99999974E-6 : f32
    %97 = vector.broadcast %cst_50 : f32 to vector<8x1xf32>
    %98 = arith.addf %94, %97 : vector<8x1xf32>
    %99 = math.rsqrt %98 : vector<8x1xf32>
    %100 = vector.broadcast %99 : vector<8x1xf32> to vector<8x32xf32>
    %101 = arith.mulf %96, %100 : vector<8x32xf32>
    %102 = vector.broadcast %82 : vector<1x32xf32> to vector<8x32xf32>
    %103 = arith.mulf %101, %102 : vector<8x32xf32>
    %104 = vector.broadcast %83 : vector<1x32xf32> to vector<8x32xf32>
    %105 = arith.addf %103, %104 : vector<8x32xf32>
    %c0_51 = arith.constant 0 : index
    %c0_52 = arith.constant 0 : index
    %c0_53 = arith.constant 0 : index
    %106 = vector.load %arg19[%c0_51, %c0_52, %c0_53] : memref<1x8x32xf32, #tpu.memory_space<vmem>>, vector<1x8x32xf32>
    %107 = vector.shape_cast %106 : vector<1x8x32xf32> to vector<8x32xf32>
    %108 = vector.shape_cast %105 : vector<8x32xf32> to vector<1x8x32xf32>
    tpu.vector_store %arg19[%c0_51, %c0_52, %c0_53], %108 {strides = array<i32>} : memref<1x8x32xf32, #tpu.memory_space<vmem>>, vector<1x8x32xf32>,
    return
  }
  func.func @transform_0(%arg0: i32, %arg1: i32) -> (i32, i32, i32) {
    %c0_i32 = arith.constant 0 : i32
    %c0_i32_0 = arith.constant 0 : i32
    %c0_i32_1 = arith.constant 0 : i32
    return %arg0, %c0_i32, %c0_i32_0 : i32, i32, i32
  }
  func.func @transform_1(%arg0: i32, %arg1: i32) -> (i32, i32) {
    %c0_i32 = arith.constant 0 : i32
    %c0_i32_0 = arith.constant 0 : i32
    %c0_i32_1 = arith.constant 0 : i32
    return %c0_i32, %c0_i32_0 : i32, i32
  }
  func.func @transform_2(%arg0: i32, %arg1: i32) -> (i32, i32) {
    %c0_i32 = arith.constant 0 : i32
    %c0_i32_0 = arith.constant 0 : i32
    %c0_i32_1 = arith.constant 0 : i32
    return %c0_i32, %c0_i32_0 : i32, i32
  }
  func.func @transform_3(%arg0: i32, %arg1: i32) -> (i32, i32) {
    %c0_i32 = arith.constant 0 : i32
    %c0_i32_0 = arith.constant 0 : i32
    %c0_i32_1 = arith.constant 0 : i32
    return %c0_i32, %c0_i32_0 : i32, i32
  }
  func.func @transform_4(%arg0: i32, %arg1: i32) -> (i32, i32) {
    %c0_i32 = arith.constant 0 : i32
    %c0_i32_0 = arith.constant 0 : i32
    %c0_i32_1 = arith.constant 0 : i32
    return %c0_i32, %c0_i32_0 : i32, i32
  }
  func.func @transform_5(%arg0: i32, %arg1: i32) -> (i32, i32) {
    %c0_i32 = arith.constant 0 : i32
    %c0_i32_0 = arith.constant 0 : i32
    %c0_i32_1 = arith.constant 0 : i32
    return %c0_i32, %c0_i32_0 : i32, i32
  }
  func.func @transform_6(%arg0: i32, %arg1: i32) -> (i32, i32) {
    %c0_i32 = arith.constant 0 : i32
    %c0_i32_0 = arith.constant 0 : i32
    %c0_i32_1 = arith.constant 0 : i32
    return %c0_i32, %c0_i32_0 : i32, i32
  }
  func.func @transform_7(%arg0: i32, %arg1: i32) -> (i32, i32) {
    %c0_i32 = arith.constant 0 : i32
    %c0_i32_0 = arith.constant 0 : i32
    %c0_i32_1 = arith.constant 0 : i32
    return %c0_i32, %c0_i32_0 : i32, i32
  }
  func.func @transform_8(%arg0: i32, %arg1: i32) -> (i32, i32) {
    %c0_i32 = arith.constant 0 : i32
    %c0_i32_0 = arith.constant 0 : i32
    %c0_i32_1 = arith.constant 0 : i32
    return %c0_i32, %c0_i32_0 : i32, i32
  }
  func.func @transform_9(%arg0: i32, %arg1: i32) -> (i32, i32) {
    %c0_i32 = arith.constant 0 : i32
    %c0_i32_0 = arith.constant 0 : i32
    %c0_i32_1 = arith.constant 0 : i32
    return %c0_i32, %c0_i32_0 : i32, i32
  }
  func.func @transform_10(%arg0: i32, %arg1: i32) -> (i32, i32) {
    %c0_i32 = arith.constant 0 : i32
    %c0_i32_0 = arith.constant 0 : i32
    %c0_i32_1 = arith.constant 0 : i32
    return %c0_i32, %c0_i32_0 : i32, i32
  }
  func.func @transform_11(%arg0: i32, %arg1: i32) -> (i32, i32) {
    %c0_i32 = arith.constant 0 : i32
    %c0_i32_0 = arith.constant 0 : i32
    %c0_i32_1 = arith.constant 0 : i32
    return %c0_i32, %c0_i32_0 : i32, i32
  }
  func.func @transform_12(%arg0: i32, %arg1: i32) -> (i32, i32) {
    %c0_i32 = arith.constant 0 : i32
    %c0_i32_0 = arith.constant 0 : i32
    %c0_i32_1 = arith.constant 0 : i32
    return %c0_i32, %c0_i32_0 : i32, i32
  }
  func.func @transform_13(%arg0: i32, %arg1: i32) -> (i32, i32) {
    %c0_i32 = arith.constant 0 : i32
    %c0_i32_0 = arith.constant 0 : i32
    %c0_i32_1 = arith.constant 0 : i32
    return %c0_i32, %c0_i32_0 : i32, i32
  }
  func.func @transform_14(%arg0: i32, %arg1: i32) -> (i32, i32) {
    %c0_i32 = arith.constant 0 : i32
    %c0_i32_0 = arith.constant 0 : i32
    %c0_i32_1 = arith.constant 0 : i32
    return %c0_i32, %c0_i32_0 : i32, i32
  }
  func.func @transform_15(%arg0: i32, %arg1: i32) -> (i32, i32) {
    %c0_i32 = arith.constant 0 : i32
    %c0_i32_0 = arith.constant 0 : i32
    %c0_i32_1 = arith.constant 0 : i32
    return %c0_i32, %c0_i32_0 : i32, i32
  }
  func.func @transform_16(%arg0: i32, %arg1: i32) -> (i32, i32) {
    %c0_i32 = arith.constant 0 : i32
    %c0_i32_0 = arith.constant 0 : i32
    %c0_i32_1 = arith.constant 0 : i32
    return %c0_i32, %c0_i32_0 : i32, i32
  }
  func.func @transform_17(%arg0: i32, %arg1: i32) -> (i32, i32, i32) {
    %c0_i32 = arith.constant 0 : i32
    %c0_i32_0 = arith.constant 0 : i32
    return %arg0, %arg1, %c0_i32 : i32, i32, i32
  }
}

module attributes {stable_mosaic.version = 11 : i64} {
  func.func @encoder_layer_kernel(%arg0: i32, %arg1: i32, %arg2: memref<1x8x32xf32, #tpu.memory_space<vmem>>, %arg3: memref<32x32xbf16, #tpu.memory_space<vmem>>, %arg4: memref<1x32xf32, #tpu.memory_space<vmem>>, %arg5: memref<32x32xbf16, #tpu.memory_space<vmem>>, %arg6: memref<1x32xf32, #tpu.memory_space<vmem>>, %arg7: memref<32x32xbf16, #tpu.memory_space<vmem>>, %arg8: memref<1x32xf32, #tpu.memory_space<vmem>>, %arg9: memref<32x32xbf16, #tpu.memory_space<vmem>>, %arg10: memref<1x32xf32, #tpu.memory_space<vmem>>, %arg11: memref<1x32xf32, #tpu.memory_space<vmem>>, %arg12: memref<1x32xf32, #tpu.memory_space<vmem>>, %arg13: memref<32x64xbf16, #tpu.memory_space<vmem>>, %arg14: memref<1x64xf32, #tpu.memory_space<vmem>>, %arg15: memref<64x32xbf16, #tpu.memory_space<vmem>>, %arg16: memref<1x32xf32, #tpu.memory_space<vmem>>, %arg17: memref<1x32xf32, #tpu.memory_space<vmem>>, %arg18: memref<1x32xf32, #tpu.memory_space<vmem>>, %arg19: memref<1x8x32xf32, #tpu.memory_space<vmem>>, %arg20: memref<4x8x8xbf16, #tpu.memory_space<vmem>>, %arg21: memref<4x8x8xbf16, #tpu.memory_space<vmem>>) attributes {dimension_semantics = [#tpu.dimension_semantics<parallel>, #tpu.dimension_semantics<arbitrary>], iteration_bounds = array<i64: 2, 1>, scalar_prefetch = 0 : i64, scratch_operands = 2 : i64, tpu.core_type = #tpu.core_type<tc>, window_params = [{transform_indices = @transform_0, window_bounds = array<i64: 1, 8, 32>}, {pipeline_mode = #tpu.pipeline_mode<synchronous>, transform_indices = @transform_1, window_bounds = array<i64: 32, 32>}, {pipeline_mode = #tpu.pipeline_mode<synchronous>, transform_indices = @transform_2, window_bounds = array<i64: 1, 32>}, {pipeline_mode = #tpu.pipeline_mode<synchronous>, transform_indices = @transform_3, window_bounds = array<i64: 32, 32>}, {pipeline_mode = #tpu.pipeline_mode<synchronous>, transform_indices = @transform_4, window_bounds = array<i64: 1, 32>}, {pipeline_mode = #tpu.pipeline_mode<synchronous>, transform_indices = @transform_5, window_bounds = array<i64: 32, 32>}, {pipeline_mode = #tpu.pipeline_mode<synchronous>, transform_indices = @transform_6, window_bounds = array<i64: 1, 32>}, {pipeline_mode = #tpu.pipeline_mode<synchronous>, transform_indices = @transform_7, window_bounds = array<i64: 32, 32>}, {pipeline_mode = #tpu.pipeline_mode<synchronous>, transform_indices = @transform_8, window_bounds = array<i64: 1, 32>}, {pipeline_mode = #tpu.pipeline_mode<synchronous>, transform_indices = @transform_9, window_bounds = array<i64: 1, 32>}, {pipeline_mode = #tpu.pipeline_mode<synchronous>, transform_indices = @transform_10, window_bounds = array<i64: 1, 32>}, {pipeline_mode = #tpu.pipeline_mode<synchronous>, transform_indices = @transform_11, window_bounds = array<i64: 32, 64>}, {pipeline_mode = #tpu.pipeline_mode<synchronous>, transform_indices = @transform_12, window_bounds = array<i64: 1, 64>}, {pipeline_mode = #tpu.pipeline_mode<synchronous>, transform_indices = @transform_13, window_bounds = array<i64: 64, 32>}, {pipeline_mode = #tpu.pipeline_mode<synchronous>, transform_indices = @transform_14, window_bounds = array<i64: 1, 32>}, {pipeline_mode = #tpu.pipeline_mode<synchronous>, transform_indices = @transform_15, window_bounds = array<i64: 1, 32>}, {pipeline_mode = #tpu.pipeline_mode<synchronous>, transform_indices = @transform_16, window_bounds = array<i64: 1, 32>}, {transform_indices = @transform_17, window_bounds = array<i64: 1, 8, 32>}]} {
    %c0_i32 = arith.constant 0 : i32
    %0 = arith.cmpi eq, %arg1, %c0_i32 : i32
    %1 = arith.extui %0 : i1 to i32
    %c0_i32_0 = arith.constant 0 : i32
    %2 = arith.cmpi ne, %1, %c0_i32_0 : i32
    scf.if %2 {
      %c0_54 = arith.constant 0 : index
      %c0_55 = arith.constant 0 : index
      %c0_56 = arith.constant 0 : index
      %109 = vector.load %arg2[%c0_54, %c0_55, %c0_56] : memref<1x8x32xf32, #tpu.memory_space<vmem>>, vector<1x8x32xf32>
      %110 = vector.shape_cast %109 : vector<1x8x32xf32> to vector<8x32xf32>
      %111 = arith.truncf %110 : vector<8x32xf32> to vector<8x32xbf16>
      %c0_57 = arith.constant 0 : index
      %c0_58 = arith.constant 0 : index
      %112 = vector.load %arg5[%c0_57, %c0_58] : memref<32x32xbf16, #tpu.memory_space<vmem>>, vector<32x32xbf16>
      %cst_59 = arith.constant dense<0.000000e+00> : vector<8x32xf32>
      %113 = tpu.matmul %111, %112, %cst_59 {dimension_numbers = #tpu.dot_dimension_numbers<[1], [0], [0], [1], [0, 0, 1, 1], [], []>} : vector<8x32xbf16>, vector<32x32xbf16>, vector<8x32xf32> -> vector<8x32xf32>
      %c0_60 = arith.constant 0 : index
      %c0_61 = arith.constant 0 : index
      %114 = vector.load %arg6[%c0_60, %c0_61] : memref<1x32xf32, #tpu.memory_space<vmem>>, vector<1x32xf32>
      %115 = vector.broadcast %114 : vector<1x32xf32> to vector<8x32xf32>
      %116 = arith.addf %113, %115 : vector<8x32xf32>
      %c0_62 = arith.constant 0 : index
      %c0_63 = arith.constant 0 : index
      %117 = vector.load %arg7[%c0_62, %c0_63] : memref<32x32xbf16, #tpu.memory_space<vmem>>, vector<32x32xbf16>
      %cst_64 = arith.constant dense<0.000000e+00> : vector<8x32xf32>
      %118 = tpu.matmul %111, %117, %cst_64 {dimension_numbers = #tpu.dot_dimension_numbers<[1], [0], [0], [1], [0, 0, 1, 1], [], []>} : vector<8x32xbf16>, vector<32x32xbf16>, vector<8x32xf32> -> vector<8x32xf32>
      %c0_65 = arith.constant 0 : index
      %c0_66 = arith.constant 0 : index
      %119 = vector.load %arg8[%c0_65, %c0_66] : memref<1x32xf32, #tpu.memory_space<vmem>>, vector<1x32xf32>
      %120 = vector.broadcast %119 : vector<1x32xf32> to vector<8x32xf32>
      %121 = arith.addf %118, %120 : vector<8x32xf32>
      %122 = vector.shape_cast %116 : vector<8x32xf32> to vector<8x4x8xf32>
      %123 = tpu.transpose %122, [1, 0, 2] : vector<8x4x8xf32> -> vector<4x8x8xf32>
      %124 = arith.truncf %123 : vector<4x8x8xf32> to vector<4x8x8xbf16>
      %c0_67 = arith.constant 0 : index
      %c0_68 = arith.constant 0 : index
      %c0_69 = arith.constant 0 : index
      %125 = vector.load %arg20[%c0_67, %c0_68, %c0_69] : memref<4x8x8xbf16, #tpu.memory_space<vmem>>, vector<4x8x8xbf16>
      tpu.vector_store %arg20[%c0_67, %c0_68, %c0_69], %124 {strides = array<i32>} : memref<4x8x8xbf16, #tpu.memory_space<vmem>>, vector<4x8x8xbf16>,
      %126 = vector.shape_cast %121 : vector<8x32xf32> to vector<8x4x8xf32>
      %127 = tpu.transpose %126, [1, 0, 2] : vector<8x4x8xf32> -> vector<4x8x8xf32>
      %128 = arith.truncf %127 : vector<4x8x8xf32> to vector<4x8x8xbf16>
      %c0_70 = arith.constant 0 : index
      %c0_71 = arith.constant 0 : index
      %c0_72 = arith.constant 0 : index
      %129 = vector.load %arg21[%c0_70, %c0_71, %c0_72] : memref<4x8x8xbf16, #tpu.memory_space<vmem>>, vector<4x8x8xbf16>
      tpu.vector_store %arg21[%c0_70, %c0_71, %c0_72], %128 {strides = array<i32>} : memref<4x8x8xbf16, #tpu.memory_space<vmem>>, vector<4x8x8xbf16>,
    } else {
    }
    %c8_i32 = arith.constant 8 : i32
    %3 = arith.muli %arg1, %c8_i32 : i32
    %4 = tpu.assume_multiple %3, 8 : i32
    %c0 = arith.constant 0 : index
    %5 = arith.index_cast %4 : i32 to index
    %c0_1 = arith.constant 0 : index
    %6 = vector.load %arg2[%c0, %5, %c0_1] : memref<1x8x32xf32, #tpu.memory_space<vmem>>, vector<1x8x32xf32>
    %7 = vector.shape_cast %6 : vector<1x8x32xf32> to vector<8x32xf32>
    %8 = arith.truncf %7 : vector<8x32xf32> to vector<8x32xbf16>
    %c0_2 = arith.constant 0 : index
    %c0_3 = arith.constant 0 : index
    %9 = vector.load %arg3[%c0_2, %c0_3] : memref<32x32xbf16, #tpu.memory_space<vmem>>, vector<32x32xbf16>
    %cst = arith.constant dense<0.000000e+00> : vector<8x32xf32>
    %10 = tpu.matmul %8, %9, %cst {dimension_numbers = #tpu.dot_dimension_numbers<[1], [0], [0], [1], [0, 0, 1, 1], [], []>} : vector<8x32xbf16>, vector<32x32xbf16>, vector<8x32xf32> -> vector<8x32xf32>
    %c0_4 = arith.constant 0 : index
    %c0_5 = arith.constant 0 : index
    %11 = vector.load %arg4[%c0_4, %c0_5] : memref<1x32xf32, #tpu.memory_space<vmem>>, vector<1x32xf32>
    %12 = vector.broadcast %11 : vector<1x32xf32> to vector<8x32xf32>
    %13 = arith.addf %10, %12 : vector<8x32xf32>
    %cst_6 = arith.constant 0.353553385 : f32
    %14 = vector.broadcast %cst_6 : f32 to vector<8x32xf32>
    %15 = arith.mulf %13, %14 : vector<8x32xf32>
    %16 = vector.shape_cast %15 : vector<8x32xf32> to vector<8x4x8xf32>
    %17 = tpu.transpose %16, [1, 0, 2] : vector<8x4x8xf32> -> vector<4x8x8xf32>
    %18 = arith.truncf %17 : vector<4x8x8xf32> to vector<4x8x8xbf16>
    %c0_7 = arith.constant 0 : index
    %c0_8 = arith.constant 0 : index
    %c0_9 = arith.constant 0 : index
    %19 = vector.load %arg20[%c0_7, %c0_8, %c0_9] : memref<4x8x8xbf16, #tpu.memory_space<vmem>>, vector<4x8x8xbf16>
    %c0_10 = arith.constant 0 : index
    %c0_11 = arith.constant 0 : index
    %c0_12 = arith.constant 0 : index
    %20 = vector.load %arg21[%c0_10, %c0_11, %c0_12] : memref<4x8x8xbf16, #tpu.memory_space<vmem>>, vector<4x8x8xbf16>
    "tpu.trace_start"() <{level = 10 : i32, message = "hqd,hkd->hqk"}> : () -> ()
    %cst_13 = arith.constant dense<0.000000e+00> : vector<4x8x8xf32>
    %21 = tpu.matmul %18, %19, %cst_13 {dimension_numbers = #tpu.dot_dimension_numbers<[2], [2], [1], [1], [0, 0, 0, 1, 1, 1], [0], [0]>} : vector<4x8x8xbf16>, vector<4x8x8xbf16>, vector<4x8x8xf32> -> vector<4x8x8xf32>
    "tpu.trace_stop"() : () -> ()
    %cst_14 = arith.constant dense<0xFF800000> : vector<4x8xf32>
    %22 = vector.multi_reduction <maximumf>, %21, %cst_14 [2] : vector<4x8x8xf32> to vector<4x8xf32>
    %23 = vector.shape_cast %22 : vector<4x8xf32> to vector<4x8x1xf32>
    %24 = vector.broadcast %23 : vector<4x8x1xf32> to vector<4x8x8xf32>
    %25 = arith.subf %21, %24 : vector<4x8x8xf32>
    %26 = math.exp %25 : vector<4x8x8xf32>
    %cst_15 = arith.constant dense<0.000000e+00> : vector<4x8xf32>
    %27 = vector.multi_reduction <add>, %26, %cst_15 [2] : vector<4x8x8xf32> to vector<4x8xf32>
    %28 = vector.shape_cast %27 : vector<4x8xf32> to vector<4x8x1xf32>
    %29 = tpu.reciprocal %28 {approx = true} : vector<4x8x1xf32> -> vector<4x8x1xf32>
    %30 = vector.broadcast %29 : vector<4x8x1xf32> to vector<4x8x8xf32>
    %31 = arith.mulf %26, %30 : vector<4x8x8xf32>
    %32 = arith.truncf %31 : vector<4x8x8xf32> to vector<4x8x8xbf16>
    "tpu.trace_start"() <{level = 10 : i32, message = "hqk,hkd->hqd"}> : () -> ()
    %cst_16 = arith.constant dense<0.000000e+00> : vector<4x8x8xf32>
    %33 = tpu.matmul %32, %20, %cst_16 {dimension_numbers = #tpu.dot_dimension_numbers<[2], [1], [1], [2], [0, 0, 0, 1, 1, 2], [0], [0]>} : vector<4x8x8xbf16>, vector<4x8x8xbf16>, vector<4x8x8xf32> -> vector<4x8x8xf32>
    "tpu.trace_stop"() : () -> ()
    %34 = tpu.transpose %33, [1, 0, 2] : vector<4x8x8xf32> -> vector<8x4x8xf32>
    %35 = vector.shape_cast %34 : vector<8x4x8xf32> to vector<8x32xf32>
    %36 = arith.truncf %35 : vector<8x32xf32> to vector<8x32xbf16>
    %c0_17 = arith.constant 0 : index
    %c0_18 = arith.constant 0 : index
    %37 = vector.load %arg9[%c0_17, %c0_18] : memref<32x32xbf16, #tpu.memory_space<vmem>>, vector<32x32xbf16>
    %cst_19 = arith.constant dense<0.000000e+00> : vector<8x32xf32>
    %38 = tpu.matmul %36, %37, %cst_19 {dimension_numbers = #tpu.dot_dimension_numbers<[1], [0], [0], [1], [0, 0, 1, 1], [], []>} : vector<8x32xbf16>, vector<32x32xbf16>, vector<8x32xf32> -> vector<8x32xf32>
    %c0_20 = arith.constant 0 : index
    %c0_21 = arith.constant 0 : index
    %39 = vector.load %arg10[%c0_20, %c0_21] : memref<1x32xf32, #tpu.memory_space<vmem>>, vector<1x32xf32>
    %40 = vector.broadcast %39 : vector<1x32xf32> to vector<8x32xf32>
    %41 = arith.addf %38, %40 : vector<8x32xf32>
    %42 = arith.addf %7, %41 : vector<8x32xf32>
    %c0_22 = arith.constant 0 : index
    %c0_23 = arith.constant 0 : index
    %43 = vector.load %arg11[%c0_22, %c0_23] : memref<1x32xf32, #tpu.memory_space<vmem>>, vector<1x32xf32>
    %c0_24 = arith.constant 0 : index
    %c0_25 = arith.constant 0 : index
    %44 = vector.load %arg12[%c0_24, %c0_25] : memref<1x32xf32, #tpu.memory_space<vmem>>, vector<1x32xf32>
    %cst_26 = arith.constant dense<0.000000e+00> : vector<8xf32>
    %45 = vector.multi_reduction <add>, %42, %cst_26 [1] : vector<8x32xf32> to vector<8xf32>
    %46 = vector.shape_cast %45 : vector<8xf32> to vector<8x1xf32>
    %cst_27 = arith.constant 3.200000e+01 : f32
    %47 = vector.broadcast %cst_27 : f32 to vector<8x1xf32>
    %48 = arith.divf %46, %47 : vector<8x1xf32>
    %49 = vector.broadcast %48 : vector<8x1xf32> to vector<8x32xf32>
    %50 = arith.subf %42, %49 : vector<8x32xf32>
    %51 = arith.mulf %50, %50 : vector<8x32xf32>
    %cst_28 = arith.constant dense<0.000000e+00> : vector<8xf32>
    %52 = vector.multi_reduction <add>, %51, %cst_28 [1] : vector<8x32xf32> to vector<8xf32>
    %53 = vector.shape_cast %52 : vector<8xf32> to vector<8x1xf32>
    %cst_29 = arith.constant 3.200000e+01 : f32
    %54 = vector.broadcast %cst_29 : f32 to vector<8x1xf32>
    %55 = arith.divf %53, %54 : vector<8x1xf32>
    %56 = vector.broadcast %48 : vector<8x1xf32> to vector<8x32xf32>
    %57 = arith.subf %42, %56 : vector<8x32xf32>
    %cst_30 = arith.constant 9.99999974E-6 : f32
    %58 = vector.broadcast %cst_30 : f32 to vector<8x1xf32>
    %59 = arith.addf %55, %58 : vector<8x1xf32>
    %60 = math.rsqrt %59 : vector<8x1xf32>
    %61 = vector.broadcast %60 : vector<8x1xf32> to vector<8x32xf32>
    %62 = arith.mulf %57, %61 : vector<8x32xf32>
    %63 = vector.broadcast %43 : vector<1x32xf32> to vector<8x32xf32>
    %64 = arith.mulf %62, %63 : vector<8x32xf32>
    %65 = vector.broadcast %44 : vector<1x32xf32> to vector<8x32xf32>
    %66 = arith.addf %64, %65 : vector<8x32xf32>
    %67 = arith.truncf %66 : vector<8x32xf32> to vector<8x32xbf16>
    %c0_31 = arith.constant 0 : index
    %c0_32 = arith.constant 0 : index
    %68 = vector.load %arg13[%c0_31, %c0_32] : memref<32x64xbf16, #tpu.memory_space<vmem>>, vector<32x64xbf16>
    %cst_33 = arith.constant dense<0.000000e+00> : vector<8x64xf32>
    %69 = tpu.matmul %67, %68, %cst_33 {dimension_numbers = #tpu.dot_dimension_numbers<[1], [0], [0], [1], [0, 0, 1, 1], [], []>} : vector<8x32xbf16>, vector<32x64xbf16>, vector<8x64xf32> -> vector<8x64xf32>
    %c0_34 = arith.constant 0 : index
    %c0_35 = arith.constant 0 : index
    %70 = vector.load %arg14[%c0_34, %c0_35] : memref<1x64xf32, #tpu.memory_space<vmem>>, vector<1x64xf32>
    %71 = vector.broadcast %70 : vector<1x64xf32> to vector<8x64xf32>
    %72 = arith.addf %69, %71 : vector<8x64xf32>
    %cst_36 = arith.constant 0.000000e+00 : f32
    %73 = vector.broadcast %cst_36 : f32 to vector<8x64xf32>
    %74 = arith.maximumf %72, %73 : vector<8x64xf32>
    %75 = arith.truncf %74 : vector<8x64xf32> to vector<8x64xbf16>
    %c0_37 = arith.constant 0 : index
    %c0_38 = arith.constant 0 : index
    %76 = vector.load %arg15[%c0_37, %c0_38] : memref<64x32xbf16, #tpu.memory_space<vmem>>, vector<64x32xbf16>
    %cst_39 = arith.constant dense<0.000000e+00> : vector<8x32xf32>
    %77 = tpu.matmul %75, %76, %cst_39 {dimension_numbers = #tpu.dot_dimension_numbers<[1], [0], [0], [1], [0, 0, 1, 1], [], []>} : vector<8x64xbf16>, vector<64x32xbf16>, vector<8x32xf32> -> vector<8x32xf32>
    %c0_40 = arith.constant 0 : index
    %c0_41 = arith.constant 0 : index
    %78 = vector.load %arg16[%c0_40, %c0_41] : memref<1x32xf32, #tpu.memory_space<vmem>>, vector<1x32xf32>
    %79 = vector.broadcast %78 : vector<1x32xf32> to vector<8x32xf32>
    %80 = arith.addf %77, %79 : vector<8x32xf32>
    %81 = arith.addf %66, %80 : vector<8x32xf32>
    %c0_42 = arith.constant 0 : index
    %c0_43 = arith.constant 0 : index
    %82 = vector.load %arg17[%c0_42, %c0_43] : memref<1x32xf32, #tpu.memory_space<vmem>>, vector<1x32xf32>
    %c0_44 = arith.constant 0 : index
    %c0_45 = arith.constant 0 : index
    %83 = vector.load %arg18[%c0_44, %c0_45] : memref<1x32xf32, #tpu.memory_space<vmem>>, vector<1x32xf32>
    %cst_46 = arith.constant dense<0.000000e+00> : vector<8xf32>
    %84 = vector.multi_reduction <add>, %81, %cst_46 [1] : vector<8x32xf32> to vector<8xf32>
    %85 = vector.shape_cast %84 : vector<8xf32> to vector<8x1xf32>
    %cst_47 = arith.constant 3.200000e+01 : f32
    %86 = vector.broadcast %cst_47 : f32 to vector<8x1xf32>
    %87 = arith.divf %85, %86 : vector<8x1xf32>
    %88 = vector.broadcast %87 : vector<8x1xf32> to vector<8x32xf32>
    %89 = arith.subf %81, %88 : vector<8x32xf32>
    %90 = arith.mulf %89, %89 : vector<8x32xf32>
    %cst_48 = arith.constant dense<0.000000e+00> : vector<8xf32>
    %91 = vector.multi_reduction <add>, %90, %cst_48 [1] : vector<8x32xf32> to vector<8xf32>
    %92 = vector.shape_cast %91 : vector<8xf32> to vector<8x1xf32>
    %cst_49 = arith.constant 3.200000e+01 : f32
    %93 = vector.broadcast %cst_49 : f32 to vector<8x1xf32>
    %94 = arith.divf %92, %93 : vector<8x1xf32>
    %95 = vector.broadcast %87 : vector<8x1xf32> to vector<8x32xf32>
    %96 = arith.subf %81, %95 : vector<8x32xf32>
    %cst_50 = arith.constant 9.99999974E-6 : f32
    %97 = vector.broadcast %cst_50 : f32 to vector<8x1xf32>
    %98 = arith.addf %94, %97 : vector<8x1xf32>
    %99 = math.rsqrt %98 : vector<8x1xf32>
    %100 = vector.broadcast %99 : vector<8x1xf32> to vector<8x32xf32>
    %101 = arith.mulf %96, %100 : vector<8x32xf32>
    %102 = vector.broadcast %82 : vector<1x32xf32> to vector<8x32xf32>
    %103 = arith.mulf %101, %102 : vector<8x32xf32>
    %104 = vector.broadcast %83 : vector<1x32xf32> to vector<8x32xf32>
    %105 = arith.addf %103, %104 : vector<8x32xf32>
    %c0_51 = arith.constant 0 : index
    %c0_52 = arith.constant 0 : index
    %c0_53 = arith.constant 0 : index
    %106 = vector.load %arg19[%c0_51, %c0_52, %c0_53] : memref<1x8x32xf32, #tpu.memory_space<vmem>>, vector<1x8x32xf32>
    %107 = vector.shape_cast %106 : vector<1x8x32xf32> to vector<8x32xf32>
    %108 = vector.shape_cast %105 : vector<8x32xf32> to vector<1x8x32xf32>
    tpu.vector_store %arg19[%c0_51, %c0_52, %c0_53], %108 {strides = array<i32>} : memref<1x8x32xf32, #tpu.memory_space<vmem>>, vector<1x8x32xf32>,
    return
  }
  func.func @transform_0(%arg0: i32, %arg1: i32) -> (i32, i32, i32) {
    %c0_i32 = arith.constant 0 : i32
    %c0_i32_0 = arith.constant 0 : i32
    %c0_i32_1 = arith.constant 0 : i32
    return %arg0, %c0_i32, %c0_i32_0 : i32, i32, i32
  }
  func.func @transform_1(%arg0: i32, %arg1: i32) -> (i32, i32) {
    %c0_i32 = arith.constant 0 : i32
    %c0_i32_0 = arith.constant 0 : i32
    %c0_i32_1 = arith.constant 0 : i32
    return %c0_i32, %c0_i32_0 : i32, i32
  }
  func.func @transform_2(%arg0: i32, %arg1: i32) -> (i32, i32) {
    %c0_i32 = arith.constant 0 : i32
    %c0_i32_0 = arith.constant 0 : i32
    %c0_i32_1 = arith.constant 0 : i32
    return %c0_i32, %c0_i32_0 : i32, i32
  }
  func.func @transform_3(%arg0: i32, %arg1: i32) -> (i32, i32) {
    %c0_i32 = arith.constant 0 : i32
    %c0_i32_0 = arith.constant 0 : i32
    %c0_i32_1 = arith.constant 0 : i32
    return %c0_i32, %c0_i32_0 : i32, i32
  }
  func.func @transform_4(%arg0: i32, %arg1: i32) -> (i32, i32) {
    %c0_i32 = arith.constant 0 : i32
    %c0_i32_0 = arith.constant 0 : i32
    %c0_i32_1 = arith.constant 0 : i32
    return %c0_i32, %c0_i32_0 : i32, i32
  }
  func.func @transform_5(%arg0: i32, %arg1: i32) -> (i32, i32) {
    %c0_i32 = arith.constant 0 : i32
    %c0_i32_0 = arith.constant 0 : i32
    %c0_i32_1 = arith.constant 0 : i32
    return %c0_i32, %c0_i32_0 : i32, i32
  }
  func.func @transform_6(%arg0: i32, %arg1: i32) -> (i32, i32) {
    %c0_i32 = arith.constant 0 : i32
    %c0_i32_0 = arith.constant 0 : i32
    %c0_i32_1 = arith.constant 0 : i32
    return %c0_i32, %c0_i32_0 : i32, i32
  }
  func.func @transform_7(%arg0: i32, %arg1: i32) -> (i32, i32) {
    %c0_i32 = arith.constant 0 : i32
    %c0_i32_0 = arith.constant 0 : i32
    %c0_i32_1 = arith.constant 0 : i32
    return %c0_i32, %c0_i32_0 : i32, i32
  }
  func.func @transform_8(%arg0: i32, %arg1: i32) -> (i32, i32) {
    %c0_i32 = arith.constant 0 : i32
    %c0_i32_0 = arith.constant 0 : i32
    %c0_i32_1 = arith.constant 0 : i32
    return %c0_i32, %c0_i32_0 : i32, i32
  }
  func.func @transform_9(%arg0: i32, %arg1: i32) -> (i32, i32) {
    %c0_i32 = arith.constant 0 : i32
    %c0_i32_0 = arith.constant 0 : i32
    %c0_i32_1 = arith.constant 0 : i32
    return %c0_i32, %c0_i32_0 : i32, i32
  }
  func.func @transform_10(%arg0: i32, %arg1: i32) -> (i32, i32) {
    %c0_i32 = arith.constant 0 : i32
    %c0_i32_0 = arith.constant 0 : i32
    %c0_i32_1 = arith.constant 0 : i32
    return %c0_i32, %c0_i32_0 : i32, i32
  }
  func.func @transform_11(%arg0: i32, %arg1: i32) -> (i32, i32) {
    %c0_i32 = arith.constant 0 : i32
    %c0_i32_0 = arith.constant 0 : i32
    %c0_i32_1 = arith.constant 0 : i32
    return %c0_i32, %c0_i32_0 : i32, i32
  }
  func.func @transform_12(%arg0: i32, %arg1: i32) -> (i32, i32) {
    %c0_i32 = arith.constant 0 : i32
    %c0_i32_0 = arith.constant 0 : i32
    %c0_i32_1 = arith.constant 0 : i32
    return %c0_i32, %c0_i32_0 : i32, i32
  }
  func.func @transform_13(%arg0: i32, %arg1: i32) -> (i32, i32) {
    %c0_i32 = arith.constant 0 : i32
    %c0_i32_0 = arith.constant 0 : i32
    %c0_i32_1 = arith.constant 0 : i32
    return %c0_i32, %c0_i32_0 : i32, i32
  }
  func.func @transform_14(%arg0: i32, %arg1: i32) -> (i32, i32) {
    %c0_i32 = arith.constant 0 : i32
    %c0_i32_0 = arith.constant 0 : i32
    %c0_i32_1 = arith.constant 0 : i32
    return %c0_i32, %c0_i32_0 : i32, i32
  }
  func.func @transform_15(%arg0: i32, %arg1: i32) -> (i32, i32) {
    %c0_i32 = arith.constant 0 : i32
    %c0_i32_0 = arith.constant 0 : i32
    %c0_i32_1 = arith.constant 0 : i32
    return %c0_i32, %c0_i32_0 : i32, i32
  }
  func.func @transform_16(%arg0: i32, %arg1: i32) -> (i32, i32) {
    %c0_i32 = arith.constant 0 : i32
    %c0_i32_0 = arith.constant 0 : i32
    %c0_i32_1 = arith.constant 0 : i32
    return %c0_i32, %c0_i32_0 : i32, i32
  }
  func.func @transform_17(%arg0: i32, %arg1: i32) -> (i32, i32, i32) {
    %c0_i32 = arith.constant 0 : i32
    %c0_i32_0 = arith.constant 0 : i32
    return %arg0, %arg1, %c0_i32 : i32, i32, i32
  }
}

</mosaic_0001>

<llo_original>
// kernel: tpu_custom_call.1
$region0: #{tpu_custom_call.1}
  #allocation0 [shape = 'u32[]', space=smem, size = 0x4, offset = 0x4, fixed_abs, tag = 'smem constant byte address 0x4 - core index']
  #allocation1 [shape = 'u32[72,128]{1,0:T(1,128)}', space=vmem, size = 0x9000, scoped, tag = 'internal scratch']
  #allocation2 [shape = 'bf16[4,8,8]{2,1,0:T(8,128)(2,1)}', space=vmem, size = 0x2000, scoped, tag = 'scratch operand']
  #allocation3 [shape = 'bf16[4,8,8]{2,1,0:T(8,128)(2,1)}', space=vmem, size = 0x2000, scoped, tag = 'scratch operand']
  %s0 = inlined_call_operand.vmem [shape: f32[2,8,32], index: 0, kind: input, shape index: {}]
  %s1 = inlined_call_operand.vmem [shape: bf16[32,32], index: 1, kind: input, shape index: {}]
  %s2 = inlined_call_operand.vmem [shape: f32[1,32], index: 2, kind: input, shape index: {}]
  %s3 = inlined_call_operand.vmem [shape: bf16[32,32], index: 3, kind: input, shape index: {}]
  %s4 = inlined_call_operand.vmem [shape: f32[1,32], index: 4, kind: input, shape index: {}]
  %s5 = inlined_call_operand.hbm [shape: bf16[32,32], index: 5, kind: input, shape index: {}]
  %s6 = inlined_call_operand.vmem [shape: f32[1,32], index: 6, kind: input, shape index: {}]
  %s7 = inlined_call_operand.hbm [shape: bf16[32,32], index: 7, kind: input, shape index: {}]
  %s8 = inlined_call_operand.vmem [shape: f32[1,32], index: 8, kind: input, shape index: {}]
  %s9 = inlined_call_operand.vmem [shape: f32[1,32], index: 9, kind: input, shape index: {}]
  %s10 = inlined_call_operand.vmem [shape: f32[1,32], index: 10, kind: input, shape index: {}]
  %s11 = inlined_call_operand.hbm [shape: bf16[32,64], index: 11, kind: input, shape index: {}]
  %s12 = inlined_call_operand.vmem [shape: f32[1,64], index: 12, kind: input, shape index: {}]
  %s13 = inlined_call_operand.vmem [shape: bf16[64,32], index: 13, kind: input, shape index: {}]
  %s14 = inlined_call_operand.vmem [shape: f32[1,32], index: 14, kind: input, shape index: {}]
  %s15 = inlined_call_operand.vmem [shape: f32[1,32], index: 15, kind: input, shape index: {}]
  %s16 = inlined_call_operand.vmem [shape: f32[1,32], index: 16, kind: input, shape index: {}]
  %s17 = inlined_call_operand.hbm [shape: f32[2,8,32], index: 17, kind: output, shape index: {}]
  %s18 = sld [smem:[#allocation0]]
  $region117: #{tpu_custom_call.1} parent=0
    _
  %s20 = ssub.s32 1, %s18
  %s21 = scalar_select 0, %s20, %s18
  $region1: #{tpu_custom_call.1} parent=0
    #allocation4 [shape = 'u8[8192]{0}', space=vmem, size = 0x2000, scoped, tag = 'input window, operand 5, single buffered']
    #allocation5 [shape = 's32[2]{0}', space=sflag, size = 0x8, scoped, tag = 'scoped memory for tpu_custom_call.1']
    #allocation6 [shape = 's32[2]{0}', space=sflag, size = 0x8, scoped, tag = 'scoped memory for tpu_custom_call.1']
    #allocation7 [shape = 'u8[8192]{0}', space=vmem, size = 0x2000, scoped, tag = 'input window, operand 7, single buffered']
    #allocation8 [shape = 's32[1]{0}', space=sflag, size = 0x4, scoped, tag = 'scoped memory for tpu_custom_call.1']
    #allocation9 [shape = 'u8[8192]{0}', space=vmem, size = 0x2000, scoped, tag = 'input window, operand 11, single buffered']
    #allocation10 [shape = 'u8[8192]{0}', space=vmem, size = 0x2000, scoped, tag = 'output window, operand 0']
    %22 = vsyncpa [#allocation5], 0
    %23 = vsyncpa [#allocation8], 0
    %24 = vsyncpa [#allocation6], 0
    %s25 = scalar_lea.sflag [#allocation6], 1
    %26 = vsyncpa %s25, 0
    loop: start=0, step=1, limit=4
    $region2: #{tpu_custom_call.1} parent=1 // loop_pre_header
      _
    $region3: #{tpu_custom_call.1} parent=1 // loop_header
      %s28 = sphi 0, %s32
      %p29 = scmp.ge.s32.totalorder %s28, 4
      %s35 = sphi 0, %s47
      %s36 = sphi 0, %s43
      %s37 = sphi 0, %s35
      %s38 = sphi 0, %s36
      %s39 = sphi 0, %s37
      %s40 = sphi 0, %s38
      %s50 = sphi 0, %s52
      %s53 = sphi 0, %s50
      %s54 = sphi 0, %s53
      %s70 = sphi 0, %s54
      %s74 = sphi 0, %s74
      %s76 = sphi 0, %s74
      %s77 = sphi 0, %s76
      %s91 = sphi 0, %s77
      %s95 = sphi 0, %s95
      %s97 = sphi 0, %s95
      %s98 = sphi 0, %s97
      %s112 = sphi 0, %s98
      %s116 = sphi 0, %s116
      %s118 = sphi 0, %s116
      %s119 = sphi 0, %s118
      %s133 = sphi 0, %s119
      %s137 = sphi 0, %s137
      %s139 = sphi 0, %s137
      %s140 = sphi 0, %s139
      %s154 = sphi 0, %s140
      %s158 = sphi 0, %s158
      %s160 = sphi 0, %s158
      %s161 = sphi 0, %s160
      %s175 = sphi 0, %s161
      %s179 = sphi 0, %s179
      %s181 = sphi 0, %s179
      %s182 = sphi 0, %s181
      %s196 = sphi 0, %s182
      %s200 = sphi 0, %s200
      %s202 = sphi 0, %s200
      %s203 = sphi 0, %s202
      %s217 = sphi 0, %s203
      %s221 = sphi 0, %s221
      %s223 = sphi 0, %s221
      %s224 = sphi 0, %s223
      %s238 = sphi 0, %s224
      %s242 = sphi 0, %s242
      %s244 = sphi 0, %s242
      %s245 = sphi 0, %s244
      %s259 = sphi 0, %s245
      %s263 = sphi 0, %s263
      %s265 = sphi 0, %s263
      %s266 = sphi 0, %s265
      %s280 = sphi 0, %s266
      %s284 = sphi 0, %s284
      %s286 = sphi 0, %s284
      %s287 = sphi 0, %s286
      %s301 = sphi 0, %s287
      %s305 = sphi 0, %s305
      %s307 = sphi 0, %s305
      %s308 = sphi 0, %s307
      %s322 = sphi 0, %s308
      %s326 = sphi 0, %s326
      %s328 = sphi 0, %s326
      %s329 = sphi 0, %s328
      %s343 = sphi 0, %s329
      %s347 = sphi 0, %s347
      %s349 = sphi 0, %s347
      %s350 = sphi 0, %s349
      %s364 = sphi 0, %s350
      %s368 = sphi 0, %s368
      %s370 = sphi 0, %s368
      %s371 = sphi 0, %s370
      %s385 = sphi 0, %s371
      %s389 = sphi 0, %s389
      %s391 = sphi 0, %s389
      %s392 = sphi 0, %s391
      %s406 = sphi 0, %s392
      %s414 = sphi 0, %s416
      %s417 = sphi 0, %s414
      %s418 = sphi 0, %s417
      %s434 = sphi 0, %s418
    $region4: #{tpu_custom_call.1} parent=1 // loop_header_branch
      %31 = sbr.rel (%p29) target = $region8
    $region5: #{tpu_custom_call.1} parent=1 // loop_body
      %s33 = ssub.s32 %s28, 1
      %s34 = ssub.s32 %s28, 2
      %s41 = sadd.s32 1, %s36
      %p42 = scmp.ge.s32.totalorder %s41, 1
      %s43 = scalar_select %p42, 0, %s41
      %s44 = sadd.s32 1, %s35
      %s45 = scalar_select %p42, %s44, %s35
      %p46 = scmp.ge.s32.totalorder %s45, 2
      %s47 = scalar_select %p46, 0, %s45
      %s48 = ssub.s32 %s35, %s47
      %p49 = scmp.eq.s32.totalorder %s48, 0
      %s51 = sadd.s32 %s50, 1
      %s52 = scalar_select %p49, %s50, %s51
      %p55 = pneg %p49
      %p56 = scmp.eq.s32.totalorder %s28, 1
      %p57 = por %p55, %p56
      %p58 = scmp.ne.s32.totalorder %s50, %s53
      %p59 = scmp.eq.s32.totalorder %s28, 0
      %p60 = por %p58, %p59
      %p61 = scmp.ne.s32.totalorder %s50, %s53
      %p62 = scmp.eq.s32.totalorder %s33, 1
      %p63 = por %p61, %p62
      %p64 = scmp.ne.s32.totalorder %s53, %s54
      %p65 = scmp.eq.s32.totalorder %s33, 0
      %p66 = por %p64, %p65
      %p67 = scmp.ne.s32.totalorder %s53, %s54
      %p68 = scmp.eq.s32.totalorder %s34, 1
      %p69 = por %p67, %p68
      %p71 = scmp.ne.s32.totalorder %s54, %s70
      %p72 = scmp.eq.s32.totalorder %s34, 0
      %p73 = por %p71, %p72
      %s75 = sadd.s32 %s74, 1
      %p78 = scmp.eq.s32.totalorder %s28, 1
      %p79 = scmp.ne.s32.totalorder %s74, %s76
      %p80 = scmp.eq.s32.totalorder %s28, 0
      %p81 = por %p79, %p80
      %p82 = scmp.ne.s32.totalorder %s74, %s76
      %p83 = scmp.eq.s32.totalorder %s33, 1
      %p84 = por %p82, %p83
      %p85 = scmp.ne.s32.totalorder %s76, %s77
      %p86 = scmp.eq.s32.totalorder %s33, 0
      %p87 = por %p85, %p86
      %p88 = scmp.ne.s32.totalorder %s76, %s77
      %p89 = scmp.eq.s32.totalorder %s34, 1
      %p90 = por %p88, %p89
      %p92 = scmp.ne.s32.totalorder %s77, %s91
      %p93 = scmp.eq.s32.totalorder %s34, 0
      %p94 = por %p92, %p93
      %s96 = sadd.s32 %s95, 1
      %p99 = scmp.eq.s32.totalorder %s28, 1
      %p100 = scmp.ne.s32.totalorder %s95, %s97
      %p101 = scmp.eq.s32.totalorder %s28, 0
      %p102 = por %p100, %p101
      %p103 = scmp.ne.s32.totalorder %s95, %s97
      %p104 = scmp.eq.s32.totalorder %s33, 1
      %p105 = por %p103, %p104
      %p106 = scmp.ne.s32.totalorder %s97, %s98
      %p107 = scmp.eq.s32.totalorder %s33, 0
      %p108 = por %p106, %p107
      %p109 = scmp.ne.s32.totalorder %s97, %s98
      %p110 = scmp.eq.s32.totalorder %s34, 1
      %p111 = por %p109, %p110
      %p113 = scmp.ne.s32.totalorder %s98, %s112
      %p114 = scmp.eq.s32.totalorder %s34, 0
      %p115 = por %p113, %p114
      %s117 = sadd.s32 %s116, 1
      %p120 = scmp.eq.s32.totalorder %s28, 1
      %p121 = scmp.ne.s32.totalorder %s116, %s118
      %p122 = scmp.eq.s32.totalorder %s28, 0
      %p123 = por %p121, %p122
      %p124 = scmp.ne.s32.totalorder %s116, %s118
      %p125 = scmp.eq.s32.totalorder %s33, 1
      %p126 = por %p124, %p125
      %p127 = scmp.ne.s32.totalorder %s118, %s119
      %p128 = scmp.eq.s32.totalorder %s33, 0
      %p129 = por %p127, %p128
      %p130 = scmp.ne.s32.totalorder %s118, %s119
      %p131 = scmp.eq.s32.totalorder %s34, 1
      %p132 = por %p130, %p131
      %p134 = scmp.ne.s32.totalorder %s119, %s133
      %p135 = scmp.eq.s32.totalorder %s34, 0
      %p136 = por %p134, %p135
      %s138 = sadd.s32 %s137, 1
      %p141 = scmp.eq.s32.totalorder %s28, 1
      %p142 = scmp.ne.s32.totalorder %s137, %s139
      %p143 = scmp.eq.s32.totalorder %s28, 0
      %p144 = por %p142, %p143
      %p145 = scmp.ne.s32.totalorder %s137, %s139
      %p146 = scmp.eq.s32.totalorder %s33, 1
      %p147 = por %p145, %p146
      %p148 = scmp.ne.s32.totalorder %s139, %s140
      %p149 = scmp.eq.s32.totalorder %s33, 0
      %p150 = por %p148, %p149
      %p151 = scmp.ne.s32.totalorder %s139, %s140
      %p152 = scmp.eq.s32.totalorder %s34, 1
      %p153 = por %p151, %p152
      %p155 = scmp.ne.s32.totalorder %s140, %s154
      %p156 = scmp.eq.s32.totalorder %s34, 0
      %p157 = por %p155, %p156
      %s159 = sadd.s32 %s158, 1
      %p162 = scmp.eq.s32.totalorder %s28, 1
      %p163 = scmp.ne.s32.totalorder %s158, %s160
      %p164 = scmp.eq.s32.totalorder %s28, 0
      %p165 = por %p163, %p164
      %p166 = scmp.ne.s32.totalorder %s158, %s160
      %p167 = scmp.eq.s32.totalorder %s33, 1
      %p168 = por %p166, %p167
      %p169 = scmp.ne.s32.totalorder %s160, %s161
      %p170 = scmp.eq.s32.totalorder %s33, 0
      %p171 = por %p169, %p170
      %p172 = scmp.ne.s32.totalorder %s160, %s161
      %p173 = scmp.eq.s32.totalorder %s34, 1
      %p174 = por %p172, %p173
      %p176 = scmp.ne.s32.totalorder %s161, %s175
      %p177 = scmp.eq.s32.totalorder %s34, 0
      %p178 = por %p176, %p177
      %s180 = sadd.s32 %s179, 1
      %p183 = scmp.eq.s32.totalorder %s28, 1
      %p184 = scmp.ne.s32.totalorder %s179, %s181
      %p185 = scmp.eq.s32.totalorder %s28, 0
      %p186 = por %p184, %p185
      %p187 = scmp.ne.s32.totalorder %s179, %s181
      %p188 = scmp.eq.s32.totalorder %s33, 1
      %p189 = por %p187, %p188
      %p190 = scmp.ne.s32.totalorder %s181, %s182
      %p191 = scmp.eq.s32.totalorder %s33, 0
      %p192 = por %p190, %p191
      %p193 = scmp.ne.s32.totalorder %s181, %s182
      %p194 = scmp.eq.s32.totalorder %s34, 1
      %p195 = por %p193, %p194
      %p197 = scmp.ne.s32.totalorder %s182, %s196
      %p198 = scmp.eq.s32.totalorder %s34, 0
      %p199 = por %p197, %p198
      %s201 = sadd.s32 %s200, 1
      %p204 = scmp.eq.s32.totalorder %s28, 1
      %p205 = scmp.ne.s32.totalorder %s200, %s202
      %p206 = scmp.eq.s32.totalorder %s28, 0
      %p207 = por %p205, %p206
      %p208 = scmp.ne.s32.totalorder %s200, %s202
      %p209 = scmp.eq.s32.totalorder %s33, 1
      %p210 = por %p208, %p209
      %p211 = scmp.ne.s32.totalorder %s202, %s203
      %p212 = scmp.eq.s32.totalorder %s33, 0
      %p213 = por %p211, %p212
      %p214 = scmp.ne.s32.totalorder %s202, %s203
      %p215 = scmp.eq.s32.totalorder %s34, 1
      %p216 = por %p214, %p215
      %p218 = scmp.ne.s32.totalorder %s203, %s217
      %p219 = scmp.eq.s32.totalorder %s34, 0
      %p220 = por %p218, %p219
      %s222 = sadd.s32 %s221, 1
      %p225 = scmp.eq.s32.totalorder %s28, 1
      %p226 = scmp.ne.s32.totalorder %s221, %s223
      %p227 = scmp.eq.s32.totalorder %s28, 0
      %p228 = por %p226, %p227
      %p229 = scmp.ne.s32.totalorder %s221, %s223
      %p230 = scmp.eq.s32.totalorder %s33, 1
      %p231 = por %p229, %p230
      %p232 = scmp.ne.s32.totalorder %s223, %s224
      %p233 = scmp.eq.s32.totalorder %s33, 0
      %p234 = por %p232, %p233
      %p235 = scmp.ne.s32.totalorder %s223, %s224
      %p236 = scmp.eq.s32.totalorder %s34, 1
      %p237 = por %p235, %p236
      %p239 = scmp.ne.s32.totalorder %s224, %s238
      %p240 = scmp.eq.s32.totalorder %s34, 0
      %p241 = por %p239, %p240
      %s243 = sadd.s32 %s242, 1
      %p246 = scmp.eq.s32.totalorder %s28, 1
      %p247 = scmp.ne.s32.totalorder %s242, %s244
      %p248 = scmp.eq.s32.totalorder %s28, 0
      %p249 = por %p247, %p248
      %p250 = scmp.ne.s32.totalorder %s242, %s244
      %p251 = scmp.eq.s32.totalorder %s33, 1
      %p252 = por %p250, %p251
      %p253 = scmp.ne.s32.totalorder %s244, %s245
      %p254 = scmp.eq.s32.totalorder %s33, 0
      %p255 = por %p253, %p254
      %p256 = scmp.ne.s32.totalorder %s244, %s245
      %p257 = scmp.eq.s32.totalorder %s34, 1
      %p258 = por %p256, %p257
      %p260 = scmp.ne.s32.totalorder %s245, %s259
      %p261 = scmp.eq.s32.totalorder %s34, 0
      %p262 = por %p260, %p261
      %s264 = sadd.s32 %s263, 1
      %p267 = scmp.eq.s32.totalorder %s28, 1
      %p268 = scmp.ne.s32.totalorder %s263, %s265
      %p269 = scmp.eq.s32.totalorder %s28, 0
      %p270 = por %p268, %p269
      %p271 = scmp.ne.s32.totalorder %s263, %s265
      %p272 = scmp.eq.s32.totalorder %s33, 1
      %p273 = por %p271, %p272
      %p274 = scmp.ne.s32.totalorder %s265, %s266
      %p275 = scmp.eq.s32.totalorder %s33, 0
      %p276 = por %p274, %p275
      %p277 = scmp.ne.s32.totalorder %s265, %s266
      %p278 = scmp.eq.s32.totalorder %s34, 1
      %p279 = por %p277, %p278
      %p281 = scmp.ne.s32.totalorder %s266, %s280
      %p282 = scmp.eq.s32.totalorder %s34, 0
      %p283 = por %p281, %p282
      %s285 = sadd.s32 %s284, 1
      %p288 = scmp.eq.s32.totalorder %s28, 1
      %p289 = scmp.ne.s32.totalorder %s284, %s286
      %p290 = scmp.eq.s32.totalorder %s28, 0
      %p291 = por %p289, %p290
      %p292 = scmp.ne.s32.totalorder %s284, %s286
      %p293 = scmp.eq.s32.totalorder %s33, 1
      %p294 = por %p292, %p293
      %p295 = scmp.ne.s32.totalorder %s286, %s287
      %p296 = scmp.eq.s32.totalorder %s33, 0
      %p297 = por %p295, %p296
      %p298 = scmp.ne.s32.totalorder %s286, %s287
      %p299 = scmp.eq.s32.totalorder %s34, 1
      %p300 = por %p298, %p299
      %p302 = scmp.ne.s32.totalorder %s287, %s301
      %p303 = scmp.eq.s32.totalorder %s34, 0
      %p304 = por %p302, %p303
      %s306 = sadd.s32 %s305, 1
      %p309 = scmp.eq.s32.totalorder %s28, 1
      %p310 = scmp.ne.s32.totalorder %s305, %s307
      %p311 = scmp.eq.s32.totalorder %s28, 0
      %p312 = por %p310, %p311
      %p313 = scmp.ne.s32.totalorder %s305, %s307
      %p314 = scmp.eq.s32.totalorder %s33, 1
      %p315 = por %p313, %p314
      %p316 = scmp.ne.s32.totalorder %s307, %s308
      %p317 = scmp.eq.s32.totalorder %s33, 0
      %p318 = por %p316, %p317
      %p319 = scmp.ne.s32.totalorder %s307, %s308
      %p320 = scmp.eq.s32.totalorder %s34, 1
      %p321 = por %p319, %p320
      %p323 = scmp.ne.s32.totalorder %s308, %s322
      %p324 = scmp.eq.s32.totalorder %s34, 0
      %p325 = por %p323, %p324
      %s327 = sadd.s32 %s326, 1
      %p330 = scmp.eq.s32.totalorder %s28, 1
      %p331 = scmp.ne.s32.totalorder %s326, %s328
      %p332 = scmp.eq.s32.totalorder %s28, 0
      %p333 = por %p331, %p332
      %p334 = scmp.ne.s32.totalorder %s326, %s328
      %p335 = scmp.eq.s32.totalorder %s33, 1
      %p336 = por %p334, %p335
      %p337 = scmp.ne.s32.totalorder %s328, %s329
      %p338 = scmp.eq.s32.totalorder %s33, 0
      %p339 = por %p337, %p338
      %p340 = scmp.ne.s32.totalorder %s328, %s329
      %p341 = scmp.eq.s32.totalorder %s34, 1
      %p342 = por %p340, %p341
      %p344 = scmp.ne.s32.totalorder %s329, %s343
      %p345 = scmp.eq.s32.totalorder %s34, 0
      %p346 = por %p344, %p345
      %s348 = sadd.s32 %s347, 1
      %p351 = scmp.eq.s32.totalorder %s28, 1
      %p352 = scmp.ne.s32.totalorder %s347, %s349
      %p353 = scmp.eq.s32.totalorder %s28, 0
      %p354 = por %p352, %p353
      %p355 = scmp.ne.s32.totalorder %s347, %s349
      %p356 = scmp.eq.s32.totalorder %s33, 1
      %p357 = por %p355, %p356
      %p358 = scmp.ne.s32.totalorder %s349, %s350
      %p359 = scmp.eq.s32.totalorder %s33, 0
      %p360 = por %p358, %p359
      %p361 = scmp.ne.s32.totalorder %s349, %s350
      %p362 = scmp.eq.s32.totalorder %s34, 1
      %p363 = por %p361, %p362
      %p365 = scmp.ne.s32.totalorder %s350, %s364
      %p366 = scmp.eq.s32.totalorder %s34, 0
      %p367 = por %p365, %p366
      %s369 = sadd.s32 %s368, 1
      %p372 = scmp.eq.s32.totalorder %s28, 1
      %p373 = scmp.ne.s32.totalorder %s368, %s370
      %p374 = scmp.eq.s32.totalorder %s28, 0
      %p375 = por %p373, %p374
      %p376 = scmp.ne.s32.totalorder %s368, %s370
      %p377 = scmp.eq.s32.totalorder %s33, 1
      %p378 = por %p376, %p377
      %p379 = scmp.ne.s32.totalorder %s370, %s371
      %p380 = scmp.eq.s32.totalorder %s33, 0
      %p381 = por %p379, %p380
      %p382 = scmp.ne.s32.totalorder %s370, %s371
      %p383 = scmp.eq.s32.totalorder %s34, 1
      %p384 = por %p382, %p383
      %p386 = scmp.ne.s32.totalorder %s371, %s385
      %p387 = scmp.eq.s32.totalorder %s34, 0
      %p388 = por %p386, %p387
      %s390 = sadd.s32 %s389, 1
      %p393 = scmp.eq.s32.totalorder %s28, 1
      %p394 = scmp.ne.s32.totalorder %s389, %s391
      %p395 = scmp.eq.s32.totalorder %s28, 0
      %p396 = por %p394, %p395
      %p397 = scmp.ne.s32.totalorder %s389, %s391
      %p398 = scmp.eq.s32.totalorder %s33, 1
      %p399 = por %p397, %p398
      %p400 = scmp.ne.s32.totalorder %s391, %s392
      %p401 = scmp.eq.s32.totalorder %s33, 0
      %p402 = por %p400, %p401
      %p403 = scmp.ne.s32.totalorder %s391, %s392
      %p404 = scmp.eq.s32.totalorder %s34, 1
      %p405 = por %p403, %p404
      %p407 = scmp.ne.s32.totalorder %s392, %s406
      %p408 = scmp.eq.s32.totalorder %s34, 0
      %p409 = por %p407, %p408
      %s410 = ssub.s32 %s35, %s47
      %s411 = ssub.s32 %s36, %s43
      %s412 = sor.u32 %s410, %s411
      %p413 = scmp.eq.s32.totalorder %s412, 0
      %s415 = sadd.s32 %s414, 1
      %s416 = scalar_select %p413, %s414, %s415
      %p419 = pneg %p413
      %p420 = scmp.eq.s32.totalorder %s28, 1
      %p421 = por %p419, %p420
      %p422 = scmp.ne.s32.totalorder %s414, %s417
      %p423 = scmp.eq.s32.totalorder %s28, 0
      %p424 = por %p422, %p423
      %p425 = scmp.ne.s32.totalorder %s414, %s417
      %p426 = scmp.eq.s32.totalorder %s33, 1
      %p427 = por %p425, %p426
      %p428 = scmp.ne.s32.totalorder %s417, %s418
      %p429 = scmp.eq.s32.totalorder %s33, 0
      %p430 = por %p428, %p429
      %p431 = scmp.ne.s32.totalorder %s417, %s418
      %p432 = scmp.eq.s32.totalorder %s34, 1
      %p433 = por %p431, %p432
      %p435 = scmp.ne.s32.totalorder %s418, %s434
      %p436 = scmp.eq.s32.totalorder %s34, 0
      %p437 = por %p435, %p436
      %p438 = scmp.le.s32.totalorder 1, %s28
      %p439 = scmp.lt.s32.totalorder %s28, 3
      %p440 = pnand %p438, %p439
      %p441 = pneg %p440
      // Predicated region
      $region9: #{tpu_custom_call.1} parent=5 // pred_check
        _
      $region10: #{tpu_custom_call.1} parent=5 // pred_check_branch
        %443 = sbr.rel (%p440) target = $region12
      $region11: #{tpu_custom_call.1} parent=5 // pred_region
        %s444 = ssub.s32 %s28, 1
        // Predicated region
        $region13: #{tpu_custom_call.1} parent=11 // pred_check
          %p445 = pneg %p87
        $region14: #{tpu_custom_call.1} parent=11 // pred_check_branch
          %447 = sbr.rel (%p445) target = $region16
        $region15: #{tpu_custom_call.1} parent=11 // pred_region
          _
        $region16: #{tpu_custom_call.1} parent=11 // pred_fallthru
          _
        // Predicated region
        $region17: #{tpu_custom_call.1} parent=11 // pred_check
          %p448 = pneg %p108
        $region18: #{tpu_custom_call.1} parent=11 // pred_check_branch
          %450 = sbr.rel (%p448) target = $region20
        $region19: #{tpu_custom_call.1} parent=11 // pred_region
          _
        $region20: #{tpu_custom_call.1} parent=11 // pred_fallthru
          _
        // Predicated region
        $region21: #{tpu_custom_call.1} parent=11 // pred_check
          %p451 = pneg %p129
        $region22: #{tpu_custom_call.1} parent=11 // pred_check_branch
          %453 = sbr.rel (%p451) target = $region24
        $region23: #{tpu_custom_call.1} parent=11 // pred_region
          _
        $region24: #{tpu_custom_call.1} parent=11 // pred_fallthru
          _
        // Predicated region
        $region25: #{tpu_custom_call.1} parent=11 // pred_check
          %p454 = pneg %p150
        $region26: #{tpu_custom_call.1} parent=11 // pred_check_branch
          %456 = sbr.rel (%p454) target = $region28
        $region27: #{tpu_custom_call.1} parent=11 // pred_region
          _
        $region28: #{tpu_custom_call.1} parent=11 // pred_fallthru
          _
        // Predicated region
        $region29: #{tpu_custom_call.1} parent=11 // pred_check
          %p457 = pneg %p171
        $region30: #{tpu_custom_call.1} parent=11 // pred_check_branch
          %459 = sbr.rel (%p457) target = $region32
        $region31: #{tpu_custom_call.1} parent=11 // pred_region
          %461 = vsyncadd [#allocation5], 0
          %s462 = sshll.u32 %s5, 4
          %s463 = int_to_ptr.hbm [resolvable:$true] %s462
          %s464 = sshll.u32 [#allocation4], 4
          %s465 = int_to_ptr.vmem [resolvable:$true] %s464
          %470 = dma.hbm_to_vmem [thread:$0]  %s463, 256, %s465, [#allocation5], 64, 64, 4
        $region32: #{tpu_custom_call.1} parent=11 // pred_fallthru
          _
        // Predicated region
        $region33: #{tpu_custom_call.1} parent=11 // pred_check
          %p471 = pneg %p192
        $region34: #{tpu_custom_call.1} parent=11 // pred_check_branch
          %473 = sbr.rel (%p471) target = $region36
        $region35: #{tpu_custom_call.1} parent=11 // pred_region
          _
        $region36: #{tpu_custom_call.1} parent=11 // pred_fallthru
          _
        // Predicated region
        $region37: #{tpu_custom_call.1} parent=11 // pred_check
          %p474 = pneg %p213
        $region38: #{tpu_custom_call.1} parent=11 // pred_check_branch
          %476 = sbr.rel (%p474) target = $region40
        $region39: #{tpu_custom_call.1} parent=11 // pred_region
          %478 = vsyncadd [#allocation8], 0
          %s479 = sshll.u32 %s7, 4
          %s480 = int_to_ptr.hbm [resolvable:$true] %s479
          %s481 = sshll.u32 [#allocation7], 4
          %s482 = int_to_ptr.vmem [resolvable:$true] %s481
          %487 = dma.hbm_to_vmem [thread:$0]  %s480, 256, %s482, [#allocation8], 64, 64, 4
        $region40: #{tpu_custom_call.1} parent=11 // pred_fallthru
          _
        // Predicated region
        $region41: #{tpu_custom_call.1} parent=11 // pred_check
          %p488 = pneg %p234
        $region42: #{tpu_custom_call.1} parent=11 // pred_check_branch
          %490 = sbr.rel (%p488) target = $region44
        $region43: #{tpu_custom_call.1} parent=11 // pred_region
          _
        $region44: #{tpu_custom_call.1} parent=11 // pred_fallthru
          _
        // Predicated region
        $region45: #{tpu_custom_call.1} parent=11 // pred_check
          %p491 = pneg %p255
        $region46: #{tpu_custom_call.1} parent=11 // pred_check_branch
          %493 = sbr.rel (%p491) target = $region48
        $region47: #{tpu_custom_call.1} parent=11 // pred_region
          _
        $region48: #{tpu_custom_call.1} parent=11 // pred_fallthru
          _
        // Predicated region
        $region49: #{tpu_custom_call.1} parent=11 // pred_check
          %p494 = pneg %p276
        $region50: #{tpu_custom_call.1} parent=11 // pred_check_branch
          %496 = sbr.rel (%p494) target = $region52
        $region51: #{tpu_custom_call.1} parent=11 // pred_region
          _
        $region52: #{tpu_custom_call.1} parent=11 // pred_fallthru
          _
        // Predicated region
        $region53: #{tpu_custom_call.1} parent=11 // pred_check
          %p497 = pneg %p297
        $region54: #{tpu_custom_call.1} parent=11 // pred_check_branch
          %499 = sbr.rel (%p497) target = $region56
        $region55: #{tpu_custom_call.1} parent=11 // pred_region
          %501 = vsyncadd [#allocation8], 0
          %s502 = sshll.u32 %s11, 4
          %s503 = int_to_ptr.hbm [resolvable:$true] %s502
          %s504 = sshll.u32 [#allocation9], 4
          %s505 = int_to_ptr.vmem [resolvable:$true] %s504
          %510 = dma.hbm_to_vmem [thread:$0]  %s503, 256, %s505, [#allocation8], 64, 64, 4
        $region56: #{tpu_custom_call.1} parent=11 // pred_fallthru
          _
        // Predicated region
        $region57: #{tpu_custom_call.1} parent=11 // pred_check
          %p511 = pneg %p318
        $region58: #{tpu_custom_call.1} parent=11 // pred_check_branch
          %513 = sbr.rel (%p511) target = $region60
        $region59: #{tpu_custom_call.1} parent=11 // pred_region
          _
        $region60: #{tpu_custom_call.1} parent=11 // pred_fallthru
          _
        // Predicated region
        $region61: #{tpu_custom_call.1} parent=11 // pred_check
          %p514 = pneg %p339
        $region62: #{tpu_custom_call.1} parent=11 // pred_check_branch
          %516 = sbr.rel (%p514) target = $region64
        $region63: #{tpu_custom_call.1} parent=11 // pred_region
          _
        $region64: #{tpu_custom_call.1} parent=11 // pred_fallthru
          _
        // Predicated region
        $region65: #{tpu_custom_call.1} parent=11 // pred_check
          %p517 = pneg %p360
        $region66: #{tpu_custom_call.1} parent=11 // pred_check_branch
          %519 = sbr.rel (%p517) target = $region68
        $region67: #{tpu_custom_call.1} parent=11 // pred_region
          _
        $region68: #{tpu_custom_call.1} parent=11 // pred_fallthru
          _
        // Predicated region
        $region69: #{tpu_custom_call.1} parent=11 // pred_check
          %p520 = pneg %p381
        $region70: #{tpu_custom_call.1} parent=11 // pred_check_branch
          %522 = sbr.rel (%p520) target = $region72
        $region71: #{tpu_custom_call.1} parent=11 // pred_region
          _
        $region72: #{tpu_custom_call.1} parent=11 // pred_fallthru
          _
        // Predicated region
        $region73: #{tpu_custom_call.1} parent=11 // pred_check
          %p523 = pneg %p402
        $region74: #{tpu_custom_call.1} parent=11 // pred_check_branch
          %525 = sbr.rel (%p523) target = $region76
        $region75: #{tpu_custom_call.1} parent=11 // pred_region
          _
        $region76: #{tpu_custom_call.1} parent=11 // pred_fallthru
          _
      $region12: #{tpu_custom_call.1} parent=5 // pred_fallthru
        _
      %p526 = scmp.lt.s32.totalorder %s28, 2
      // Predicated region
      $region77: #{tpu_custom_call.1} parent=5 // pred_check
        %p527 = pneg %p526
      $region78: #{tpu_custom_call.1} parent=5 // pred_check_branch
        %529 = sbr.rel (%p527) target = $region80
      $region79: #{tpu_custom_call.1} parent=5 // pred_region
        // Predicated region
        $region81: #{tpu_custom_call.1} parent=79 // pred_check
          %p530 = pneg %p60
        $region82: #{tpu_custom_call.1} parent=79 // pred_check_branch
          %532 = sbr.rel (%p530) target = $region84
        $region83: #{tpu_custom_call.1} parent=79 // pred_region
          %p533 = scmp.lt.s32.totalorder %s35, 1
          %s534 = scalar_select %p533, %s35, 1
          %s535 = smul.addr %s534, 8
          %s536 = scalar_lea.vmem %s0, %s535
        $region84: #{tpu_custom_call.1} parent=79 // pred_fallthru
          _
      $region80: #{tpu_custom_call.1} parent=5 // pred_fallthru
        _
      %p537 = scmp.le.s32.totalorder 1, %s28
      %p538 = scmp.lt.s32.totalorder %s28, 3
      %p539 = pnand %p537, %p538
      %p540 = pneg %p539
      // Predicated region
      $region85: #{tpu_custom_call.1} parent=5 // pred_check
        _
      $region86: #{tpu_custom_call.1} parent=5 // pred_check_branch
        %542 = sbr.rel (%p539) target = $region88
      $region87: #{tpu_custom_call.1} parent=5 // pred_region
        %s543 = ssub.s32 %s28, 1
        // Predicated region
        $region89: #{tpu_custom_call.1} parent=87 // pred_check
          %p544 = pneg %p171
        $region90: #{tpu_custom_call.1} parent=87 // pred_check_branch
          %546 = sbr.rel (%p544) target = $region92
        $region91: #{tpu_custom_call.1} parent=87 // pred_region
          %548 = dma.done [#allocation5], 256
        $region92: #{tpu_custom_call.1} parent=87 // pred_fallthru
          _
        // Predicated region
        $region93: #{tpu_custom_call.1} parent=87 // pred_check
          %p549 = pneg %p213
        $region94: #{tpu_custom_call.1} parent=87 // pred_check_branch
          %551 = sbr.rel (%p549) target = $region96
        $region95: #{tpu_custom_call.1} parent=87 // pred_region
          %553 = dma.done [#allocation8], 256
        $region96: #{tpu_custom_call.1} parent=87 // pred_fallthru
          _
        // Predicated region
        $region97: #{tpu_custom_call.1} parent=87 // pred_check
          %p554 = pneg %p297
        $region98: #{tpu_custom_call.1} parent=87 // pred_check_branch
          %556 = sbr.rel (%p554) target = $region100
        $region99: #{tpu_custom_call.1} parent=87 // pred_region
          %558 = dma.done [#allocation8], 256
        $region100: #{tpu_custom_call.1} parent=87 // pred_fallthru
          _
        %p559 = scmp.lt.s32.totalorder %s37, 1
        %s560 = scalar_select %p559, %s37, 1
        %s561 = smul.addr %s560, 8
        %s562 = scalar_lea.vmem %s0, %s561
        %p563 = pneg %p66
        %p564 = pneg %p63
        %p565 = pneg %p87
        %p566 = pneg %p84
        %p567 = pneg %p108
        %p568 = pneg %p105
        %p569 = pneg %p129
        %p570 = pneg %p126
        %p571 = pneg %p150
        %p572 = pneg %p147
        %p573 = pneg %p171
        %p574 = pneg %p168
        %p575 = pneg %p192
        %p576 = pneg %p189
        %p577 = pneg %p213
        %p578 = pneg %p210
        %p579 = pneg %p234
        %p580 = pneg %p231
        %p581 = pneg %p255
        %p582 = pneg %p252
        %p583 = pneg %p276
        %p584 = pneg %p273
        %p585 = pneg %p297
        %p586 = pneg %p294
        %p587 = pneg %p318
        %p588 = pneg %p315
        %p589 = pneg %p339
        %p590 = pneg %p336
        %p591 = pneg %p360
        %p592 = pneg %p357
        %p593 = pneg %p381
        %p594 = pneg %p378
        %p595 = pneg %p402
        %p596 = pneg %p399
        %p597 = pneg %p430
        %p598 = pneg %p427
        %s599 = sand.u32 %s417, 1
        %s600 = scalar_lea.sflag [#allocation6], %s599
        %s601 = sand.u32 %s417, 1
        %s602 = smul.addr %s601, 8
        %s603 = scalar_lea.vmem [#allocation10], %s602
        %p604 = scmp.lt.s32.totalorder %s37, 1
        %s605 = scalar_select %p604, %s37, 1
        %s606 = smul.addr %s605, 8
        %s607 = scalar_lea.vmem %s0, %s606
        %p609 = scmp.eq.s32.totalorder %s38, 0
        // Predicated region
        $region101: #{tpu_custom_call.1} parent=87 // pred_check
          %p610 = pneg %p609
        $region102: #{tpu_custom_call.1} parent=87 // pred_check_branch
          %612 = sbr.rel (%p610) target = $region104
        $region103: #{tpu_custom_call.1} parent=87 // pred_region
          %v613 = vld [vmem:[%s607] sm:$0xff]
          %v614 = vpack.c.bf16 %v613, %v613
          %v615 = vld [vmem:[%s3] sm:$0xf]
          %v616 = vld [vmem:[%s3 + $0x4] sm:$0xf]
          %v617 = vld [vmem:[%s3 + $0x8] sm:$0xf]
          %v618 = vld [vmem:[%s3 + $0xc] sm:$0xf]
          %v619 = vld [vmem:[%s4] sm:$0x1]
          %v621 = vperm.slane %v619, 0
          %v627 = vunpack.c.l.b16 %v615
          %v628 = vunpack.c.l.b16 %v616
          %v629 = vunpack.c.l.b16 %v617
          %v630 = vunpack.c.l.b16 %v618
          %v631 = vpack.c.b16 %v628, %v627
          %v632 = vpack.c.b16 %v630, %v629
          %vm635 = vcmask 261120
          %v637 = vsel %vm635, %v614, 0
          %639 = vmatpush.bf16.msra.mxu0 0
          %640 = vmatpush.bf16.msra.mxu0 0
          %641 = vmatpush.bf16.msra.mxu0 0
          %642 = vmatpush.bf16.msra.mxu0 0
          %643 = vmatpush.bf16.msra.mxu0 0
          %644 = vmatpush.bf16.msra.mxu0 0
          %645 = vmatpush.bf16.msra.mxu0 %v632
          %646 = vmatpush.bf16.msra.mxu0 %v631
          %647 = vmatmul.bf16.gmra.mxu0 %v637
          %v648 = vpop.f32.mrf.mxu0
          %v649 = vadd.f32 %v621, %v648
          %v650 = vpop.f32.mrf.mxu0
          %651 = vdwg.mxu0
          %v652 = vld [vmem:[#allocation4] sm:$0xf]
          %v653 = vld [vmem:[#allocation4 + $0x4] sm:$0xf]
          %v654 = vld [vmem:[#allocation4 + $0x8] sm:$0xf]
          %v655 = vld [vmem:[#allocation4 + $0xc] sm:$0xf]
          %v656 = vld [vmem:[%s6] sm:$0x1]
          %v658 = vperm.slane %v656, 0
          %v664 = vunpack.c.l.b16 %v652
          %v665 = vunpack.c.l.b16 %v653
          %v666 = vunpack.c.l.b16 %v654
          %v667 = vunpack.c.l.b16 %v655
          %v668 = vpack.c.b16 %v665, %v664
          %v669 = vpack.c.b16 %v667, %v666
          %672 = vmatpush.bf16.msra.mxu0 0
          %673 = vmatpush.bf16.msra.mxu0 0
          %674 = vmatpush.bf16.msra.mxu0 0
          %675 = vmatpush.bf16.msra.mxu0 0
          %676 = vmatpush.bf16.msra.mxu0 0
          %677 = vmatpush.bf16.msra.mxu0 0
          %678 = vmatpush.bf16.msra.mxu0 %v669
          %679 = vmatpush.bf16.msra.mxu0 %v668
          %680 = vmatmul.bf16.gmra.mxu0 %v637
          %v681 = vpop.f32.mrf.mxu0
          %v682 = vadd.f32 %v658, %v681
          %v683 = vpop.f32.mrf.mxu0
          %684 = vdwg.mxu0
          %686 = vrot.lane.b32.xlu0 %v649, 120
          %v687 = vpop.permute.xlu0 %686
          %689 = vrot.lane.b32.xlu0 %v649, 112
          %v690 = vpop.permute.xlu0 %689
          %692 = vrot.lane.b32.xlu0 %v649, 104
          %v693 = vpop.permute.xlu0 %692
          %v695 = vrot.slane %v690, 4
          %vm696 = vcmask 1047556
          %v697 = vsel %vm696, %v695, %v649
          %v698 = vrot.slane %v649, 4
          %v699 = vsel %vm696, %v690, %v698
          %v701 = vunpack.c.l.s4 1983009808
          %v702 = vunpack.c.0.s8 %v701
          %v703 = vperm.slane %v697, %v702
          %v705 = vunpack.c.l.s4 1983009808
          %v706 = vunpack.c.0.s8 %v705
          %v707 = vperm.slane %v699, %v706
          %v708 = vrot.slane %v693, 4
          %v709 = vsel %vm696, %v708, %v687
          %v710 = vrot.slane %v687, 4
          %v711 = vsel %vm696, %v693, %v710
          %v713 = vunpack.c.l.s4 1983009808
          %v714 = vunpack.c.0.s8 %v713
          %v715 = vperm.slane %v709, %v714
          %v717 = vunpack.c.l.s4 1983009808
          %v718 = vunpack.c.0.s8 %v717
          %v719 = vperm.slane %v711, %v718
          %v720 = vrot.slane %v715, 4
          %v721 = vsel %vm696, %v720, %v703
          %v722 = vrot.slane %v703, 4
          %v723 = vsel %vm696, %v715, %v722
          %v725 = vunpack.c.l.s4 1934713408
          %v726 = vunpack.c.0.s8 %v725
          %v727 = vperm.slane %v721, %v726
          %v729 = vunpack.c.l.s4 1934713408
          %v730 = vunpack.c.0.s8 %v729
          %v731 = vperm.slane %v723, %v730
          %v732 = vrot.slane %v719, 4
          %v733 = vsel %vm696, %v732, %v707
          %v734 = vrot.slane %v707, 4
          %v735 = vsel %vm696, %v719, %v734
          %v737 = vunpack.c.l.s4 1934713408
          %v738 = vunpack.c.0.s8 %v737
          %v739 = vperm.slane %v733, %v738
          %v741 = vunpack.c.l.s4 1934713408
          %v742 = vunpack.c.0.s8 %v741
          %v743 = vperm.slane %v735, %v742
          %v744 = vrot.slane %v727, 4
          %v745 = vsel %vm696, 0.0, %v744
          %v746 = vrot.slane %v731, 4
          %v747 = vsel %vm696, 0.0, %v746
          %v748 = vrot.slane %v739, 4
          %v749 = vsel %vm696, 0.0, %v748
          %v750 = vrot.slane %v743, 4
          %v751 = vsel %vm696, 0.0, %v750
          %v752 = vsel %vm696, %v746, %v727
          %v754 = vunpack.c.l.s4 1983009808
          %v755 = vunpack.c.0.s8 %v754
          %v756 = vperm.slane %v752, %v755
          %v757 = vrot.slane %v747, 4
          %v758 = vsel %vm696, %v757, %v745
          %v760 = vunpack.c.l.s4 1983009808
          %v761 = vunpack.c.0.s8 %v760
          %v762 = vperm.slane %v758, %v761
          %v763 = vsel %vm696, %v750, %v739
          %v765 = vunpack.c.l.s4 1983009808
          %v766 = vunpack.c.0.s8 %v765
          %v767 = vperm.slane %v763, %v766
          %v768 = vrot.slane %v751, 4
          %v769 = vsel %vm696, %v768, %v749
          %v771 = vunpack.c.l.s4 1983009808
          %v772 = vunpack.c.0.s8 %v771
          %v773 = vperm.slane %v769, %v772
          %v774 = vrot.slane %v762, 4
          %v775 = vsel %vm696, %v774, %v756
          %v776 = vrot.slane %v756, 4
          %v777 = vsel %vm696, %v762, %v776
          %v779 = vunpack.c.l.s4 1934713408
          %v780 = vunpack.c.0.s8 %v779
          %v781 = vperm.slane %v775, %v780
          %v783 = vunpack.c.l.s4 1934713408
          %v784 = vunpack.c.0.s8 %v783
          %v785 = vperm.slane %v777, %v784
          %v786 = vrot.slane %v773, 4
          %v787 = vsel %vm696, %v786, %v767
          %v788 = vrot.slane %v767, 4
          %v789 = vsel %vm696, %v773, %v788
          %v791 = vunpack.c.l.s4 1934713408
          %v792 = vunpack.c.0.s8 %v791
          %v793 = vperm.slane %v787, %v792
          %v795 = vunpack.c.l.s4 1934713408
          %v796 = vunpack.c.0.s8 %v795
          %v797 = vperm.slane %v789, %v796
          %v798 = vrot.slane %v793, 4
          %v799 = vsel %vm696, %v798, %v781
          %v800 = vrot.slane %v781, 4
          %v801 = vsel %vm696, %v793, %v800
          %v802 = vrot.slane %v797, 4
          %v803 = vsel %vm696, %v802, %v785
          %v804 = vrot.slane %v785, 4
          %v805 = vsel %vm696, %v797, %v804
          %v806 = vpack.c.bf16 %v799, %v799
          %v807 = vpack.c.bf16 %v801, %v801
          %v808 = vpack.c.bf16 %v803, %v803
          %v809 = vpack.c.bf16 %v805, %v805
          %vm810 = vcmask 60416
          %811 = vst.msk [vmem:[#allocation2] sm:$0xf] %vm810, %v806
          %812 = vst.msk [vmem:[#allocation2 + $0x4] sm:$0xf] %vm810, %v807
          %813 = vst.msk [vmem:[#allocation2 + $0x8] sm:$0xf] %vm810, %v808
          %814 = vst.msk [vmem:[#allocation2 + $0xc] sm:$0xf] %vm810, %v809
          %816 = vrot.lane.b32.xlu0 %v682, 120
          %v817 = vpop.permute.xlu0 %816
          %819 = vrot.lane.b32.xlu0 %v682, 112
          %v820 = vpop.permute.xlu0 %819
          %822 = vrot.lane.b32.xlu0 %v682, 104
          %v823 = vpop.permute.xlu0 %822
          %v825 = vrot.slane %v820, 4
          %v826 = vsel %vm696, %v825, %v682
          %v827 = vrot.slane %v682, 4
          %v828 = vsel %vm696, %v820, %v827
          %v830 = vunpack.c.l.s4 1983009808
          %v831 = vunpack.c.0.s8 %v830
          %v832 = vperm.slane %v826, %v831
          %v834 = vunpack.c.l.s4 1983009808
          %v835 = vunpack.c.0.s8 %v834
          %v836 = vperm.slane %v828, %v835
          %v837 = vrot.slane %v823, 4
          %v838 = vsel %vm696, %v837, %v817
          %v839 = vrot.slane %v817, 4
          %v840 = vsel %vm696, %v823, %v839
          %v842 = vunpack.c.l.s4 1983009808
          %v843 = vunpack.c.0.s8 %v842
          %v844 = vperm.slane %v838, %v843
          %v846 = vunpack.c.l.s4 1983009808
          %v847 = vunpack.c.0.s8 %v846
          %v848 = vperm.slane %v840, %v847
          %v849 = vrot.slane %v844, 4
          %v850 = vsel %vm696, %v849, %v832
          %v851 = vrot.slane %v832, 4
          %v852 = vsel %vm696, %v844, %v851
          %v854 = vunpack.c.l.s4 1934713408
          %v855 = vunpack.c.0.s8 %v854
          %v856 = vperm.slane %v850, %v855
          %v858 = vunpack.c.l.s4 1934713408
          %v859 = vunpack.c.0.s8 %v858
          %v860 = vperm.slane %v852, %v859
          %v861 = vrot.slane %v848, 4
          %v862 = vsel %vm696, %v861, %v836
          %v863 = vrot.slane %v836, 4
          %v864 = vsel %vm696, %v848, %v863
          %v866 = vunpack.c.l.s4 1934713408
          %v867 = vunpack.c.0.s8 %v866
          %v868 = vperm.slane %v862, %v867
          %v870 = vunpack.c.l.s4 1934713408
          %v871 = vunpack.c.0.s8 %v870
          %v872 = vperm.slane %v864, %v871
          %v873 = vrot.slane %v856, 4
          %v874 = vsel %vm696, 0.0, %v873
          %v875 = vrot.slane %v860, 4
          %v876 = vsel %vm696, 0.0, %v875
          %v877 = vrot.slane %v868, 4
          %v878 = vsel %vm696, 0.0, %v877
          %v879 = vrot.slane %v872, 4
          %v880 = vsel %vm696, 0.0, %v879
          %v881 = vsel %vm696, %v875, %v856
          %v883 = vunpack.c.l.s4 1983009808
          %v884 = vunpack.c.0.s8 %v883
          %v885 = vperm.slane %v881, %v884
          %v886 = vrot.slane %v876, 4
          %v887 = vsel %vm696, %v886, %v874
          %v889 = vunpack.c.l.s4 1983009808
          %v890 = vunpack.c.0.s8 %v889
          %v891 = vperm.slane %v887, %v890
          %v892 = vsel %vm696, %v879, %v868
          %v894 = vunpack.c.l.s4 1983009808
          %v895 = vunpack.c.0.s8 %v894
          %v896 = vperm.slane %v892, %v895
          %v897 = vrot.slane %v880, 4
          %v898 = vsel %vm696, %v897, %v878
          %v900 = vunpack.c.l.s4 1983009808
          %v901 = vunpack.c.0.s8 %v900
          %v902 = vperm.slane %v898, %v901
          %v903 = vrot.slane %v891, 4
          %v904 = vsel %vm696, %v903, %v885
          %v905 = vrot.slane %v885, 4
          %v906 = vsel %vm696, %v891, %v905
          %v908 = vunpack.c.l.s4 1934713408
          %v909 = vunpack.c.0.s8 %v908
          %v910 = vperm.slane %v904, %v909
          %v912 = vunpack.c.l.s4 1934713408
          %v913 = vunpack.c.0.s8 %v912
          %v914 = vperm.slane %v906, %v913
          %v915 = vrot.slane %v902, 4
          %v916 = vsel %vm696, %v915, %v896
          %v917 = vrot.slane %v896, 4
          %v918 = vsel %vm696, %v902, %v917
          %v920 = vunpack.c.l.s4 1934713408
          %v921 = vunpack.c.0.s8 %v920
          %v922 = vperm.slane %v916, %v921
          %v924 = vunpack.c.l.s4 1934713408
          %v925 = vunpack.c.0.s8 %v924
          %v926 = vperm.slane %v918, %v925
          %v927 = vrot.slane %v922, 4
          %v928 = vsel %vm696, %v927, %v910
          %v929 = vrot.slane %v910, 4
          %v930 = vsel %vm696, %v922, %v929
          %v931 = vrot.slane %v926, 4
          %v932 = vsel %vm696, %v931, %v914
          %v933 = vrot.slane %v914, 4
          %v934 = vsel %vm696, %v926, %v933
          %v935 = vpack.c.bf16 %v928, %v928
          %v936 = vpack.c.bf16 %v930, %v930
          %v937 = vpack.c.bf16 %v932, %v932
          %v938 = vpack.c.bf16 %v934, %v934
          %939 = vst.msk [vmem:[#allocation3] sm:$0xf] %vm810, %v935
          %940 = vst.msk [vmem:[#allocation3 + $0x4] sm:$0xf] %vm810, %v936
          %941 = vst.msk [vmem:[#allocation3 + $0x8] sm:$0xf] %vm810, %v937
          %942 = vst.msk [vmem:[#allocation3 + $0xc] sm:$0xf] %vm810, %v938
        $region104: #{tpu_custom_call.1} parent=87 // pred_fallthru
          _
        %s943 = smul.u32 %s38, 8
        %s944 = scalar_lea.vmem %s607, %s943
        %v945 = vld [vmem:[%s944] sm:$0xff]
        %v946 = vpack.c.bf16 %v945, %v945
        %v947 = vld [vmem:[%s1] sm:$0xf]
        %v948 = vld [vmem:[%s1 + $0x4] sm:$0xf]
        %v949 = vld [vmem:[%s1 + $0x8] sm:$0xf]
        %v950 = vld [vmem:[%s1 + $0xc] sm:$0xf]
        %v951 = vld [vmem:[%s2] sm:$0x1]
        %v953 = vperm.slane %v951, 0
        %v959 = vunpack.c.l.b16 %v947
        %v960 = vunpack.c.l.b16 %v948
        %v961 = vunpack.c.l.b16 %v949
        %v962 = vunpack.c.l.b16 %v950
        %v963 = vpack.c.b16 %v960, %v959
        %v964 = vpack.c.b16 %v962, %v961
        %vm967 = vcmask 261120
        %v969 = vsel %vm967, %v946, 0
        %971 = vmatpush.bf16.msra.mxu0 0
        %972 = vmatpush.bf16.msra.mxu0 0
        %973 = vmatpush.bf16.msra.mxu0 0
        %974 = vmatpush.bf16.msra.mxu0 0
        %975 = vmatpush.bf16.msra.mxu0 0
        %976 = vmatpush.bf16.msra.mxu0 0
        %977 = vmatpush.bf16.msra.mxu0 %v964
        %978 = vmatpush.bf16.msra.mxu0 %v963
        %979 = vmatmul.bf16.gmra.mxu0 %v969
        %v980 = vpop.f32.mrf.mxu0
        %v981 = vadd.f32 %v953, %v980
        %v982 = vpop.f32.mrf.mxu0
        %983 = vdwg.mxu0
        %v984 = vmul.f32 %v981, 0.35355338
        %986 = vrot.lane.b32.xlu0 %v984, 120
        %v987 = vpop.permute.xlu0 %986
        %989 = vrot.lane.b32.xlu0 %v984, 112
        %v990 = vpop.permute.xlu0 %989
        %992 = vrot.lane.b32.xlu0 %v984, 104
        %v993 = vpop.permute.xlu0 %992
        %v995 = vrot.slane %v990, 4
        %vm996 = vcmask 1047556
        %v997 = vsel %vm996, %v995, %v984
        %v998 = vrot.slane %v984, 4
        %v999 = vsel %vm996, %v990, %v998
        %v1001 = vunpack.c.l.s4 1983009808
        %v1002 = vunpack.c.0.s8 %v1001
        %v1003 = vperm.slane %v997, %v1002
        %v1005 = vunpack.c.l.s4 1983009808
        %v1006 = vunpack.c.0.s8 %v1005
        %v1007 = vperm.slane %v999, %v1006
        %v1008 = vrot.slane %v993, 4
        %v1009 = vsel %vm996, %v1008, %v987
        %v1010 = vrot.slane %v987, 4
        %v1011 = vsel %vm996, %v993, %v1010
        %v1013 = vunpack.c.l.s4 1983009808
        %v1014 = vunpack.c.0.s8 %v1013
        %v1015 = vperm.slane %v1009, %v1014
        %v1017 = vunpack.c.l.s4 1983009808
        %v1018 = vunpack.c.0.s8 %v1017
        %v1019 = vperm.slane %v1011, %v1018
        %v1020 = vrot.slane %v1015, 4
        %v1021 = vsel %vm996, %v1020, %v1003
        %v1022 = vrot.slane %v1003, 4
        %v1023 = vsel %vm996, %v1015, %v1022
        %v1025 = vunpack.c.l.s4 1934713408
        %v1026 = vunpack.c.0.s8 %v1025
        %v1027 = vperm.slane %v1021, %v1026
        %v1029 = vunpack.c.l.s4 1934713408
        %v1030 = vunpack.c.0.s8 %v1029
        %v1031 = vperm.slane %v1023, %v1030
        %v1032 = vrot.slane %v1019, 4
        %v1033 = vsel %vm996, %v1032, %v1007
        %v1034 = vrot.slane %v1007, 4
        %v1035 = vsel %vm996, %v1019, %v1034
        %v1037 = vunpack.c.l.s4 1934713408
        %v1038 = vunpack.c.0.s8 %v1037
        %v1039 = vperm.slane %v1033, %v1038
        %v1041 = vunpack.c.l.s4 1934713408
        %v1042 = vunpack.c.0.s8 %v1041
        %v1043 = vperm.slane %v1035, %v1042
        %v1044 = vrot.slane %v1027, 4
        %v1045 = vsel %vm996, 0.0, %v1044
        %v1046 = vrot.slane %v1031, 4
        %v1047 = vsel %vm996, 0.0, %v1046
        %v1048 = vrot.slane %v1039, 4
        %v1049 = vsel %vm996, 0.0, %v1048
        %v1050 = vrot.slane %v1043, 4
        %v1051 = vsel %vm996, 0.0, %v1050
        %v1052 = vsel %vm996, %v1046, %v1027
        %v1054 = vunpack.c.l.s4 1983009808
        %v1055 = vunpack.c.0.s8 %v1054
        %v1056 = vperm.slane %v1052, %v1055
        %v1057 = vrot.slane %v1047, 4
        %v1058 = vsel %vm996, %v1057, %v1045
        %v1060 = vunpack.c.l.s4 1983009808
        %v1061 = vunpack.c.0.s8 %v1060
        %v1062 = vperm.slane %v1058, %v1061
        %v1063 = vsel %vm996, %v1050, %v1039
        %v1065 = vunpack.c.l.s4 1983009808
        %v1066 = vunpack.c.0.s8 %v1065
        %v1067 = vperm.slane %v1063, %v1066
        %v1068 = vrot.slane %v1051, 4
        %v1069 = vsel %vm996, %v1068, %v1049
        %v1071 = vunpack.c.l.s4 1983009808
        %v1072 = vunpack.c.0.s8 %v1071
        %v1073 = vperm.slane %v1069, %v1072
        %v1074 = vrot.slane %v1062, 4
        %v1075 = vsel %vm996, %v1074, %v1056
        %v1076 = vrot.slane %v1056, 4
        %v1077 = vsel %vm996, %v1062, %v1076
        %v1079 = vunpack.c.l.s4 1934713408
        %v1080 = vunpack.c.0.s8 %v1079
        %v1081 = vperm.slane %v1075, %v1080
        %v1083 = vunpack.c.l.s4 1934713408
        %v1084 = vunpack.c.0.s8 %v1083
        %v1085 = vperm.slane %v1077, %v1084
        %v1086 = vrot.slane %v1073, 4
        %v1087 = vsel %vm996, %v1086, %v1067
        %v1088 = vrot.slane %v1067, 4
        %v1089 = vsel %vm996, %v1073, %v1088
        %v1091 = vunpack.c.l.s4 1934713408
        %v1092 = vunpack.c.0.s8 %v1091
        %v1093 = vperm.slane %v1087, %v1092
        %v1095 = vunpack.c.l.s4 1934713408
        %v1096 = vunpack.c.0.s8 %v1095
        %v1097 = vperm.slane %v1089, %v1096
        %v1098 = vrot.slane %v1093, 4
        %v1099 = vsel %vm996, %v1098, %v1081
        %v1100 = vrot.slane %v1081, 4
        %v1101 = vsel %vm996, %v1093, %v1100
        %v1102 = vrot.slane %v1097, 4
        %v1103 = vsel %vm996, %v1102, %v1085
        %v1104 = vrot.slane %v1085, 4
        %v1105 = vsel %vm996, %v1097, %v1104
        %v1106 = vpack.c.bf16 %v1099, %v1099
        %v1107 = vpack.c.bf16 %v1101, %v1101
        %v1108 = vpack.c.bf16 %v1103, %v1103
        %v1109 = vpack.c.bf16 %v1105, %v1105
        %v1110 = vld [vmem:[#allocation2] sm:$0xf]
        %v1111 = vld [vmem:[#allocation2 + $0x4] sm:$0xf]
        %v1112 = vld [vmem:[#allocation2 + $0x8] sm:$0xf]
        %v1113 = vld [vmem:[#allocation2 + $0xc] sm:$0xf]
        %v1114 = vld [vmem:[#allocation3] sm:$0xf]
        %v1115 = vld [vmem:[#allocation3 + $0x4] sm:$0xf]
        %v1116 = vld [vmem:[#allocation3 + $0x8] sm:$0xf]
        %v1117 = vld [vmem:[#allocation3 + $0xc] sm:$0xf]
        %vm1118 = vcmask 64512
        %v1120 = vsel %vm1118, %v1106, 0
        %v1123 = vsel %vm1118, %v1110, 0
        %1125 = vmatpush.bf16.xpose.msra.mxu0 0
        %1126 = vmatpush.bf16.xpose.msra.mxu0 0
        %1127 = vmatpush.bf16.xpose.msra.mxu0 0
        %1128 = vmatpush.bf16.xpose.msra.mxu0 0
        %1129 = vmatpush.bf16.xpose.msra.mxu0 0
        %1130 = vmatpush.bf16.xpose.msra.mxu0 0
        %1131 = vmatpush.bf16.xpose.msra.mxu0 0
        %1132 = vmatpush.bf16.xpose.msra.mxu0 %v1123
        %1133 = vmatmul.bf16.gmra.mxu0 %v1120
        %v1134 = vpop.f32.mrf.mxu0
        %v1135 = vadd.f32 0.0, %v1134
        %v1136 = vpop.f32.mrf.mxu0
        %1137 = vdwg.mxu0
        %v1139 = vsel %vm1118, %v1107, 0
        %v1142 = vsel %vm1118, %v1111, 0
        %1144 = vmatpush.bf16.xpose.msra.mxu0 0
        %1145 = vmatpush.bf16.xpose.msra.mxu0 0
        %1146 = vmatpush.bf16.xpose.msra.mxu0 0
        %1147 = vmatpush.bf16.xpose.msra.mxu0 0
        %1148 = vmatpush.bf16.xpose.msra.mxu0 0
        %1149 = vmatpush.bf16.xpose.msra.mxu0 0
        %1150 = vmatpush.bf16.xpose.msra.mxu0 0
        %1151 = vmatpush.bf16.xpose.msra.mxu0 %v1142
        %1152 = vmatmul.bf16.gmra.mxu0 %v1139
        %v1153 = vpop.f32.mrf.mxu0
        %v1154 = vadd.f32 0.0, %v1153
        %v1155 = vpop.f32.mrf.mxu0
        %1156 = vdwg.mxu0
        %v1158 = vsel %vm1118, %v1108, 0
        %v1161 = vsel %vm1118, %v1112, 0
        %1163 = vmatpush.bf16.xpose.msra.mxu0 0
        %1164 = vmatpush.bf16.xpose.msra.mxu0 0
        %1165 = vmatpush.bf16.xpose.msra.mxu0 0
        %1166 = vmatpush.bf16.xpose.msra.mxu0 0
        %1167 = vmatpush.bf16.xpose.msra.mxu0 0
        %1168 = vmatpush.bf16.xpose.msra.mxu0 0
        %1169 = vmatpush.bf16.xpose.msra.mxu0 0
        %1170 = vmatpush.bf16.xpose.msra.mxu0 %v1161
        %1171 = vmatmul.bf16.gmra.mxu0 %v1158
        %v1172 = vpop.f32.mrf.mxu0
        %v1173 = vadd.f32 0.0, %v1172
        %v1174 = vpop.f32.mrf.mxu0
        %1175 = vdwg.mxu0
        %v1177 = vsel %vm1118, %v1109, 0
        %v1180 = vsel %vm1118, %v1113, 0
        %1182 = vmatpush.bf16.xpose.msra.mxu0 0
        %1183 = vmatpush.bf16.xpose.msra.mxu0 0
        %1184 = vmatpush.bf16.xpose.msra.mxu0 0
        %1185 = vmatpush.bf16.xpose.msra.mxu0 0
        %1186 = vmatpush.bf16.xpose.msra.mxu0 0
        %1187 = vmatpush.bf16.xpose.msra.mxu0 0
        %1188 = vmatpush.bf16.xpose.msra.mxu0 0
        %1189 = vmatpush.bf16.xpose.msra.mxu0 %v1180
        %1190 = vmatmul.bf16.gmra.mxu0 %v1177
        %v1191 = vpop.f32.mrf.mxu0
        %v1192 = vadd.f32 0.0, %v1191
        %v1193 = vpop.f32.mrf.mxu0
        %1194 = vdwg.mxu0
        %v1195 = vsel %vm1118, %v1135, -inf
        %1196 = vmax.xlane.f32.xlu0 %v1195
        %v1197 = vpop.xlane.xlu0 %1196
        %v1198 = vsel %vm1118, %v1154, -inf
        %1199 = vmax.xlane.f32.xlu0 %v1198
        %v1200 = vpop.xlane.xlu0 %1199
        %v1201 = vsel %vm1118, %v1173, -inf
        %1202 = vmax.xlane.f32.xlu0 %v1201
        %v1203 = vpop.xlane.xlu0 %1202
        %v1204 = vsel %vm1118, %v1192, -inf
        %1205 = vmax.xlane.f32.xlu0 %v1204
        %v1206 = vpop.xlane.xlu0 %1205
        %v1207 = vsub.f32 %v1135, %v1197
        %v1208 = vsub.f32 %v1154, %v1200
        %v1209 = vsub.f32 %v1173, %v1203
        %v1210 = vsub.f32 %v1192, %v1206
        %v1211 = vmul.f32 %v1207, 1.442695
        %v1212 = vpow.pop %v1211
        %v1213 = vmul.f32 %v1208, 1.442695
        %v1214 = vpow.pop %v1213
        %v1215 = vmul.f32 %v1209, 1.442695
        %v1216 = vpow.pop %v1215
        %v1217 = vmul.f32 %v1210, 1.442695
        %v1218 = vpow.pop %v1217
        %v1219 = vsel %vm1118, %v1212, 0.0
        %1220 = vadd.xlane.f32.xlu0 %v1219
        %v1221 = vpop.xlane.xlu0 %1220
        %v1222 = vsel %vm1118, %v1214, 0.0
        %1223 = vadd.xlane.f32.xlu0 %v1222
        %v1224 = vpop.xlane.xlu0 %1223
        %v1225 = vsel %vm1118, %v1216, 0.0
        %1226 = vadd.xlane.f32.xlu0 %v1225
        %v1227 = vpop.xlane.xlu0 %1226
        %v1228 = vsel %vm1118, %v1218, 0.0
        %1229 = vadd.xlane.f32.xlu0 %v1228
        %v1230 = vpop.xlane.xlu0 %1229
        %v1231 = vrcp.pop %v1221
        %v1232 = vrcp.pop %v1224
        %v1233 = vrcp.pop %v1227
        %v1234 = vrcp.pop %v1230
        %v1235 = vmul.f32 %v1212, %v1231
        %v1236 = vmul.f32 %v1214, %v1232
        %v1237 = vmul.f32 %v1216, %v1233
        %v1238 = vmul.f32 %v1218, %v1234
        %v1239 = vpack.c.bf16 %v1235, %v1235
        %v1240 = vpack.c.bf16 %v1236, %v1236
        %v1241 = vpack.c.bf16 %v1237, %v1237
        %v1242 = vpack.c.bf16 %v1238, %v1238
        %v1244 = vsel %vm1118, %v1239, 0
        %vm1246 = vcmask 1043456
        %v1248 = vsel %vm1246, %v1114, 0
        %1250 = vmatpush.bf16.msra.mxu0 0
        %1251 = vmatpush.bf16.msra.mxu0 0
        %1252 = vmatpush.bf16.msra.mxu0 0
        %1253 = vmatpush.bf16.msra.mxu0 0
        %1254 = vmatpush.bf16.msra.mxu0 0
        %1255 = vmatpush.bf16.msra.mxu0 0
        %1256 = vmatpush.bf16.msra.mxu0 0
        %1257 = vmatpush.bf16.msra.mxu0 %v1248
        %1258 = vmatmul.bf16.gmra.mxu0 %v1244
        %v1259 = vpop.f32.mrf.mxu0
        %v1260 = vadd.f32 0.0, %v1259
        %v1261 = vpop.f32.mrf.mxu0
        %1262 = vdwg.mxu0
        %v1264 = vsel %vm1118, %v1240, 0
        %v1267 = vsel %vm1246, %v1115, 0
        %1269 = vmatpush.bf16.msra.mxu0 0
        %1270 = vmatpush.bf16.msra.mxu0 0
        %1271 = vmatpush.bf16.msra.mxu0 0
        %1272 = vmatpush.bf16.msra.mxu0 0
        %1273 = vmatpush.bf16.msra.mxu0 0
        %1274 = vmatpush.bf16.msra.mxu0 0
        %1275 = vmatpush.bf16.msra.mxu0 0
        %1276 = vmatpush.bf16.msra.mxu0 %v1267
        %1277 = vmatmul.bf16.gmra.mxu0 %v1264
        %v1278 = vpop.f32.mrf.mxu0
        %v1279 = vadd.f32 0.0, %v1278
        %v1280 = vpop.f32.mrf.mxu0
        %1281 = vdwg.mxu0
        %v1283 = vsel %vm1118, %v1241, 0
        %v1286 = vsel %vm1246, %v1116, 0
        %1288 = vmatpush.bf16.msra.mxu0 0
        %1289 = vmatpush.bf16.msra.mxu0 0
        %1290 = vmatpush.bf16.msra.mxu0 0
        %1291 = vmatpush.bf16.msra.mxu0 0
        %1292 = vmatpush.bf16.msra.mxu0 0
        %1293 = vmatpush.bf16.msra.mxu0 0
        %1294 = vmatpush.bf16.msra.mxu0 0
        %1295 = vmatpush.bf16.msra.mxu0 %v1286
        %1296 = vmatmul.bf16.gmra.mxu0 %v1283
        %v1297 = vpop.f32.mrf.mxu0
        %v1298 = vadd.f32 0.0, %v1297
        %v1299 = vpop.f32.mrf.mxu0
        %1300 = vdwg.mxu0
        %v1302 = vsel %vm1118, %v1242, 0
        %v1305 = vsel %vm1246, %v1117, 0
        %1307 = vmatpush.bf16.msra.mxu0 0
        %1308 = vmatpush.bf16.msra.mxu0 0
        %1309 = vmatpush.bf16.msra.mxu0 0
        %1310 = vmatpush.bf16.msra.mxu0 0
        %1311 = vmatpush.bf16.msra.mxu0 0
        %1312 = vmatpush.bf16.msra.mxu0 0
        %1313 = vmatpush.bf16.msra.mxu0 0
        %1314 = vmatpush.bf16.msra.mxu0 %v1305
        %1315 = vmatmul.bf16.gmra.mxu0 %v1302
        %v1316 = vpop.f32.mrf.mxu0
        %v1317 = vadd.f32 0.0, %v1316
        %v1318 = vpop.f32.mrf.mxu0
        %1319 = vdwg.mxu0
        %v1320 = vrot.slane %v1298, 4
        %v1321 = vsel %vm996, %v1320, %v1260
        %v1322 = vrot.slane %v1260, 4
        %v1323 = vsel %vm996, %v1298, %v1322
        %v1325 = vunpack.c.l.s4 1983009808
        %v1326 = vunpack.c.0.s8 %v1325
        %v1327 = vperm.slane %v1321, %v1326
        %v1329 = vunpack.c.l.s4 1983009808
        %v1330 = vunpack.c.0.s8 %v1329
        %v1331 = vperm.slane %v1323, %v1330
        %v1332 = vrot.slane %v1317, 4
        %v1333 = vsel %vm996, %v1332, %v1279
        %v1334 = vrot.slane %v1279, 4
        %v1335 = vsel %vm996, %v1317, %v1334
        %v1337 = vunpack.c.l.s4 1983009808
        %v1338 = vunpack.c.0.s8 %v1337
        %v1339 = vperm.slane %v1333, %v1338
        %v1341 = vunpack.c.l.s4 1983009808
        %v1342 = vunpack.c.0.s8 %v1341
        %v1343 = vperm.slane %v1335, %v1342
        %v1344 = vrot.slane %v1339, 4
        %v1345 = vsel %vm996, %v1344, %v1327
        %v1346 = vrot.slane %v1327, 4
        %v1347 = vsel %vm996, %v1339, %v1346
        %v1349 = vunpack.c.l.s4 1934713408
        %v1350 = vunpack.c.0.s8 %v1349
        %v1351 = vperm.slane %v1345, %v1350
        %v1353 = vunpack.c.l.s4 1934713408
        %v1354 = vunpack.c.0.s8 %v1353
        %v1355 = vperm.slane %v1347, %v1354
        %v1356 = vrot.slane %v1343, 4
        %v1357 = vsel %vm996, %v1356, %v1331
        %v1358 = vrot.slane %v1331, 4
        %v1359 = vsel %vm996, %v1343, %v1358
        %v1361 = vunpack.c.l.s4 1934713408
        %v1362 = vunpack.c.0.s8 %v1361
        %v1363 = vperm.slane %v1357, %v1362
        %v1365 = vunpack.c.l.s4 1934713408
        %v1366 = vunpack.c.0.s8 %v1365
        %v1367 = vperm.slane %v1359, %v1366
        %v1368 = vrot.slane %v1351, 4
        %v1369 = vsel %vm996, 0.0, %v1368
        %v1370 = vrot.slane %v1355, 4
        %v1371 = vsel %vm996, 0.0, %v1370
        %v1372 = vrot.slane %v1363, 4
        %v1373 = vsel %vm996, 0.0, %v1372
        %v1374 = vrot.slane %v1367, 4
        %v1375 = vsel %vm996, 0.0, %v1374
        %v1376 = vsel %vm996, %v1370, %v1351
        %v1378 = vunpack.c.l.s4 1983009808
        %v1379 = vunpack.c.0.s8 %v1378
        %v1380 = vperm.slane %v1376, %v1379
        %v1381 = vrot.slane %v1371, 4
        %v1382 = vsel %vm996, %v1381, %v1369
        %v1384 = vunpack.c.l.s4 1983009808
        %v1385 = vunpack.c.0.s8 %v1384
        %v1386 = vperm.slane %v1382, %v1385
        %v1387 = vsel %vm996, %v1374, %v1363
        %v1389 = vunpack.c.l.s4 1983009808
        %v1390 = vunpack.c.0.s8 %v1389
        %v1391 = vperm.slane %v1387, %v1390
        %v1392 = vrot.slane %v1375, 4
        %v1393 = vsel %vm996, %v1392, %v1373
        %v1395 = vunpack.c.l.s4 1983009808
        %v1396 = vunpack.c.0.s8 %v1395
        %v1397 = vperm.slane %v1393, %v1396
        %v1398 = vrot.slane %v1386, 4
        %v1399 = vsel %vm996, %v1398, %v1380
        %v1400 = vrot.slane %v1380, 4
        %v1401 = vsel %vm996, %v1386, %v1400
        %v1403 = vunpack.c.l.s4 1934713408
        %v1404 = vunpack.c.0.s8 %v1403
        %v1405 = vperm.slane %v1399, %v1404
        %v1407 = vunpack.c.l.s4 1934713408
        %v1408 = vunpack.c.0.s8 %v1407
        %v1409 = vperm.slane %v1401, %v1408
        %v1410 = vrot.slane %v1397, 4
        %v1411 = vsel %vm996, %v1410, %v1391
        %v1412 = vrot.slane %v1391, 4
        %v1413 = vsel %vm996, %v1397, %v1412
        %v1415 = vunpack.c.l.s4 1934713408
        %v1416 = vunpack.c.0.s8 %v1415
        %v1417 = vperm.slane %v1411, %v1416
        %v1419 = vunpack.c.l.s4 1934713408
        %v1420 = vunpack.c.0.s8 %v1419
        %v1421 = vperm.slane %v1413, %v1420
        %v1422 = vrot.slane %v1417, 4
        %v1423 = vsel %vm996, %v1422, %v1405
        %v1424 = vrot.slane %v1405, 4
        %v1425 = vsel %vm996, %v1417, %v1424
        %v1426 = vrot.slane %v1421, 4
        %v1427 = vsel %vm996, %v1426, %v1409
        %v1428 = vrot.slane %v1409, 4
        %v1429 = vsel %vm996, %v1421, %v1428
        %1431 = vrot.lane.b32.xlu0 %v1425, 8
        %v1432 = vpop.permute.xlu0 %1431
        %1435 = vrot.lane.b32.xlu0 %v1427, 16
        %v1436 = vpop.permute.xlu0 %1435
        %1439 = vrot.lane.b32.xlu0 %v1429, 24
        %v1440 = vpop.permute.xlu0 %1439
        %v1442 = vsel %vm1118, %v1423, %v1432
        %vm1443 = vcmask 130048
        %v1444 = vsel %vm1443, %v1442, %v1436
        %vm1445 = vcmask 195584
        %v1446 = vsel %vm1445, %v1444, %v1440
        %v1447 = vpack.c.bf16 %v1446, %v1446
        %v1448 = vld [vmem:[#allocation7] sm:$0xf]
        %v1449 = vld [vmem:[#allocation7 + $0x4] sm:$0xf]
        %v1450 = vld [vmem:[#allocation7 + $0x8] sm:$0xf]
        %v1451 = vld [vmem:[#allocation7 + $0xc] sm:$0xf]
        %v1452 = vld [vmem:[%s8] sm:$0x1]
        %v1454 = vperm.slane %v1452, 0
        %v1460 = vunpack.c.l.b16 %v1448
        %v1461 = vunpack.c.l.b16 %v1449
        %v1462 = vunpack.c.l.b16 %v1450
        %v1463 = vunpack.c.l.b16 %v1451
        %v1464 = vpack.c.b16 %v1461, %v1460
        %v1465 = vpack.c.b16 %v1463, %v1462
        %v1469 = vsel %vm967, %v1447, 0
        %1471 = vmatpush.bf16.msra.mxu0 0
        %1472 = vmatpush.bf16.msra.mxu0 0
        %1473 = vmatpush.bf16.msra.mxu0 0
        %1474 = vmatpush.bf16.msra.mxu0 0
        %1475 = vmatpush.bf16.msra.mxu0 0
        %1476 = vmatpush.bf16.msra.mxu0 0
        %1477 = vmatpush.bf16.msra.mxu0 %v1465
        %1478 = vmatpush.bf16.msra.mxu0 %v1464
        %1479 = vmatmul.bf16.gmra.mxu0 %v1469
        %v1480 = vpop.f32.mrf.mxu0
        %v1481 = vadd.f32 %v1454, %v1480
        %v1482 = vpop.f32.mrf.mxu0
        %1483 = vdwg.mxu0
        %v1484 = vadd.f32 %v945, %v1481
        %v1485 = vld [vmem:[%s9] sm:$0x1]
        %v1486 = vld [vmem:[%s10] sm:$0x1]
        %v1487 = vsel %vm967, %v1484, 0.0
        %1488 = vadd.xlane.f32.xlu0 %v1487
        %v1489 = vpop.xlane.xlu0 %1488
        %v1490 = vrcp.pop 32.0
        %v1491 = vmul.f32 32.0, %v1490
        %v1492 = vsub.f32 1.0, %v1491
        %v1493 = vmul.f32 %v1490, %v1492
        %v1494 = vadd.f32 %v1490, %v1493
        %vm1495 = vweird.f32 %v1490
        %v1496 = vsel %vm1495, %v1490, %v1494
        %v1497 = vmul.f32 %v1489, %v1496
        %v1498 = vsub.f32 %v1484, %v1497
        %v1499 = vmul.f32 %v1498, %v1498
        %v1500 = vsel %vm967, %v1499, 0.0
        %1501 = vadd.xlane.f32.xlu0 %v1500
        %v1502 = vpop.xlane.xlu0 %1501
        %v1503 = vmul.f32 %v1502, %v1496
        %v1504 = vadd.f32 %v1503, 1e-05
        %v1505 = vrsqrt.pop %v1504
        %v1506 = vmul.f32 %v1505, %v1504
        %v1507 = vmul.f32 %v1506, %v1505
        %v1508 = vmul.f32 0.5, %v1507
        %v1509 = vsub.f32 1.5, %v1508
        %v1510 = vmul.f32 %v1505, %v1509
        %vm1511 = vweird.f32 %v1504
        %vm1512 = vweird.f32 %v1505
        %vm1513 = vmor %vm1511, %vm1512
        %v1514 = vsel %vm1513, %v1505, %v1510
        %v1515 = vmul.f32 %v1498, %v1514
        %v1517 = vperm.slane %v1485, 0
        %v1519 = vmul.f32 %v1515, %v1517
        %v1521 = vperm.slane %v1486, 0
        %v1523 = vadd.f32 %v1519, %v1521
        %v1524 = vpack.c.bf16 %v1523, %v1523
        %v1525 = vld [vmem:[#allocation9] sm:$0xf]
        %v1526 = vld [vmem:[#allocation9 + $0x4] sm:$0xf]
        %v1527 = vld [vmem:[#allocation9 + $0x8] sm:$0xf]
        %v1528 = vld [vmem:[#allocation9 + $0xc] sm:$0xf]
        %v1529 = vld [vmem:[%s12] sm:$0x1]
        %v1531 = vperm.slane %v1529, 0
        %v1537 = vunpack.c.l.b16 %v1525
        %v1538 = vunpack.c.l.b16 %v1526
        %v1539 = vunpack.c.l.b16 %v1527
        %v1540 = vunpack.c.l.b16 %v1528
        %v1541 = vpack.c.b16 %v1538, %v1537
        %v1542 = vpack.c.b16 %v1540, %v1539
        %v1546 = vsel %vm967, %v1524, 0
        %1548 = vmatpush.bf16.msra.mxu0 0
        %1549 = vmatpush.bf16.msra.mxu0 0
        %1550 = vmatpush.bf16.msra.mxu0 0
        %1551 = vmatpush.bf16.msra.mxu0 0
        %1552 = vmatpush.bf16.msra.mxu0 0
        %1553 = vmatpush.bf16.msra.mxu0 0
        %1554 = vmatpush.bf16.msra.mxu0 %v1542
        %1555 = vmatpush.bf16.msra.mxu0 %v1541
        %1556 = vmatmul.bf16.gmra.mxu0 %v1546
        %v1557 = vpop.f32.mrf.mxu0
        %v1558 = vadd.f32 %v1531, %v1557
        %v1559 = vpop.f32.mrf.mxu0
        %1560 = vdwg.mxu0
        %v1561 = vmax.f32 %v1558, 0.0
        %v1562 = vpack.c.bf16 %v1561, %v1561
        %v1563 = vld [vmem:[%s13] sm:$0xf]
        %v1564 = vld [vmem:[%s13 + $0x4] sm:$0xf]
        %v1565 = vld [vmem:[%s13 + $0x8] sm:$0xf]
        %v1566 = vld [vmem:[%s13 + $0xc] sm:$0xf]
        %v1567 = vld [vmem:[%s13 + $0x10] sm:$0xf]
        %v1568 = vld [vmem:[%s13 + $0x14] sm:$0xf]
        %v1569 = vld [vmem:[%s13 + $0x18] sm:$0xf]
        %v1570 = vld [vmem:[%s13 + $0x1c] sm:$0xf]
        %v1571 = vld [vmem:[%s14] sm:$0x1]
        %v1573 = vperm.slane %v1571, 0
        %v1583 = vunpack.c.l.b16 %v1563
        %v1584 = vunpack.c.l.b16 %v1564
        %v1585 = vunpack.c.l.b16 %v1565
        %v1586 = vunpack.c.l.b16 %v1566
        %v1587 = vunpack.c.l.b16 %v1567
        %v1588 = vunpack.c.l.b16 %v1568
        %v1589 = vunpack.c.l.b16 %v1569
        %v1590 = vunpack.c.l.b16 %v1570
        %v1591 = vpack.c.b16 %v1584, %v1583
        %v1592 = vpack.c.b16 %v1586, %v1585
        %v1593 = vpack.c.b16 %v1588, %v1587
        %v1594 = vpack.c.b16 %v1590, %v1589
        %vm1599 = vcmask 523264
        %v1601 = vsel %vm1599, %v1562, 0
        %1603 = vmatpush.bf16.msra.mxu0 0
        %1604 = vmatpush.bf16.msra.mxu0 0
        %1605 = vmatpush.bf16.msra.mxu0 0
        %1606 = vmatpush.bf16.msra.mxu0 0
        %1607 = vmatpush.bf16.msra.mxu0 %v1594
        %1608 = vmatpush.bf16.msra.mxu0 %v1593
        %1609 = vmatpush.bf16.msra.mxu0 %v1592
        %1610 = vmatpush.bf16.msra.mxu0 %v1591
        %1611 = vmatmul.bf16.gmra.mxu0 %v1601
        %v1612 = vpop.f32.mrf.mxu0
        %v1613 = vadd.f32 %v1573, %v1612
        %v1614 = vpop.f32.mrf.mxu0
        %1615 = vdwg.mxu0
        %v1616 = vadd.f32 %v1523, %v1613
        %v1617 = vld [vmem:[%s15] sm:$0x1]
        %v1618 = vld [vmem:[%s16] sm:$0x1]
        %v1619 = vsel %vm967, %v1616, 0.0
        %1620 = vadd.xlane.f32.xlu0 %v1619
        %v1621 = vpop.xlane.xlu0 %1620
        %v1622 = vmul.f32 %v1621, %v1496
        %v1623 = vsub.f32 %v1616, %v1622
        %v1624 = vmul.f32 %v1623, %v1623
        %v1625 = vsel %vm967, %v1624, 0.0
        %1626 = vadd.xlane.f32.xlu0 %v1625
        %v1627 = vpop.xlane.xlu0 %1626
        %v1628 = vmul.f32 %v1627, %v1496
        %v1629 = vadd.f32 %v1628, 1e-05
        %v1630 = vrsqrt.pop %v1629
        %v1631 = vmul.f32 %v1630, %v1629
        %v1632 = vmul.f32 %v1631, %v1630
        %v1633 = vmul.f32 0.5, %v1632
        %v1634 = vsub.f32 1.5, %v1633
        %v1635 = vmul.f32 %v1630, %v1634
        %vm1636 = vweird.f32 %v1629
        %vm1637 = vweird.f32 %v1630
        %vm1638 = vmor %vm1636, %vm1637
        %v1639 = vsel %vm1638, %v1630, %v1635
        %v1640 = vmul.f32 %v1623, %v1639
        %v1642 = vperm.slane %v1617, 0
        %v1644 = vmul.f32 %v1640, %v1642
        %v1646 = vperm.slane %v1618, 0
        %v1648 = vadd.f32 %v1644, %v1646
        %1649 = vst.msk [vmem:[%s603] sm:$0xff] %vm967, %v1648
        %s1650 = sand.u32 %s417, 1
        %s1651 = scalar_lea.sflag [#allocation6], %s1650
        %s1652 = sand.u32 %s417, 1
        %s1653 = smul.addr %s1652, 8
        %s1654 = scalar_lea.vmem [#allocation10], %s1653
        // Predicated region
        $region105: #{tpu_custom_call.1} parent=87 // pred_check
          %p1655 = pneg %p427
        $region106: #{tpu_custom_call.1} parent=87 // pred_check_branch
          %1657 = sbr.rel (%p1655) target = $region108
        $region107: #{tpu_custom_call.1} parent=87 // pred_region
          %1659 = vsyncadd %s1651, 0
          %s1660 = sadd.s32 %s38, %s37
          %s1661 = smul.addr %s1660, 8
          %s1662 = scalar_lea.hbm %s17, %s1661
          %s1664 = sshll.u32 %s1654, 4
          %s1665 = int_to_ptr.vmem [resolvable:$true] %s1664
          %s1666 = sshll.u32 %s1662, 4
          %s1667 = int_to_ptr.hbm [resolvable:$true] %s1666
          %1669 = dma.vmem_to_hbm [thread:$0]  %s1665, 128, %s1667, %s1651
        $region108: #{tpu_custom_call.1} parent=87 // pred_fallthru
          _
      $region88: #{tpu_custom_call.1} parent=5 // pred_fallthru
        _
      %p1670 = scmp.le.s32.totalorder 2, %s28
      // Predicated region
      $region109: #{tpu_custom_call.1} parent=5 // pred_check
        %p1671 = pneg %p1670
      $region110: #{tpu_custom_call.1} parent=5 // pred_check_branch
        %1673 = sbr.rel (%p1671) target = $region112
      $region111: #{tpu_custom_call.1} parent=5 // pred_region
        %s1674 = ssub.s32 %s28, 2
        // Predicated region
        $region113: #{tpu_custom_call.1} parent=111 // pred_check
          %p1675 = pneg %p433
        $region114: #{tpu_custom_call.1} parent=111 // pred_check_branch
          %1677 = sbr.rel (%p1675) target = $region116
        $region115: #{tpu_custom_call.1} parent=111 // pred_region
          %s1678 = sand.u32 %s418, 1
          %s1679 = scalar_lea.sflag [#allocation6], %s1678
          %s1680 = sand.u32 %s418, 1
          %s1681 = smul.addr %s1680, 8
          %s1682 = scalar_lea.vmem [#allocation10], %s1681
          %1684 = dma.done %s1679, 128
        $region116: #{tpu_custom_call.1} parent=111 // pred_fallthru
          _
      $region112: #{tpu_custom_call.1} parent=5 // pred_fallthru
        _
    $region6: #{tpu_custom_call.1} parent=1 // loop_footer
      %s32 = sadd.s32 1, %s28
    $region7: #{tpu_custom_call.1} parent=1 // loop_footer_branch
      %27 = sbr.rel target = $region3
    $region8: #{tpu_custom_call.1} parent=1 // loop_exit
      _
    %1685 = vsyncpa [#allocation5], 1
    %s1686 = scalar_lea.sflag [#allocation5], 1
    %1687 = vsyncpa %s1686, 1
    %1688 = vsyncpa [#allocation8], 1
    %1689 = vsyncpa [#allocation6], 1
    %s1690 = scalar_lea.sflag [#allocation6], 1
    %1691 = vsyncpa %s1690, 1

// kernel: tpu_custom_call.1
$region0: #{tpu_custom_call.1}
  #allocation0 [shape = 'u32[]', space=smem, size = 0x4, offset = 0x4, fixed_abs, tag = 'smem constant byte address 0x4 - core index']
  #allocation1 [shape = 'u32[72,128]{1,0:T(1,128)}', space=vmem, size = 0x9000, scoped, tag = 'internal scratch']
  #allocation2 [shape = 'bf16[4,8,8]{2,1,0:T(8,128)(2,1)}', space=vmem, size = 0x2000, scoped, tag = 'scratch operand']
  #allocation3 [shape = 'bf16[4,8,8]{2,1,0:T(8,128)(2,1)}', space=vmem, size = 0x2000, scoped, tag = 'scratch operand']
  %s0 = inlined_call_operand.vmem [shape: f32[2,8,32], index: 0, kind: input, shape index: {}]
  %s1 = inlined_call_operand.vmem [shape: bf16[32,32], index: 1, kind: input, shape index: {}]
  %s2 = inlined_call_operand.vmem [shape: f32[1,32], index: 2, kind: input, shape index: {}]
  %s3 = inlined_call_operand.vmem [shape: bf16[32,32], index: 3, kind: input, shape index: {}]
  %s4 = inlined_call_operand.vmem [shape: f32[1,32], index: 4, kind: input, shape index: {}]
  %s5 = inlined_call_operand.hbm [shape: bf16[32,32], index: 5, kind: input, shape index: {}]
  %s6 = inlined_call_operand.vmem [shape: f32[1,32], index: 6, kind: input, shape index: {}]
  %s7 = inlined_call_operand.hbm [shape: bf16[32,32], index: 7, kind: input, shape index: {}]
  %s8 = inlined_call_operand.vmem [shape: f32[1,32], index: 8, kind: input, shape index: {}]
  %s9 = inlined_call_operand.vmem [shape: f32[1,32], index: 9, kind: input, shape index: {}]
  %s10 = inlined_call_operand.vmem [shape: f32[1,32], index: 10, kind: input, shape index: {}]
  %s11 = inlined_call_operand.hbm [shape: bf16[32,64], index: 11, kind: input, shape index: {}]
  %s12 = inlined_call_operand.vmem [shape: f32[1,64], index: 12, kind: input, shape index: {}]
  %s13 = inlined_call_operand.vmem [shape: bf16[64,32], index: 13, kind: input, shape index: {}]
  %s14 = inlined_call_operand.vmem [shape: f32[1,32], index: 14, kind: input, shape index: {}]
  %s15 = inlined_call_operand.vmem [shape: f32[1,32], index: 15, kind: input, shape index: {}]
  %s16 = inlined_call_operand.vmem [shape: f32[1,32], index: 16, kind: input, shape index: {}]
  %s17 = inlined_call_operand.hbm [shape: f32[2,8,32], index: 17, kind: output, shape index: {}]
  %s18 = sld [smem:[#allocation0]]
  $region117: #{tpu_custom_call.1} parent=0
    _
  %s20 = ssub.s32 1, %s18
  %s21 = scalar_select 0, %s20, %s18
  $region1: #{tpu_custom_call.1} parent=0
    #allocation4 [shape = 'u8[8192]{0}', space=vmem, size = 0x2000, scoped, tag = 'input window, operand 5, single buffered']
    #allocation5 [shape = 's32[2]{0}', space=sflag, size = 0x8, scoped, tag = 'scoped memory for tpu_custom_call.1']
    #allocation6 [shape = 's32[2]{0}', space=sflag, size = 0x8, scoped, tag = 'scoped memory for tpu_custom_call.1']
    #allocation7 [shape = 'u8[8192]{0}', space=vmem, size = 0x2000, scoped, tag = 'input window, operand 7, single buffered']
    #allocation8 [shape = 's32[1]{0}', space=sflag, size = 0x4, scoped, tag = 'scoped memory for tpu_custom_call.1']
    #allocation9 [shape = 'u8[8192]{0}', space=vmem, size = 0x2000, scoped, tag = 'input window, operand 11, single buffered']
    #allocation10 [shape = 'u8[8192]{0}', space=vmem, size = 0x2000, scoped, tag = 'output window, operand 0']
    %22 = vsyncpa [#allocation5], 0
    %23 = vsyncpa [#allocation8], 0
    %24 = vsyncpa [#allocation6], 0
    %s25 = scalar_lea.sflag [#allocation6], 1
    %26 = vsyncpa %s25, 0
    loop: start=0, step=1, limit=4
    $region2: #{tpu_custom_call.1} parent=1 // loop_pre_header
      _
    $region3: #{tpu_custom_call.1} parent=1 // loop_header
      %s28 = sphi 0, %s32
      %p29 = scmp.ge.s32.totalorder %s28, 4
      %s35 = sphi 0, %s47
      %s36 = sphi 0, %s43
      %s37 = sphi 0, %s35
      %s38 = sphi 0, %s36
      %s39 = sphi 0, %s37
      %s40 = sphi 0, %s38
      %s50 = sphi 0, %s52
      %s53 = sphi 0, %s50
      %s54 = sphi 0, %s53
      %s70 = sphi 0, %s54
      %s74 = sphi 0, %s74
      %s76 = sphi 0, %s74
      %s77 = sphi 0, %s76
      %s91 = sphi 0, %s77
      %s95 = sphi 0, %s95
      %s97 = sphi 0, %s95
      %s98 = sphi 0, %s97
      %s112 = sphi 0, %s98
      %s116 = sphi 0, %s116
      %s118 = sphi 0, %s116
      %s119 = sphi 0, %s118
      %s133 = sphi 0, %s119
      %s137 = sphi 0, %s137
      %s139 = sphi 0, %s137
      %s140 = sphi 0, %s139
      %s154 = sphi 0, %s140
      %s158 = sphi 0, %s158
      %s160 = sphi 0, %s158
      %s161 = sphi 0, %s160
      %s175 = sphi 0, %s161
      %s179 = sphi 0, %s179
      %s181 = sphi 0, %s179
      %s182 = sphi 0, %s181
      %s196 = sphi 0, %s182
      %s200 = sphi 0, %s200
      %s202 = sphi 0, %s200
      %s203 = sphi 0, %s202
      %s217 = sphi 0, %s203
      %s221 = sphi 0, %s221
      %s223 = sphi 0, %s221
      %s224 = sphi 0, %s223
      %s238 = sphi 0, %s224
      %s242 = sphi 0, %s242
      %s244 = sphi 0, %s242
      %s245 = sphi 0, %s244
      %s259 = sphi 0, %s245
      %s263 = sphi 0, %s263
      %s265 = sphi 0, %s263
      %s266 = sphi 0, %s265
      %s280 = sphi 0, %s266
      %s284 = sphi 0, %s284
      %s286 = sphi 0, %s284
      %s287 = sphi 0, %s286
      %s301 = sphi 0, %s287
      %s305 = sphi 0, %s305
      %s307 = sphi 0, %s305
      %s308 = sphi 0, %s307
      %s322 = sphi 0, %s308
      %s326 = sphi 0, %s326
      %s328 = sphi 0, %s326
      %s329 = sphi 0, %s328
      %s343 = sphi 0, %s329
      %s347 = sphi 0, %s347
      %s349 = sphi 0, %s347
      %s350 = sphi 0, %s349
      %s364 = sphi 0, %s350
      %s368 = sphi 0, %s368
      %s370 = sphi 0, %s368
      %s371 = sphi 0, %s370
      %s385 = sphi 0, %s371
      %s389 = sphi 0, %s389
      %s391 = sphi 0, %s389
      %s392 = sphi 0, %s391
      %s406 = sphi 0, %s392
      %s414 = sphi 0, %s416
      %s417 = sphi 0, %s414
      %s418 = sphi 0, %s417
      %s434 = sphi 0, %s418
    $region4: #{tpu_custom_call.1} parent=1 // loop_header_branch
      %31 = sbr.rel (%p29) target = $region8
    $region5: #{tpu_custom_call.1} parent=1 // loop_body
      %s33 = ssub.s32 %s28, 1
      %s34 = ssub.s32 %s28, 2
      %s41 = sadd.s32 1, %s36
      %p42 = scmp.ge.s32.totalorder %s41, 1
      %s43 = scalar_select %p42, 0, %s41
      %s44 = sadd.s32 1, %s35
      %s45 = scalar_select %p42, %s44, %s35
      %p46 = scmp.ge.s32.totalorder %s45, 2
      %s47 = scalar_select %p46, 0, %s45
      %s48 = ssub.s32 %s35, %s47
      %p49 = scmp.eq.s32.totalorder %s48, 0
      %s51 = sadd.s32 %s50, 1
      %s52 = scalar_select %p49, %s50, %s51
      %p55 = pneg %p49
      %p56 = scmp.eq.s32.totalorder %s28, 1
      %p57 = por %p55, %p56
      %p58 = scmp.ne.s32.totalorder %s50, %s53
      %p59 = scmp.eq.s32.totalorder %s28, 0
      %p60 = por %p58, %p59
      %p61 = scmp.ne.s32.totalorder %s50, %s53
      %p62 = scmp.eq.s32.totalorder %s33, 1
      %p63 = por %p61, %p62
      %p64 = scmp.ne.s32.totalorder %s53, %s54
      %p65 = scmp.eq.s32.totalorder %s33, 0
      %p66 = por %p64, %p65
      %p67 = scmp.ne.s32.totalorder %s53, %s54
      %p68 = scmp.eq.s32.totalorder %s34, 1
      %p69 = por %p67, %p68
      %p71 = scmp.ne.s32.totalorder %s54, %s70
      %p72 = scmp.eq.s32.totalorder %s34, 0
      %p73 = por %p71, %p72
      %s75 = sadd.s32 %s74, 1
      %p78 = scmp.eq.s32.totalorder %s28, 1
      %p79 = scmp.ne.s32.totalorder %s74, %s76
      %p80 = scmp.eq.s32.totalorder %s28, 0
      %p81 = por %p79, %p80
      %p82 = scmp.ne.s32.totalorder %s74, %s76
      %p83 = scmp.eq.s32.totalorder %s33, 1
      %p84 = por %p82, %p83
      %p85 = scmp.ne.s32.totalorder %s76, %s77
      %p86 = scmp.eq.s32.totalorder %s33, 0
      %p87 = por %p85, %p86
      %p88 = scmp.ne.s32.totalorder %s76, %s77
      %p89 = scmp.eq.s32.totalorder %s34, 1
      %p90 = por %p88, %p89
      %p92 = scmp.ne.s32.totalorder %s77, %s91
      %p93 = scmp.eq.s32.totalorder %s34, 0
      %p94 = por %p92, %p93
      %s96 = sadd.s32 %s95, 1
      %p99 = scmp.eq.s32.totalorder %s28, 1
      %p100 = scmp.ne.s32.totalorder %s95, %s97
      %p101 = scmp.eq.s32.totalorder %s28, 0
      %p102 = por %p100, %p101
      %p103 = scmp.ne.s32.totalorder %s95, %s97
      %p104 = scmp.eq.s32.totalorder %s33, 1
      %p105 = por %p103, %p104
      %p106 = scmp.ne.s32.totalorder %s97, %s98
      %p107 = scmp.eq.s32.totalorder %s33, 0
      %p108 = por %p106, %p107
      %p109 = scmp.ne.s32.totalorder %s97, %s98
      %p110 = scmp.eq.s32.totalorder %s34, 1
      %p111 = por %p109, %p110
      %p113 = scmp.ne.s32.totalorder %s98, %s112
      %p114 = scmp.eq.s32.totalorder %s34, 0
      %p115 = por %p113, %p114
      %s117 = sadd.s32 %s116, 1
      %p120 = scmp.eq.s32.totalorder %s28, 1
      %p121 = scmp.ne.s32.totalorder %s116, %s118
      %p122 = scmp.eq.s32.totalorder %s28, 0
      %p123 = por %p121, %p122
      %p124 = scmp.ne.s32.totalorder %s116, %s118
      %p125 = scmp.eq.s32.totalorder %s33, 1
      %p126 = por %p124, %p125
      %p127 = scmp.ne.s32.totalorder %s118, %s119
      %p128 = scmp.eq.s32.totalorder %s33, 0
      %p129 = por %p127, %p128
      %p130 = scmp.ne.s32.totalorder %s118, %s119
      %p131 = scmp.eq.s32.totalorder %s34, 1
      %p132 = por %p130, %p131
      %p134 = scmp.ne.s32.totalorder %s119, %s133
      %p135 = scmp.eq.s32.totalorder %s34, 0
      %p136 = por %p134, %p135
      %s138 = sadd.s32 %s137, 1
      %p141 = scmp.eq.s32.totalorder %s28, 1
      %p142 = scmp.ne.s32.totalorder %s137, %s139
      %p143 = scmp.eq.s32.totalorder %s28, 0
      %p144 = por %p142, %p143
      %p145 = scmp.ne.s32.totalorder %s137, %s139
      %p146 = scmp.eq.s32.totalorder %s33, 1
      %p147 = por %p145, %p146
      %p148 = scmp.ne.s32.totalorder %s139, %s140
      %p149 = scmp.eq.s32.totalorder %s33, 0
      %p150 = por %p148, %p149
      %p151 = scmp.ne.s32.totalorder %s139, %s140
      %p152 = scmp.eq.s32.totalorder %s34, 1
      %p153 = por %p151, %p152
      %p155 = scmp.ne.s32.totalorder %s140, %s154
      %p156 = scmp.eq.s32.totalorder %s34, 0
      %p157 = por %p155, %p156
      %s159 = sadd.s32 %s158, 1
      %p162 = scmp.eq.s32.totalorder %s28, 1
      %p163 = scmp.ne.s32.totalorder %s158, %s160
      %p164 = scmp.eq.s32.totalorder %s28, 0
      %p165 = por %p163, %p164
      %p166 = scmp.ne.s32.totalorder %s158, %s160
      %p167 = scmp.eq.s32.totalorder %s33, 1
      %p168 = por %p166, %p167
      %p169 = scmp.ne.s32.totalorder %s160, %s161
      %p170 = scmp.eq.s32.totalorder %s33, 0
      %p171 = por %p169, %p170
      %p172 = scmp.ne.s32.totalorder %s160, %s161
      %p173 = scmp.eq.s32.totalorder %s34, 1
      %p174 = por %p172, %p173
      %p176 = scmp.ne.s32.totalorder %s161, %s175
      %p177 = scmp.eq.s32.totalorder %s34, 0
      %p178 = por %p176, %p177
      %s180 = sadd.s32 %s179, 1
      %p183 = scmp.eq.s32.totalorder %s28, 1
      %p184 = scmp.ne.s32.totalorder %s179, %s181
      %p185 = scmp.eq.s32.totalorder %s28, 0
      %p186 = por %p184, %p185
      %p187 = scmp.ne.s32.totalorder %s179, %s181
      %p188 = scmp.eq.s32.totalorder %s33, 1
      %p189 = por %p187, %p188
      %p190 = scmp.ne.s32.totalorder %s181, %s182
      %p191 = scmp.eq.s32.totalorder %s33, 0
      %p192 = por %p190, %p191
      %p193 = scmp.ne.s32.totalorder %s181, %s182
      %p194 = scmp.eq.s32.totalorder %s34, 1
      %p195 = por %p193, %p194
      %p197 = scmp.ne.s32.totalorder %s182, %s196
      %p198 = scmp.eq.s32.totalorder %s34, 0
      %p199 = por %p197, %p198
      %s201 = sadd.s32 %s200, 1
      %p204 = scmp.eq.s32.totalorder %s28, 1
      %p205 = scmp.ne.s32.totalorder %s200, %s202
      %p206 = scmp.eq.s32.totalorder %s28, 0
      %p207 = por %p205, %p206
      %p208 = scmp.ne.s32.totalorder %s200, %s202
      %p209 = scmp.eq.s32.totalorder %s33, 1
      %p210 = por %p208, %p209
      %p211 = scmp.ne.s32.totalorder %s202, %s203
      %p212 = scmp.eq.s32.totalorder %s33, 0
      %p213 = por %p211, %p212
      %p214 = scmp.ne.s32.totalorder %s202, %s203
      %p215 = scmp.eq.s32.totalorder %s34, 1
      %p216 = por %p214, %p215
      %p218 = scmp.ne.s32.totalorder %s203, %s217
      %p219 = scmp.eq.s32.totalorder %s34, 0
      %p220 = por %p218, %p219
      %s222 = sadd.s32 %s221, 1
      %p225 = scmp.eq.s32.totalorder %s28, 1
      %p226 = scmp.ne.s32.totalorder %s221, %s223
      %p227 = scmp.eq.s32.totalorder %s28, 0
      %p228 = por %p226, %p227
      %p229 = scmp.ne.s32.totalorder %s221, %s223
      %p230 = scmp.eq.s32.totalorder %s33, 1
      %p231 = por %p229, %p230
      %p232 = scmp.ne.s32.totalorder %s223, %s224
      %p233 = scmp.eq.s32.totalorder %s33, 0
      %p234 = por %p232, %p233
      %p235 = scmp.ne.s32.totalorder %s223, %s224
      %p236 = scmp.eq.s32.totalorder %s34, 1
      %p237 = por %p235, %p236
      %p239 = scmp.ne.s32.totalorder %s224, %s238
      %p240 = scmp.eq.s32.totalorder %s34, 0
      %p241 = por %p239, %p240
      %s243 = sadd.s32 %s242, 1
      %p246 = scmp.eq.s32.totalorder %s28, 1
      %p247 = scmp.ne.s32.totalorder %s242, %s244
      %p248 = scmp.eq.s32.totalorder %s28, 0
      %p249 = por %p247, %p248
      %p250 = scmp.ne.s32.totalorder %s242, %s244
      %p251 = scmp.eq.s32.totalorder %s33, 1
      %p252 = por %p250, %p251
      %p253 = scmp.ne.s32.totalorder %s244, %s245
      %p254 = scmp.eq.s32.totalorder %s33, 0
      %p255 = por %p253, %p254
      %p256 = scmp.ne.s32.totalorder %s244, %s245
      %p257 = scmp.eq.s32.totalorder %s34, 1
      %p258 = por %p256, %p257
      %p260 = scmp.ne.s32.totalorder %s245, %s259
      %p261 = scmp.eq.s32.totalorder %s34, 0
      %p262 = por %p260, %p261
      %s264 = sadd.s32 %s263, 1
      %p267 = scmp.eq.s32.totalorder %s28, 1
      %p268 = scmp.ne.s32.totalorder %s263, %s265
      %p269 = scmp.eq.s32.totalorder %s28, 0
      %p270 = por %p268, %p269
      %p271 = scmp.ne.s32.totalorder %s263, %s265
      %p272 = scmp.eq.s32.totalorder %s33, 1
      %p273 = por %p271, %p272
      %p274 = scmp.ne.s32.totalorder %s265, %s266
      %p275 = scmp.eq.s32.totalorder %s33, 0
      %p276 = por %p274, %p275
      %p277 = scmp.ne.s32.totalorder %s265, %s266
      %p278 = scmp.eq.s32.totalorder %s34, 1
      %p279 = por %p277, %p278
      %p281 = scmp.ne.s32.totalorder %s266, %s280
      %p282 = scmp.eq.s32.totalorder %s34, 0
      %p283 = por %p281, %p282
      %s285 = sadd.s32 %s284, 1
      %p288 = scmp.eq.s32.totalorder %s28, 1
      %p289 = scmp.ne.s32.totalorder %s284, %s286
      %p290 = scmp.eq.s32.totalorder %s28, 0
      %p291 = por %p289, %p290
      %p292 = scmp.ne.s32.totalorder %s284, %s286
      %p293 = scmp.eq.s32.totalorder %s33, 1
      %p294 = por %p292, %p293
      %p295 = scmp.ne.s32.totalorder %s286, %s287
      %p296 = scmp.eq.s32.totalorder %s33, 0
      %p297 = por %p295, %p296
      %p298 = scmp.ne.s32.totalorder %s286, %s287
      %p299 = scmp.eq.s32.totalorder %s34, 1
      %p300 = por %p298, %p299
      %p302 = scmp.ne.s32.totalorder %s287, %s301
      %p303 = scmp.eq.s32.totalorder %s34, 0
      %p304 = por %p302, %p303
      %s306 = sadd.s32 %s305, 1
      %p309 = scmp.eq.s32.totalorder %s28, 1
      %p310 = scmp.ne.s32.totalorder %s305, %s307
      %p311 = scmp.eq.s32.totalorder %s28, 0
      %p312 = por %p310, %p311
      %p313 = scmp.ne.s32.totalorder %s305, %s307
      %p314 = scmp.eq.s32.totalorder %s33, 1
      %p315 = por %p313, %p314
      %p316 = scmp.ne.s32.totalorder %s307, %s308
      %p317 = scmp.eq.s32.totalorder %s33, 0
      %p318 = por %p316, %p317
      %p319 = scmp.ne.s32.totalorder %s307, %s308
      %p320 = scmp.eq.s32.totalorder %s34, 1
      %p321 = por %p319, %p320
      %p323 = scmp.ne.s32.totalorder %s308, %s322
      %p324 = scmp.eq.s32.totalorder %s34, 0
      %p325 = por %p323, %p324
      %s327 = sadd.s32 %s326, 1
      %p330 = scmp.eq.s32.totalorder %s28, 1
      %p331 = scmp.ne.s32.totalorder %s326, %s328
      %p332 = scmp.eq.s32.totalorder %s28, 0
      %p333 = por %p331, %p332
      %p334 = scmp.ne.s32.totalorder %s326, %s328
      %p335 = scmp.eq.s32.totalorder %s33, 1
      %p336 = por %p334, %p335
      %p337 = scmp.ne.s32.totalorder %s328, %s329
      %p338 = scmp.eq.s32.totalorder %s33, 0
      %p339 = por %p337, %p338
      %p340 = scmp.ne.s32.totalorder %s328, %s329
      %p341 = scmp.eq.s32.totalorder %s34, 1
      %p342 = por %p340, %p341
      %p344 = scmp.ne.s32.totalorder %s329, %s343
      %p345 = scmp.eq.s32.totalorder %s34, 0
      %p346 = por %p344, %p345
      %s348 = sadd.s32 %s347, 1
      %p351 = scmp.eq.s32.totalorder %s28, 1
      %p352 = scmp.ne.s32.totalorder %s347, %s349
      %p353 = scmp.eq.s32.totalorder %s28, 0
      %p354 = por %p352, %p353
      %p355 = scmp.ne.s32.totalorder %s347, %s349
      %p356 = scmp.eq.s32.totalorder %s33, 1
      %p357 = por %p355, %p356
      %p358 = scmp.ne.s32.totalorder %s349, %s350
      %p359 = scmp.eq.s32.totalorder %s33, 0
      %p360 = por %p358, %p359
      %p361 = scmp.ne.s32.totalorder %s349, %s350
      %p362 = scmp.eq.s32.totalorder %s34, 1
      %p363 = por %p361, %p362
      %p365 = scmp.ne.s32.totalorder %s350, %s364
      %p366 = scmp.eq.s32.totalorder %s34, 0
      %p367 = por %p365, %p366
      %s369 = sadd.s32 %s368, 1
      %p372 = scmp.eq.s32.totalorder %s28, 1
      %p373 = scmp.ne.s32.totalorder %s368, %s370
      %p374 = scmp.eq.s32.totalorder %s28, 0
      %p375 = por %p373, %p374
      %p376 = scmp.ne.s32.totalorder %s368, %s370
      %p377 = scmp.eq.s32.totalorder %s33, 1
      %p378 = por %p376, %p377
      %p379 = scmp.ne.s32.totalorder %s370, %s371
      %p380 = scmp.eq.s32.totalorder %s33, 0
      %p381 = por %p379, %p380
      %p382 = scmp.ne.s32.totalorder %s370, %s371
      %p383 = scmp.eq.s32.totalorder %s34, 1
      %p384 = por %p382, %p383
      %p386 = scmp.ne.s32.totalorder %s371, %s385
      %p387 = scmp.eq.s32.totalorder %s34, 0
      %p388 = por %p386, %p387
      %s390 = sadd.s32 %s389, 1
      %p393 = scmp.eq.s32.totalorder %s28, 1
      %p394 = scmp.ne.s32.totalorder %s389, %s391
      %p395 = scmp.eq.s32.totalorder %s28, 0
      %p396 = por %p394, %p395
      %p397 = scmp.ne.s32.totalorder %s389, %s391
      %p398 = scmp.eq.s32.totalorder %s33, 1
      %p399 = por %p397, %p398
      %p400 = scmp.ne.s32.totalorder %s391, %s392
      %p401 = scmp.eq.s32.totalorder %s33, 0
      %p402 = por %p400, %p401
      %p403 = scmp.ne.s32.totalorder %s391, %s392
      %p404 = scmp.eq.s32.totalorder %s34, 1
      %p405 = por %p403, %p404
      %p407 = scmp.ne.s32.totalorder %s392, %s406
      %p408 = scmp.eq.s32.totalorder %s34, 0
      %p409 = por %p407, %p408
      %s410 = ssub.s32 %s35, %s47
      %s411 = ssub.s32 %s36, %s43
      %s412 = sor.u32 %s410, %s411
      %p413 = scmp.eq.s32.totalorder %s412, 0
      %s415 = sadd.s32 %s414, 1
      %s416 = scalar_select %p413, %s414, %s415
      %p419 = pneg %p413
      %p420 = scmp.eq.s32.totalorder %s28, 1
      %p421 = por %p419, %p420
      %p422 = scmp.ne.s32.totalorder %s414, %s417
      %p423 = scmp.eq.s32.totalorder %s28, 0
      %p424 = por %p422, %p423
      %p425 = scmp.ne.s32.totalorder %s414, %s417
      %p426 = scmp.eq.s32.totalorder %s33, 1
      %p427 = por %p425, %p426
      %p428 = scmp.ne.s32.totalorder %s417, %s418
      %p429 = scmp.eq.s32.totalorder %s33, 0
      %p430 = por %p428, %p429
      %p431 = scmp.ne.s32.totalorder %s417, %s418
      %p432 = scmp.eq.s32.totalorder %s34, 1
      %p433 = por %p431, %p432
      %p435 = scmp.ne.s32.totalorder %s418, %s434
      %p436 = scmp.eq.s32.totalorder %s34, 0
      %p437 = por %p435, %p436
      %p438 = scmp.le.s32.totalorder 1, %s28
      %p439 = scmp.lt.s32.totalorder %s28, 3
      %p440 = pnand %p438, %p439
      %p441 = pneg %p440
      // Predicated region
      $region9: #{tpu_custom_call.1} parent=5 // pred_check
        _
      $region10: #{tpu_custom_call.1} parent=5 // pred_check_branch
        %443 = sbr.rel (%p440) target = $region12
      $region11: #{tpu_custom_call.1} parent=5 // pred_region
        %s444 = ssub.s32 %s28, 1
        // Predicated region
        $region13: #{tpu_custom_call.1} parent=11 // pred_check
          %p445 = pneg %p87
        $region14: #{tpu_custom_call.1} parent=11 // pred_check_branch
          %447 = sbr.rel (%p445) target = $region16
        $region15: #{tpu_custom_call.1} parent=11 // pred_region
          _
        $region16: #{tpu_custom_call.1} parent=11 // pred_fallthru
          _
        // Predicated region
        $region17: #{tpu_custom_call.1} parent=11 // pred_check
          %p448 = pneg %p108
        $region18: #{tpu_custom_call.1} parent=11 // pred_check_branch
          %450 = sbr.rel (%p448) target = $region20
        $region19: #{tpu_custom_call.1} parent=11 // pred_region
          _
        $region20: #{tpu_custom_call.1} parent=11 // pred_fallthru
          _
        // Predicated region
        $region21: #{tpu_custom_call.1} parent=11 // pred_check
          %p451 = pneg %p129
        $region22: #{tpu_custom_call.1} parent=11 // pred_check_branch
          %453 = sbr.rel (%p451) target = $region24
        $region23: #{tpu_custom_call.1} parent=11 // pred_region
          _
        $region24: #{tpu_custom_call.1} parent=11 // pred_fallthru
          _
        // Predicated region
        $region25: #{tpu_custom_call.1} parent=11 // pred_check
          %p454 = pneg %p150
        $region26: #{tpu_custom_call.1} parent=11 // pred_check_branch
          %456 = sbr.rel (%p454) target = $region28
        $region27: #{tpu_custom_call.1} parent=11 // pred_region
          _
        $region28: #{tpu_custom_call.1} parent=11 // pred_fallthru
          _
        // Predicated region
        $region29: #{tpu_custom_call.1} parent=11 // pred_check
          %p457 = pneg %p171
        $region30: #{tpu_custom_call.1} parent=11 // pred_check_branch
          %459 = sbr.rel (%p457) target = $region32
        $region31: #{tpu_custom_call.1} parent=11 // pred_region
          %461 = vsyncadd [#allocation5], 0
          %s462 = sshll.u32 %s5, 4
          %s463 = int_to_ptr.hbm [resolvable:$true] %s462
          %s464 = sshll.u32 [#allocation4], 4
          %s465 = int_to_ptr.vmem [resolvable:$true] %s464
          %470 = dma.hbm_to_vmem [thread:$0]  %s463, 256, %s465, [#allocation5], 64, 64, 4
        $region32: #{tpu_custom_call.1} parent=11 // pred_fallthru
          _
        // Predicated region
        $region33: #{tpu_custom_call.1} parent=11 // pred_check
          %p471 = pneg %p192
        $region34: #{tpu_custom_call.1} parent=11 // pred_check_branch
          %473 = sbr.rel (%p471) target = $region36
        $region35: #{tpu_custom_call.1} parent=11 // pred_region
          _
        $region36: #{tpu_custom_call.1} parent=11 // pred_fallthru
          _
        // Predicated region
        $region37: #{tpu_custom_call.1} parent=11 // pred_check
          %p474 = pneg %p213
        $region38: #{tpu_custom_call.1} parent=11 // pred_check_branch
          %476 = sbr.rel (%p474) target = $region40
        $region39: #{tpu_custom_call.1} parent=11 // pred_region
          %478 = vsyncadd [#allocation8], 0
          %s479 = sshll.u32 %s7, 4
          %s480 = int_to_ptr.hbm [resolvable:$true] %s479
          %s481 = sshll.u32 [#allocation7], 4
          %s482 = int_to_ptr.vmem [resolvable:$true] %s481
          %487 = dma.hbm_to_vmem [thread:$0]  %s480, 256, %s482, [#allocation8], 64, 64, 4
        $region40: #{tpu_custom_call.1} parent=11 // pred_fallthru
          _
        // Predicated region
        $region41: #{tpu_custom_call.1} parent=11 // pred_check
          %p488 = pneg %p234
        $region42: #{tpu_custom_call.1} parent=11 // pred_check_branch
          %490 = sbr.rel (%p488) target = $region44
        $region43: #{tpu_custom_call.1} parent=11 // pred_region
          _
        $region44: #{tpu_custom_call.1} parent=11 // pred_fallthru
          _
        // Predicated region
        $region45: #{tpu_custom_call.1} parent=11 // pred_check
          %p491 = pneg %p255
        $region46: #{tpu_custom_call.1} parent=11 // pred_check_branch
          %493 = sbr.rel (%p491) target = $region48
        $region47: #{tpu_custom_call.1} parent=11 // pred_region
          _
        $region48: #{tpu_custom_call.1} parent=11 // pred_fallthru
          _
        // Predicated region
        $region49: #{tpu_custom_call.1} parent=11 // pred_check
          %p494 = pneg %p276
        $region50: #{tpu_custom_call.1} parent=11 // pred_check_branch
          %496 = sbr.rel (%p494) target = $region52
        $region51: #{tpu_custom_call.1} parent=11 // pred_region
          _
        $region52: #{tpu_custom_call.1} parent=11 // pred_fallthru
          _
        // Predicated region
        $region53: #{tpu_custom_call.1} parent=11 // pred_check
          %p497 = pneg %p297
        $region54: #{tpu_custom_call.1} parent=11 // pred_check_branch
          %499 = sbr.rel (%p497) target = $region56
        $region55: #{tpu_custom_call.1} parent=11 // pred_region
          %501 = vsyncadd [#allocation8], 0
          %s502 = sshll.u32 %s11, 4
          %s503 = int_to_ptr.hbm [resolvable:$true] %s502
          %s504 = sshll.u32 [#allocation9], 4
          %s505 = int_to_ptr.vmem [resolvable:$true] %s504
          %510 = dma.hbm_to_vmem [thread:$0]  %s503, 256, %s505, [#allocation8], 64, 64, 4
        $region56: #{tpu_custom_call.1} parent=11 // pred_fallthru
          _
        // Predicated region
        $region57: #{tpu_custom_call.1} parent=11 // pred_check
          %p511 = pneg %p318
        $region58: #{tpu_custom_call.1} parent=11 // pred_check_branch
          %513 = sbr.rel (%p511) target = $region60
        $region59: #{tpu_custom_call.1} parent=11 // pred_region
          _
        $region60: #{tpu_custom_call.1} parent=11 // pred_fallthru
          _
        // Predicated region
        $region61: #{tpu_custom_call.1} parent=11 // pred_check
          %p514 = pneg %p339
        $region62: #{tpu_custom_call.1} parent=11 // pred_check_branch
          %516 = sbr.rel (%p514) target = $region64
        $region63: #{tpu_custom_call.1} parent=11 // pred_region
          _
        $region64: #{tpu_custom_call.1} parent=11 // pred_fallthru
          _
        // Predicated region
        $region65: #{tpu_custom_call.1} parent=11 // pred_check
          %p517 = pneg %p360
        $region66: #{tpu_custom_call.1} parent=11 // pred_check_branch
          %519 = sbr.rel (%p517) target = $region68
        $region67: #{tpu_custom_call.1} parent=11 // pred_region
          _
        $region68: #{tpu_custom_call.1} parent=11 // pred_fallthru
          _
        // Predicated region
        $region69: #{tpu_custom_call.1} parent=11 // pred_check
          %p520 = pneg %p381
        $region70: #{tpu_custom_call.1} parent=11 // pred_check_branch
          %522 = sbr.rel (%p520) target = $region72
        $region71: #{tpu_custom_call.1} parent=11 // pred_region
          _
        $region72: #{tpu_custom_call.1} parent=11 // pred_fallthru
          _
        // Predicated region
        $region73: #{tpu_custom_call.1} parent=11 // pred_check
          %p523 = pneg %p402
        $region74: #{tpu_custom_call.1} parent=11 // pred_check_branch
          %525 = sbr.rel (%p523) target = $region76
        $region75: #{tpu_custom_call.1} parent=11 // pred_region
          _
        $region76: #{tpu_custom_call.1} parent=11 // pred_fallthru
          _
      $region12: #{tpu_custom_call.1} parent=5 // pred_fallthru
        _
      %p526 = scmp.lt.s32.totalorder %s28, 2
      // Predicated region
      $region77: #{tpu_custom_call.1} parent=5 // pred_check
        %p527 = pneg %p526
      $region78: #{tpu_custom_call.1} parent=5 // pred_check_branch
        %529 = sbr.rel (%p527) target = $region80
      $region79: #{tpu_custom_call.1} parent=5 // pred_region
        // Predicated region
        $region81: #{tpu_custom_call.1} parent=79 // pred_check
          %p530 = pneg %p60
        $region82: #{tpu_custom_call.1} parent=79 // pred_check_branch
          %532 = sbr.rel (%p530) target = $region84
        $region83: #{tpu_custom_call.1} parent=79 // pred_region
          %p533 = scmp.lt.s32.totalorder %s35, 1
          %s534 = scalar_select %p533, %s35, 1
          %s535 = smul.addr %s534, 8
          %s536 = scalar_lea.vmem %s0, %s535
        $region84: #{tpu_custom_call.1} parent=79 // pred_fallthru
          _
      $region80: #{tpu_custom_call.1} parent=5 // pred_fallthru
        _
      %p537 = scmp.le.s32.totalorder 1, %s28
      %p538 = scmp.lt.s32.totalorder %s28, 3
      %p539 = pnand %p537, %p538
      %p540 = pneg %p539
      // Predicated region
      $region85: #{tpu_custom_call.1} parent=5 // pred_check
        _
      $region86: #{tpu_custom_call.1} parent=5 // pred_check_branch
        %542 = sbr.rel (%p539) target = $region88
      $region87: #{tpu_custom_call.1} parent=5 // pred_region
        %s543 = ssub.s32 %s28, 1
        // Predicated region
        $region89: #{tpu_custom_call.1} parent=87 // pred_check
          %p544 = pneg %p171
        $region90: #{tpu_custom_call.1} parent=87 // pred_check_branch
          %546 = sbr.rel (%p544) target = $region92
        $region91: #{tpu_custom_call.1} parent=87 // pred_region
          %548 = dma.done [#allocation5], 256
        $region92: #{tpu_custom_call.1} parent=87 // pred_fallthru
          _
        // Predicated region
        $region93: #{tpu_custom_call.1} parent=87 // pred_check
          %p549 = pneg %p213
        $region94: #{tpu_custom_call.1} parent=87 // pred_check_branch
          %551 = sbr.rel (%p549) target = $region96
        $region95: #{tpu_custom_call.1} parent=87 // pred_region
          %553 = dma.done [#allocation8], 256
        $region96: #{tpu_custom_call.1} parent=87 // pred_fallthru
          _
        // Predicated region
        $region97: #{tpu_custom_call.1} parent=87 // pred_check
          %p554 = pneg %p297
        $region98: #{tpu_custom_call.1} parent=87 // pred_check_branch
          %556 = sbr.rel (%p554) target = $region100
        $region99: #{tpu_custom_call.1} parent=87 // pred_region
          %558 = dma.done [#allocation8], 256
        $region100: #{tpu_custom_call.1} parent=87 // pred_fallthru
          _
        %p559 = scmp.lt.s32.totalorder %s37, 1
        %s560 = scalar_select %p559, %s37, 1
        %s561 = smul.addr %s560, 8
        %s562 = scalar_lea.vmem %s0, %s561
        %p563 = pneg %p66
        %p564 = pneg %p63
        %p565 = pneg %p87
        %p566 = pneg %p84
        %p567 = pneg %p108
        %p568 = pneg %p105
        %p569 = pneg %p129
        %p570 = pneg %p126
        %p571 = pneg %p150
        %p572 = pneg %p147
        %p573 = pneg %p171
        %p574 = pneg %p168
        %p575 = pneg %p192
        %p576 = pneg %p189
        %p577 = pneg %p213
        %p578 = pneg %p210
        %p579 = pneg %p234
        %p580 = pneg %p231
        %p581 = pneg %p255
        %p582 = pneg %p252
        %p583 = pneg %p276
        %p584 = pneg %p273
        %p585 = pneg %p297
        %p586 = pneg %p294
        %p587 = pneg %p318
        %p588 = pneg %p315
        %p589 = pneg %p339
        %p590 = pneg %p336
        %p591 = pneg %p360
        %p592 = pneg %p357
        %p593 = pneg %p381
        %p594 = pneg %p378
        %p595 = pneg %p402
        %p596 = pneg %p399
        %p597 = pneg %p430
        %p598 = pneg %p427
        %s599 = sand.u32 %s417, 1
        %s600 = scalar_lea.sflag [#allocation6], %s599
        %s601 = sand.u32 %s417, 1
        %s602 = smul.addr %s601, 8
        %s603 = scalar_lea.vmem [#allocation10], %s602
        %p604 = scmp.lt.s32.totalorder %s37, 1
        %s605 = scalar_select %p604, %s37, 1
        %s606 = smul.addr %s605, 8
        %s607 = scalar_lea.vmem %s0, %s606
        %p609 = scmp.eq.s32.totalorder %s38, 0
        // Predicated region
        $region101: #{tpu_custom_call.1} parent=87 // pred_check
          %p610 = pneg %p609
        $region102: #{tpu_custom_call.1} parent=87 // pred_check_branch
          %612 = sbr.rel (%p610) target = $region104
        $region103: #{tpu_custom_call.1} parent=87 // pred_region
          %v613 = vld [vmem:[%s607] sm:$0xff]
          %v614 = vpack.c.bf16 %v613, %v613
          %v615 = vld [vmem:[%s3] sm:$0xf]
          %v616 = vld [vmem:[%s3 + $0x4] sm:$0xf]
          %v617 = vld [vmem:[%s3 + $0x8] sm:$0xf]
          %v618 = vld [vmem:[%s3 + $0xc] sm:$0xf]
          %v619 = vld [vmem:[%s4] sm:$0x1]
          %v621 = vperm.slane %v619, 0
          %v627 = vunpack.c.l.b16 %v615
          %v628 = vunpack.c.l.b16 %v616
          %v629 = vunpack.c.l.b16 %v617
          %v630 = vunpack.c.l.b16 %v618
          %v631 = vpack.c.b16 %v628, %v627
          %v632 = vpack.c.b16 %v630, %v629
          %vm635 = vcmask 261120
          %v637 = vsel %vm635, %v614, 0
          %639 = vmatpush.bf16.msra.mxu0 0
          %640 = vmatpush.bf16.msra.mxu0 0
          %641 = vmatpush.bf16.msra.mxu0 0
          %642 = vmatpush.bf16.msra.mxu0 0
          %643 = vmatpush.bf16.msra.mxu0 0
          %644 = vmatpush.bf16.msra.mxu0 0
          %645 = vmatpush.bf16.msra.mxu0 %v632
          %646 = vmatpush.bf16.msra.mxu0 %v631
          %647 = vmatmul.bf16.gmra.mxu0 %v637
          %v648 = vpop.f32.mrf.mxu0
          %v649 = vadd.f32 %v621, %v648
          %v650 = vpop.f32.mrf.mxu0
          %651 = vdwg.mxu0
          %v652 = vld [vmem:[#allocation4] sm:$0xf]
          %v653 = vld [vmem:[#allocation4 + $0x4] sm:$0xf]
          %v654 = vld [vmem:[#allocation4 + $0x8] sm:$0xf]
          %v655 = vld [vmem:[#allocation4 + $0xc] sm:$0xf]
          %v656 = vld [vmem:[%s6] sm:$0x1]
          %v658 = vperm.slane %v656, 0
          %v664 = vunpack.c.l.b16 %v652
          %v665 = vunpack.c.l.b16 %v653
          %v666 = vunpack.c.l.b16 %v654
          %v667 = vunpack.c.l.b16 %v655
          %v668 = vpack.c.b16 %v665, %v664
          %v669 = vpack.c.b16 %v667, %v666
          %672 = vmatpush.bf16.msra.mxu0 0
          %673 = vmatpush.bf16.msra.mxu0 0
          %674 = vmatpush.bf16.msra.mxu0 0
          %675 = vmatpush.bf16.msra.mxu0 0
          %676 = vmatpush.bf16.msra.mxu0 0
          %677 = vmatpush.bf16.msra.mxu0 0
          %678 = vmatpush.bf16.msra.mxu0 %v669
          %679 = vmatpush.bf16.msra.mxu0 %v668
          %680 = vmatmul.bf16.gmra.mxu0 %v637
          %v681 = vpop.f32.mrf.mxu0
          %v682 = vadd.f32 %v658, %v681
          %v683 = vpop.f32.mrf.mxu0
          %684 = vdwg.mxu0
          %686 = vrot.lane.b32.xlu0 %v649, 120
          %v687 = vpop.permute.xlu0 %686
          %689 = vrot.lane.b32.xlu0 %v649, 112
          %v690 = vpop.permute.xlu0 %689
          %692 = vrot.lane.b32.xlu0 %v649, 104
          %v693 = vpop.permute.xlu0 %692
          %v695 = vrot.slane %v690, 4
          %vm696 = vcmask 1047556
          %v697 = vsel %vm696, %v695, %v649
          %v698 = vrot.slane %v649, 4
          %v699 = vsel %vm696, %v690, %v698
          %v701 = vunpack.c.l.s4 1983009808
          %v702 = vunpack.c.0.s8 %v701
          %v703 = vperm.slane %v697, %v702
          %v705 = vunpack.c.l.s4 1983009808
          %v706 = vunpack.c.0.s8 %v705
          %v707 = vperm.slane %v699, %v706
          %v708 = vrot.slane %v693, 4
          %v709 = vsel %vm696, %v708, %v687
          %v710 = vrot.slane %v687, 4
          %v711 = vsel %vm696, %v693, %v710
          %v713 = vunpack.c.l.s4 1983009808
          %v714 = vunpack.c.0.s8 %v713
          %v715 = vperm.slane %v709, %v714
          %v717 = vunpack.c.l.s4 1983009808
          %v718 = vunpack.c.0.s8 %v717
          %v719 = vperm.slane %v711, %v718
          %v720 = vrot.slane %v715, 4
          %v721 = vsel %vm696, %v720, %v703
          %v722 = vrot.slane %v703, 4
          %v723 = vsel %vm696, %v715, %v722
          %v725 = vunpack.c.l.s4 1934713408
          %v726 = vunpack.c.0.s8 %v725
          %v727 = vperm.slane %v721, %v726
          %v729 = vunpack.c.l.s4 1934713408
          %v730 = vunpack.c.0.s8 %v729
          %v731 = vperm.slane %v723, %v730
          %v732 = vrot.slane %v719, 4
          %v733 = vsel %vm696, %v732, %v707
          %v734 = vrot.slane %v707, 4
          %v735 = vsel %vm696, %v719, %v734
          %v737 = vunpack.c.l.s4 1934713408
          %v738 = vunpack.c.0.s8 %v737
          %v739 = vperm.slane %v733, %v738
          %v741 = vunpack.c.l.s4 1934713408
          %v742 = vunpack.c.0.s8 %v741
          %v743 = vperm.slane %v735, %v742
          %v744 = vrot.slane %v727, 4
          %v745 = vsel %vm696, 0.0, %v744
          %v746 = vrot.slane %v731, 4
          %v747 = vsel %vm696, 0.0, %v746
          %v748 = vrot.slane %v739, 4
          %v749 = vsel %vm696, 0.0, %v748
          %v750 = vrot.slane %v743, 4
          %v751 = vsel %vm696, 0.0, %v750
          %v752 = vsel %vm696, %v746, %v727
          %v754 = vunpack.c.l.s4 1983009808
          %v755 = vunpack.c.0.s8 %v754
          %v756 = vperm.slane %v752, %v755
          %v757 = vrot.slane %v747, 4
          %v758 = vsel %vm696, %v757, %v745
          %v760 = vunpack.c.l.s4 1983009808
          %v761 = vunpack.c.0.s8 %v760
          %v762 = vperm.slane %v758, %v761
          %v763 = vsel %vm696, %v750, %v739
          %v765 = vunpack.c.l.s4 1983009808
          %v766 = vunpack.c.0.s8 %v765
          %v767 = vperm.slane %v763, %v766
          %v768 = vrot.slane %v751, 4
          %v769 = vsel %vm696, %v768, %v749
          %v771 = vunpack.c.l.s4 1983009808
          %v772 = vunpack.c.0.s8 %v771
          %v773 = vperm.slane %v769, %v772
          %v774 = vrot.slane %v762, 4
          %v775 = vsel %vm696, %v774, %v756
          %v776 = vrot.slane %v756, 4
          %v777 = vsel %vm696, %v762, %v776
          %v779 = vunpack.c.l.s4 1934713408
          %v780 = vunpack.c.0.s8 %v779
          %v781 = vperm.slane %v775, %v780
          %v783 = vunpack.c.l.s4 1934713408
          %v784 = vunpack.c.0.s8 %v783
          %v785 = vperm.slane %v777, %v784
          %v786 = vrot.slane %v773, 4
          %v787 = vsel %vm696, %v786, %v767
          %v788 = vrot.slane %v767, 4
          %v789 = vsel %vm696, %v773, %v788
          %v791 = vunpack.c.l.s4 1934713408
          %v792 = vunpack.c.0.s8 %v791
          %v793 = vperm.slane %v787, %v792
          %v795 = vunpack.c.l.s4 1934713408
          %v796 = vunpack.c.0.s8 %v795
          %v797 = vperm.slane %v789, %v796
          %v798 = vrot.slane %v793, 4
          %v799 = vsel %vm696, %v798, %v781
          %v800 = vrot.slane %v781, 4
          %v801 = vsel %vm696, %v793, %v800
          %v802 = vrot.slane %v797, 4
          %v803 = vsel %vm696, %v802, %v785
          %v804 = vrot.slane %v785, 4
          %v805 = vsel %vm696, %v797, %v804
          %v806 = vpack.c.bf16 %v799, %v799
          %v807 = vpack.c.bf16 %v801, %v801
          %v808 = vpack.c.bf16 %v803, %v803
          %v809 = vpack.c.bf16 %v805, %v805
          %vm810 = vcmask 60416
          %811 = vst.msk [vmem:[#allocation2] sm:$0xf] %vm810, %v806
          %812 = vst.msk [vmem:[#allocation2 + $0x4] sm:$0xf] %vm810, %v807
          %813 = vst.msk [vmem:[#allocation2 + $0x8] sm:$0xf] %vm810, %v808
          %814 = vst.msk [vmem:[#allocation2 + $0xc] sm:$0xf] %vm810, %v809
          %816 = vrot.lane.b32.xlu0 %v682, 120
          %v817 = vpop.permute.xlu0 %816
          %819 = vrot.lane.b32.xlu0 %v682, 112
          %v820 = vpop.permute.xlu0 %819
          %822 = vrot.lane.b32.xlu0 %v682, 104
          %v823 = vpop.permute.xlu0 %822
          %v825 = vrot.slane %v820, 4
          %v826 = vsel %vm696, %v825, %v682
          %v827 = vrot.slane %v682, 4
          %v828 = vsel %vm696, %v820, %v827
          %v830 = vunpack.c.l.s4 1983009808
          %v831 = vunpack.c.0.s8 %v830
          %v832 = vperm.slane %v826, %v831
          %v834 = vunpack.c.l.s4 1983009808
          %v835 = vunpack.c.0.s8 %v834
          %v836 = vperm.slane %v828, %v835
          %v837 = vrot.slane %v823, 4
          %v838 = vsel %vm696, %v837, %v817
          %v839 = vrot.slane %v817, 4
          %v840 = vsel %vm696, %v823, %v839
          %v842 = vunpack.c.l.s4 1983009808
          %v843 = vunpack.c.0.s8 %v842
          %v844 = vperm.slane %v838, %v843
          %v846 = vunpack.c.l.s4 1983009808
          %v847 = vunpack.c.0.s8 %v846
          %v848 = vperm.slane %v840, %v847
          %v849 = vrot.slane %v844, 4
          %v850 = vsel %vm696, %v849, %v832
          %v851 = vrot.slane %v832, 4
          %v852 = vsel %vm696, %v844, %v851
          %v854 = vunpack.c.l.s4 1934713408
          %v855 = vunpack.c.0.s8 %v854
          %v856 = vperm.slane %v850, %v855
          %v858 = vunpack.c.l.s4 1934713408
          %v859 = vunpack.c.0.s8 %v858
          %v860 = vperm.slane %v852, %v859
          %v861 = vrot.slane %v848, 4
          %v862 = vsel %vm696, %v861, %v836
          %v863 = vrot.slane %v836, 4
          %v864 = vsel %vm696, %v848, %v863
          %v866 = vunpack.c.l.s4 1934713408
          %v867 = vunpack.c.0.s8 %v866
          %v868 = vperm.slane %v862, %v867
          %v870 = vunpack.c.l.s4 1934713408
          %v871 = vunpack.c.0.s8 %v870
          %v872 = vperm.slane %v864, %v871
          %v873 = vrot.slane %v856, 4
          %v874 = vsel %vm696, 0.0, %v873
          %v875 = vrot.slane %v860, 4
          %v876 = vsel %vm696, 0.0, %v875
          %v877 = vrot.slane %v868, 4
          %v878 = vsel %vm696, 0.0, %v877
          %v879 = vrot.slane %v872, 4
          %v880 = vsel %vm696, 0.0, %v879
          %v881 = vsel %vm696, %v875, %v856
          %v883 = vunpack.c.l.s4 1983009808
          %v884 = vunpack.c.0.s8 %v883
          %v885 = vperm.slane %v881, %v884
          %v886 = vrot.slane %v876, 4
          %v887 = vsel %vm696, %v886, %v874
          %v889 = vunpack.c.l.s4 1983009808
          %v890 = vunpack.c.0.s8 %v889
          %v891 = vperm.slane %v887, %v890
          %v892 = vsel %vm696, %v879, %v868
          %v894 = vunpack.c.l.s4 1983009808
          %v895 = vunpack.c.0.s8 %v894
          %v896 = vperm.slane %v892, %v895
          %v897 = vrot.slane %v880, 4
          %v898 = vsel %vm696, %v897, %v878
          %v900 = vunpack.c.l.s4 1983009808
          %v901 = vunpack.c.0.s8 %v900
          %v902 = vperm.slane %v898, %v901
          %v903 = vrot.slane %v891, 4
          %v904 = vsel %vm696, %v903, %v885
          %v905 = vrot.slane %v885, 4
          %v906 = vsel %vm696, %v891, %v905
          %v908 = vunpack.c.l.s4 1934713408
          %v909 = vunpack.c.0.s8 %v908
          %v910 = vperm.slane %v904, %v909
          %v912 = vunpack.c.l.s4 1934713408
          %v913 = vunpack.c.0.s8 %v912
          %v914 = vperm.slane %v906, %v913
          %v915 = vrot.slane %v902, 4
          %v916 = vsel %vm696, %v915, %v896
          %v917 = vrot.slane %v896, 4
          %v918 = vsel %vm696, %v902, %v917
          %v920 = vunpack.c.l.s4 1934713408
          %v921 = vunpack.c.0.s8 %v920
          %v922 = vperm.slane %v916, %v921
          %v924 = vunpack.c.l.s4 1934713408
          %v925 = vunpack.c.0.s8 %v924
          %v926 = vperm.slane %v918, %v925
          %v927 = vrot.slane %v922, 4
          %v928 = vsel %vm696, %v927, %v910
          %v929 = vrot.slane %v910, 4
          %v930 = vsel %vm696, %v922, %v929
          %v931 = vrot.slane %v926, 4
          %v932 = vsel %vm696, %v931, %v914
          %v933 = vrot.slane %v914, 4
          %v934 = vsel %vm696, %v926, %v933
          %v935 = vpack.c.bf16 %v928, %v928
          %v936 = vpack.c.bf16 %v930, %v930
          %v937 = vpack.c.bf16 %v932, %v932
          %v938 = vpack.c.bf16 %v934, %v934
          %939 = vst.msk [vmem:[#allocation3] sm:$0xf] %vm810, %v935
          %940 = vst.msk [vmem:[#allocation3 + $0x4] sm:$0xf] %vm810, %v936
          %941 = vst.msk [vmem:[#allocation3 + $0x8] sm:$0xf] %vm810, %v937
          %942 = vst.msk [vmem:[#allocation3 + $0xc] sm:$0xf] %vm810, %v938
        $region104: #{tpu_custom_call.1} parent=87 // pred_fallthru
          _
        %s943 = smul.u32 %s38, 8
        %s944 = scalar_lea.vmem %s607, %s943
        %v945 = vld [vmem:[%s944] sm:$0xff]
        %v946 = vpack.c.bf16 %v945, %v945
        %v947 = vld [vmem:[%s1] sm:$0xf]
        %v948 = vld [vmem:[%s1 + $0x4] sm:$0xf]
        %v949 = vld [vmem:[%s1 + $0x8] sm:$0xf]
        %v950 = vld [vmem:[%s1 + $0xc] sm:$0xf]
        %v951 = vld [vmem:[%s2] sm:$0x1]
        %v953 = vperm.slane %v951, 0
        %v959 = vunpack.c.l.b16 %v947
        %v960 = vunpack.c.l.b16 %v948
        %v961 = vunpack.c.l.b16 %v949
        %v962 = vunpack.c.l.b16 %v950
        %v963 = vpack.c.b16 %v960, %v959
        %v964 = vpack.c.b16 %v962, %v961
        %vm967 = vcmask 261120
        %v969 = vsel %vm967, %v946, 0
        %971 = vmatpush.bf16.msra.mxu0 0
        %972 = vmatpush.bf16.msra.mxu0 0
        %973 = vmatpush.bf16.msra.mxu0 0
        %974 = vmatpush.bf16.msra.mxu0 0
        %975 = vmatpush.bf16.msra.mxu0 0
        %976 = vmatpush.bf16.msra.mxu0 0
        %977 = vmatpush.bf16.msra.mxu0 %v964
        %978 = vmatpush.bf16.msra.mxu0 %v963
        %979 = vmatmul.bf16.gmra.mxu0 %v969
        %v980 = vpop.f32.mrf.mxu0
        %v981 = vadd.f32 %v953, %v980
        %v982 = vpop.f32.mrf.mxu0
        %983 = vdwg.mxu0
        %v984 = vmul.f32 %v981, 0.35355338
        %986 = vrot.lane.b32.xlu0 %v984, 120
        %v987 = vpop.permute.xlu0 %986
        %989 = vrot.lane.b32.xlu0 %v984, 112
        %v990 = vpop.permute.xlu0 %989
        %992 = vrot.lane.b32.xlu0 %v984, 104
        %v993 = vpop.permute.xlu0 %992
        %v995 = vrot.slane %v990, 4
        %vm996 = vcmask 1047556
        %v997 = vsel %vm996, %v995, %v984
        %v998 = vrot.slane %v984, 4
        %v999 = vsel %vm996, %v990, %v998
        %v1001 = vunpack.c.l.s4 1983009808
        %v1002 = vunpack.c.0.s8 %v1001
        %v1003 = vperm.slane %v997, %v1002
        %v1005 = vunpack.c.l.s4 1983009808
        %v1006 = vunpack.c.0.s8 %v1005
        %v1007 = vperm.slane %v999, %v1006
        %v1008 = vrot.slane %v993, 4
        %v1009 = vsel %vm996, %v1008, %v987
        %v1010 = vrot.slane %v987, 4
        %v1011 = vsel %vm996, %v993, %v1010
        %v1013 = vunpack.c.l.s4 1983009808
        %v1014 = vunpack.c.0.s8 %v1013
        %v1015 = vperm.slane %v1009, %v1014
        %v1017 = vunpack.c.l.s4 1983009808
        %v1018 = vunpack.c.0.s8 %v1017
        %v1019 = vperm.slane %v1011, %v1018
        %v1020 = vrot.slane %v1015, 4
        %v1021 = vsel %vm996, %v1020, %v1003
        %v1022 = vrot.slane %v1003, 4
        %v1023 = vsel %vm996, %v1015, %v1022
        %v1025 = vunpack.c.l.s4 1934713408
        %v1026 = vunpack.c.0.s8 %v1025
        %v1027 = vperm.slane %v1021, %v1026
        %v1029 = vunpack.c.l.s4 1934713408
        %v1030 = vunpack.c.0.s8 %v1029
        %v1031 = vperm.slane %v1023, %v1030
        %v1032 = vrot.slane %v1019, 4
        %v1033 = vsel %vm996, %v1032, %v1007
        %v1034 = vrot.slane %v1007, 4
        %v1035 = vsel %vm996, %v1019, %v1034
        %v1037 = vunpack.c.l.s4 1934713408
        %v1038 = vunpack.c.0.s8 %v1037
        %v1039 = vperm.slane %v1033, %v1038
        %v1041 = vunpack.c.l.s4 1934713408
        %v1042 = vunpack.c.0.s8 %v1041
        %v1043 = vperm.slane %v1035, %v1042
        %v1044 = vrot.slane %v1027, 4
        %v1045 = vsel %vm996, 0.0, %v1044
        %v1046 = vrot.slane %v1031, 4
        %v1047 = vsel %vm996, 0.0, %v1046
        %v1048 = vrot.slane %v1039, 4
        %v1049 = vsel %vm996, 0.0, %v1048
        %v1050 = vrot.slane %v1043, 4
        %v1051 = vsel %vm996, 0.0, %v1050
        %v1052 = vsel %vm996, %v1046, %v1027
        %v1054 = vunpack.c.l.s4 1983009808
        %v1055 = vunpack.c.0.s8 %v1054
        %v1056 = vperm.slane %v1052, %v1055
        %v1057 = vrot.slane %v1047, 4
        %v1058 = vsel %vm996, %v1057, %v1045
        %v1060 = vunpack.c.l.s4 1983009808
        %v1061 = vunpack.c.0.s8 %v1060
        %v1062 = vperm.slane %v1058, %v1061
        %v1063 = vsel %vm996, %v1050, %v1039
        %v1065 = vunpack.c.l.s4 1983009808
        %v1066 = vunpack.c.0.s8 %v1065
        %v1067 = vperm.slane %v1063, %v1066
        %v1068 = vrot.slane %v1051, 4
        %v1069 = vsel %vm996, %v1068, %v1049
        %v1071 = vunpack.c.l.s4 1983009808
        %v1072 = vunpack.c.0.s8 %v1071
        %v1073 = vperm.slane %v1069, %v1072
        %v1074 = vrot.slane %v1062, 4
        %v1075 = vsel %vm996, %v1074, %v1056
        %v1076 = vrot.slane %v1056, 4
        %v1077 = vsel %vm996, %v1062, %v1076
        %v1079 = vunpack.c.l.s4 1934713408
        %v1080 = vunpack.c.0.s8 %v1079
        %v1081 = vperm.slane %v1075, %v1080
        %v1083 = vunpack.c.l.s4 1934713408
        %v1084 = vunpack.c.0.s8 %v1083
        %v1085 = vperm.slane %v1077, %v1084
        %v1086 = vrot.slane %v1073, 4
        %v1087 = vsel %vm996, %v1086, %v1067
        %v1088 = vrot.slane %v1067, 4
        %v1089 = vsel %vm996, %v1073, %v1088
        %v1091 = vunpack.c.l.s4 1934713408
        %v1092 = vunpack.c.0.s8 %v1091
        %v1093 = vperm.slane %v1087, %v1092
        %v1095 = vunpack.c.l.s4 1934713408
        %v1096 = vunpack.c.0.s8 %v1095
        %v1097 = vperm.slane %v1089, %v1096
        %v1098 = vrot.slane %v1093, 4
        %v1099 = vsel %vm996, %v1098, %v1081
        %v1100 = vrot.slane %v1081, 4
        %v1101 = vsel %vm996, %v1093, %v1100
        %v1102 = vrot.slane %v1097, 4
        %v1103 = vsel %vm996, %v1102, %v1085
        %v1104 = vrot.slane %v1085, 4
        %v1105 = vsel %vm996, %v1097, %v1104
        %v1106 = vpack.c.bf16 %v1099, %v1099
        %v1107 = vpack.c.bf16 %v1101, %v1101
        %v1108 = vpack.c.bf16 %v1103, %v1103
        %v1109 = vpack.c.bf16 %v1105, %v1105
        %v1110 = vld [vmem:[#allocation2] sm:$0xf]
        %v1111 = vld [vmem:[#allocation2 + $0x4] sm:$0xf]
        %v1112 = vld [vmem:[#allocation2 + $0x8] sm:$0xf]
        %v1113 = vld [vmem:[#allocation2 + $0xc] sm:$0xf]
        %v1114 = vld [vmem:[#allocation3] sm:$0xf]
        %v1115 = vld [vmem:[#allocation3 + $0x4] sm:$0xf]
        %v1116 = vld [vmem:[#allocation3 + $0x8] sm:$0xf]
        %v1117 = vld [vmem:[#allocation3 + $0xc] sm:$0xf]
        %vm1118 = vcmask 64512
        %v1120 = vsel %vm1118, %v1106, 0
        %v1123 = vsel %vm1118, %v1110, 0
        %1125 = vmatpush.bf16.xpose.msra.mxu0 0
        %1126 = vmatpush.bf16.xpose.msra.mxu0 0
        %1127 = vmatpush.bf16.xpose.msra.mxu0 0
        %1128 = vmatpush.bf16.xpose.msra.mxu0 0
        %1129 = vmatpush.bf16.xpose.msra.mxu0 0
        %1130 = vmatpush.bf16.xpose.msra.mxu0 0
        %1131 = vmatpush.bf16.xpose.msra.mxu0 0
        %1132 = vmatpush.bf16.xpose.msra.mxu0 %v1123
        %1133 = vmatmul.bf16.gmra.mxu0 %v1120
        %v1134 = vpop.f32.mrf.mxu0
        %v1135 = vadd.f32 0.0, %v1134
        %v1136 = vpop.f32.mrf.mxu0
        %1137 = vdwg.mxu0
        %v1139 = vsel %vm1118, %v1107, 0
        %v1142 = vsel %vm1118, %v1111, 0
        %1144 = vmatpush.bf16.xpose.msra.mxu0 0
        %1145 = vmatpush.bf16.xpose.msra.mxu0 0
        %1146 = vmatpush.bf16.xpose.msra.mxu0 0
        %1147 = vmatpush.bf16.xpose.msra.mxu0 0
        %1148 = vmatpush.bf16.xpose.msra.mxu0 0
        %1149 = vmatpush.bf16.xpose.msra.mxu0 0
        %1150 = vmatpush.bf16.xpose.msra.mxu0 0
        %1151 = vmatpush.bf16.xpose.msra.mxu0 %v1142
        %1152 = vmatmul.bf16.gmra.mxu0 %v1139
        %v1153 = vpop.f32.mrf.mxu0
        %v1154 = vadd.f32 0.0, %v1153
        %v1155 = vpop.f32.mrf.mxu0
        %1156 = vdwg.mxu0
        %v1158 = vsel %vm1118, %v1108, 0
        %v1161 = vsel %vm1118, %v1112, 0
        %1163 = vmatpush.bf16.xpose.msra.mxu0 0
        %1164 = vmatpush.bf16.xpose.msra.mxu0 0
        %1165 = vmatpush.bf16.xpose.msra.mxu0 0
        %1166 = vmatpush.bf16.xpose.msra.mxu0 0
        %1167 = vmatpush.bf16.xpose.msra.mxu0 0
        %1168 = vmatpush.bf16.xpose.msra.mxu0 0
        %1169 = vmatpush.bf16.xpose.msra.mxu0 0
        %1170 = vmatpush.bf16.xpose.msra.mxu0 %v1161
        %1171 = vmatmul.bf16.gmra.mxu0 %v1158
        %v1172 = vpop.f32.mrf.mxu0
        %v1173 = vadd.f32 0.0, %v1172
        %v1174 = vpop.f32.mrf.mxu0
        %1175 = vdwg.mxu0
        %v1177 = vsel %vm1118, %v1109, 0
        %v1180 = vsel %vm1118, %v1113, 0
        %1182 = vmatpush.bf16.xpose.msra.mxu0 0
        %1183 = vmatpush.bf16.xpose.msra.mxu0 0
        %1184 = vmatpush.bf16.xpose.msra.mxu0 0
        %1185 = vmatpush.bf16.xpose.msra.mxu0 0
        %1186 = vmatpush.bf16.xpose.msra.mxu0 0
        %1187 = vmatpush.bf16.xpose.msra.mxu0 0
        %1188 = vmatpush.bf16.xpose.msra.mxu0 0
        %1189 = vmatpush.bf16.xpose.msra.mxu0 %v1180
        %1190 = vmatmul.bf16.gmra.mxu0 %v1177
        %v1191 = vpop.f32.mrf.mxu0
        %v1192 = vadd.f32 0.0, %v1191
        %v1193 = vpop.f32.mrf.mxu0
        %1194 = vdwg.mxu0
        %v1195 = vsel %vm1118, %v1135, -inf
        %1196 = vmax.xlane.f32.xlu0 %v1195
        %v1197 = vpop.xlane.xlu0 %1196
        %v1198 = vsel %vm1118, %v1154, -inf
        %1199 = vmax.xlane.f32.xlu0 %v1198
        %v1200 = vpop.xlane.xlu0 %1199
        %v1201 = vsel %vm1118, %v1173, -inf
        %1202 = vmax.xlane.f32.xlu0 %v1201
        %v1203 = vpop.xlane.xlu0 %1202
        %v1204 = vsel %vm1118, %v1192, -inf
        %1205 = vmax.xlane.f32.xlu0 %v1204
        %v1206 = vpop.xlane.xlu0 %1205
        %v1207 = vsub.f32 %v1135, %v1197
        %v1208 = vsub.f32 %v1154, %v1200
        %v1209 = vsub.f32 %v1173, %v1203
        %v1210 = vsub.f32 %v1192, %v1206
        %v1211 = vmul.f32 %v1207, 1.442695
        %v1212 = vpow.pop %v1211
        %v1213 = vmul.f32 %v1208, 1.442695
        %v1214 = vpow.pop %v1213
        %v1215 = vmul.f32 %v1209, 1.442695
        %v1216 = vpow.pop %v1215
        %v1217 = vmul.f32 %v1210, 1.442695
        %v1218 = vpow.pop %v1217
        %v1219 = vsel %vm1118, %v1212, 0.0
        %1220 = vadd.xlane.f32.xlu0 %v1219
        %v1221 = vpop.xlane.xlu0 %1220
        %v1222 = vsel %vm1118, %v1214, 0.0
        %1223 = vadd.xlane.f32.xlu0 %v1222
        %v1224 = vpop.xlane.xlu0 %1223
        %v1225 = vsel %vm1118, %v1216, 0.0
        %1226 = vadd.xlane.f32.xlu0 %v1225
        %v1227 = vpop.xlane.xlu0 %1226
        %v1228 = vsel %vm1118, %v1218, 0.0
        %1229 = vadd.xlane.f32.xlu0 %v1228
        %v1230 = vpop.xlane.xlu0 %1229
        %v1231 = vrcp.pop %v1221
        %v1232 = vrcp.pop %v1224
        %v1233 = vrcp.pop %v1227
        %v1234 = vrcp.pop %v1230
        %v1235 = vmul.f32 %v1212, %v1231
        %v1236 = vmul.f32 %v1214, %v1232
        %v1237 = vmul.f32 %v1216, %v1233
        %v1238 = vmul.f32 %v1218, %v1234
        %v1239 = vpack.c.bf16 %v1235, %v1235
        %v1240 = vpack.c.bf16 %v1236, %v1236
        %v1241 = vpack.c.bf16 %v1237, %v1237
        %v1242 = vpack.c.bf16 %v1238, %v1238
        %v1244 = vsel %vm1118, %v1239, 0
        %vm1246 = vcmask 1043456
        %v1248 = vsel %vm1246, %v1114, 0
        %1250 = vmatpush.bf16.msra.mxu0 0
        %1251 = vmatpush.bf16.msra.mxu0 0
        %1252 = vmatpush.bf16.msra.mxu0 0
        %1253 = vmatpush.bf16.msra.mxu0 0
        %1254 = vmatpush.bf16.msra.mxu0 0
        %1255 = vmatpush.bf16.msra.mxu0 0
        %1256 = vmatpush.bf16.msra.mxu0 0
        %1257 = vmatpush.bf16.msra.mxu0 %v1248
        %1258 = vmatmul.bf16.gmra.mxu0 %v1244
        %v1259 = vpop.f32.mrf.mxu0
        %v1260 = vadd.f32 0.0, %v1259
        %v1261 = vpop.f32.mrf.mxu0
        %1262 = vdwg.mxu0
        %v1264 = vsel %vm1118, %v1240, 0
        %v1267 = vsel %vm1246, %v1115, 0
        %1269 = vmatpush.bf16.msra.mxu0 0
        %1270 = vmatpush.bf16.msra.mxu0 0
        %1271 = vmatpush.bf16.msra.mxu0 0
        %1272 = vmatpush.bf16.msra.mxu0 0
        %1273 = vmatpush.bf16.msra.mxu0 0
        %1274 = vmatpush.bf16.msra.mxu0 0
        %1275 = vmatpush.bf16.msra.mxu0 0
        %1276 = vmatpush.bf16.msra.mxu0 %v1267
        %1277 = vmatmul.bf16.gmra.mxu0 %v1264
        %v1278 = vpop.f32.mrf.mxu0
        %v1279 = vadd.f32 0.0, %v1278
        %v1280 = vpop.f32.mrf.mxu0
        %1281 = vdwg.mxu0
        %v1283 = vsel %vm1118, %v1241, 0
        %v1286 = vsel %vm1246, %v1116, 0
        %1288 = vmatpush.bf16.msra.mxu0 0
        %1289 = vmatpush.bf16.msra.mxu0 0
        %1290 = vmatpush.bf16.msra.mxu0 0
        %1291 = vmatpush.bf16.msra.mxu0 0
        %1292 = vmatpush.bf16.msra.mxu0 0
        %1293 = vmatpush.bf16.msra.mxu0 0
        %1294 = vmatpush.bf16.msra.mxu0 0
        %1295 = vmatpush.bf16.msra.mxu0 %v1286
        %1296 = vmatmul.bf16.gmra.mxu0 %v1283
        %v1297 = vpop.f32.mrf.mxu0
        %v1298 = vadd.f32 0.0, %v1297
        %v1299 = vpop.f32.mrf.mxu0
        %1300 = vdwg.mxu0
        %v1302 = vsel %vm1118, %v1242, 0
        %v1305 = vsel %vm1246, %v1117, 0
        %1307 = vmatpush.bf16.msra.mxu0 0
        %1308 = vmatpush.bf16.msra.mxu0 0
        %1309 = vmatpush.bf16.msra.mxu0 0
        %1310 = vmatpush.bf16.msra.mxu0 0
        %1311 = vmatpush.bf16.msra.mxu0 0
        %1312 = vmatpush.bf16.msra.mxu0 0
        %1313 = vmatpush.bf16.msra.mxu0 0
        %1314 = vmatpush.bf16.msra.mxu0 %v1305
        %1315 = vmatmul.bf16.gmra.mxu0 %v1302
        %v1316 = vpop.f32.mrf.mxu0
        %v1317 = vadd.f32 0.0, %v1316
        %v1318 = vpop.f32.mrf.mxu0
        %1319 = vdwg.mxu0
        %v1320 = vrot.slane %v1298, 4
        %v1321 = vsel %vm996, %v1320, %v1260
        %v1322 = vrot.slane %v1260, 4
        %v1323 = vsel %vm996, %v1298, %v1322
        %v1325 = vunpack.c.l.s4 1983009808
        %v1326 = vunpack.c.0.s8 %v1325
        %v1327 = vperm.slane %v1321, %v1326
        %v1329 = vunpack.c.l.s4 1983009808
        %v1330 = vunpack.c.0.s8 %v1329
        %v1331 = vperm.slane %v1323, %v1330
        %v1332 = vrot.slane %v1317, 4
        %v1333 = vsel %vm996, %v1332, %v1279
        %v1334 = vrot.slane %v1279, 4
        %v1335 = vsel %vm996, %v1317, %v1334
        %v1337 = vunpack.c.l.s4 1983009808
        %v1338 = vunpack.c.0.s8 %v1337
        %v1339 = vperm.slane %v1333, %v1338
        %v1341 = vunpack.c.l.s4 1983009808
        %v1342 = vunpack.c.0.s8 %v1341
        %v1343 = vperm.slane %v1335, %v1342
        %v1344 = vrot.slane %v1339, 4
        %v1345 = vsel %vm996, %v1344, %v1327
        %v1346 = vrot.slane %v1327, 4
        %v1347 = vsel %vm996, %v1339, %v1346
        %v1349 = vunpack.c.l.s4 1934713408
        %v1350 = vunpack.c.0.s8 %v1349
        %v1351 = vperm.slane %v1345, %v1350
        %v1353 = vunpack.c.l.s4 1934713408
        %v1354 = vunpack.c.0.s8 %v1353
        %v1355 = vperm.slane %v1347, %v1354
        %v1356 = vrot.slane %v1343, 4
        %v1357 = vsel %vm996, %v1356, %v1331
        %v1358 = vrot.slane %v1331, 4
        %v1359 = vsel %vm996, %v1343, %v1358
        %v1361 = vunpack.c.l.s4 1934713408
        %v1362 = vunpack.c.0.s8 %v1361
        %v1363 = vperm.slane %v1357, %v1362
        %v1365 = vunpack.c.l.s4 1934713408
        %v1366 = vunpack.c.0.s8 %v1365
        %v1367 = vperm.slane %v1359, %v1366
        %v1368 = vrot.slane %v1351, 4
        %v1369 = vsel %vm996, 0.0, %v1368
        %v1370 = vrot.slane %v1355, 4
        %v1371 = vsel %vm996, 0.0, %v1370
        %v1372 = vrot.slane %v1363, 4
        %v1373 = vsel %vm996, 0.0, %v1372
        %v1374 = vrot.slane %v1367, 4
        %v1375 = vsel %vm996, 0.0, %v1374
        %v1376 = vsel %vm996, %v1370, %v1351
        %v1378 = vunpack.c.l.s4 1983009808
        %v1379 = vunpack.c.0.s8 %v1378
        %v1380 = vperm.slane %v1376, %v1379
        %v1381 = vrot.slane %v1371, 4
        %v1382 = vsel %vm996, %v1381, %v1369
        %v1384 = vunpack.c.l.s4 1983009808
        %v1385 = vunpack.c.0.s8 %v1384
        %v1386 = vperm.slane %v1382, %v1385
        %v1387 = vsel %vm996, %v1374, %v1363
        %v1389 = vunpack.c.l.s4 1983009808
        %v1390 = vunpack.c.0.s8 %v1389
        %v1391 = vperm.slane %v1387, %v1390
        %v1392 = vrot.slane %v1375, 4
        %v1393 = vsel %vm996, %v1392, %v1373
        %v1395 = vunpack.c.l.s4 1983009808
        %v1396 = vunpack.c.0.s8 %v1395
        %v1397 = vperm.slane %v1393, %v1396
        %v1398 = vrot.slane %v1386, 4
        %v1399 = vsel %vm996, %v1398, %v1380
        %v1400 = vrot.slane %v1380, 4
        %v1401 = vsel %vm996, %v1386, %v1400
        %v1403 = vunpack.c.l.s4 1934713408
        %v1404 = vunpack.c.0.s8 %v1403
        %v1405 = vperm.slane %v1399, %v1404
        %v1407 = vunpack.c.l.s4 1934713408
        %v1408 = vunpack.c.0.s8 %v1407
        %v1409 = vperm.slane %v1401, %v1408
        %v1410 = vrot.slane %v1397, 4
        %v1411 = vsel %vm996, %v1410, %v1391
        %v1412 = vrot.slane %v1391, 4
        %v1413 = vsel %vm996, %v1397, %v1412
        %v1415 = vunpack.c.l.s4 1934713408
        %v1416 = vunpack.c.0.s8 %v1415
        %v1417 = vperm.slane %v1411, %v1416
        %v1419 = vunpack.c.l.s4 1934713408
        %v1420 = vunpack.c.0.s8 %v1419
        %v1421 = vperm.slane %v1413, %v1420
        %v1422 = vrot.slane %v1417, 4
        %v1423 = vsel %vm996, %v1422, %v1405
        %v1424 = vrot.slane %v1405, 4
        %v1425 = vsel %vm996, %v1417, %v1424
        %v1426 = vrot.slane %v1421, 4
        %v1427 = vsel %vm996, %v1426, %v1409
        %v1428 = vrot.slane %v1409, 4
        %v1429 = vsel %vm996, %v1421, %v1428
        %1431 = vrot.lane.b32.xlu0 %v1425, 8
        %v1432 = vpop.permute.xlu0 %1431
        %1435 = vrot.lane.b32.xlu0 %v1427, 16
        %v1436 = vpop.permute.xlu0 %1435
        %1439 = vrot.lane.b32.xlu0 %v1429, 24
        %v1440 = vpop.permute.xlu0 %1439
        %v1442 = vsel %vm1118, %v1423, %v1432
        %vm1443 = vcmask 130048
        %v1444 = vsel %vm1443, %v1442, %v1436
        %vm1445 = vcmask 195584
        %v1446 = vsel %vm1445, %v1444, %v1440
        %v1447 = vpack.c.bf16 %v1446, %v1446
        %v1448 = vld [vmem:[#allocation7] sm:$0xf]
        %v1449 = vld [vmem:[#allocation7 + $0x4] sm:$0xf]
        %v1450 = vld [vmem:[#allocation7 + $0x8] sm:$0xf]
        %v1451 = vld [vmem:[#allocation7 + $0xc] sm:$0xf]
        %v1452 = vld [vmem:[%s8] sm:$0x1]
        %v1454 = vperm.slane %v1452, 0
        %v1460 = vunpack.c.l.b16 %v1448
        %v1461 = vunpack.c.l.b16 %v1449
        %v1462 = vunpack.c.l.b16 %v1450
        %v1463 = vunpack.c.l.b16 %v1451
        %v1464 = vpack.c.b16 %v1461, %v1460
        %v1465 = vpack.c.b16 %v1463, %v1462
        %v1469 = vsel %vm967, %v1447, 0
        %1471 = vmatpush.bf16.msra.mxu0 0
        %1472 = vmatpush.bf16.msra.mxu0 0
        %1473 = vmatpush.bf16.msra.mxu0 0
        %1474 = vmatpush.bf16.msra.mxu0 0
        %1475 = vmatpush.bf16.msra.mxu0 0
        %1476 = vmatpush.bf16.msra.mxu0 0
        %1477 = vmatpush.bf16.msra.mxu0 %v1465
        %1478 = vmatpush.bf16.msra.mxu0 %v1464
        %1479 = vmatmul.bf16.gmra.mxu0 %v1469
        %v1480 = vpop.f32.mrf.mxu0
        %v1481 = vadd.f32 %v1454, %v1480
        %v1482 = vpop.f32.mrf.mxu0
        %1483 = vdwg.mxu0
        %v1484 = vadd.f32 %v945, %v1481
        %v1485 = vld [vmem:[%s9] sm:$0x1]
        %v1486 = vld [vmem:[%s10] sm:$0x1]
        %v1487 = vsel %vm967, %v1484, 0.0
        %1488 = vadd.xlane.f32.xlu0 %v1487
        %v1489 = vpop.xlane.xlu0 %1488
        %v1490 = vrcp.pop 32.0
        %v1491 = vmul.f32 32.0, %v1490
        %v1492 = vsub.f32 1.0, %v1491
        %v1493 = vmul.f32 %v1490, %v1492
        %v1494 = vadd.f32 %v1490, %v1493
        %vm1495 = vweird.f32 %v1490
        %v1496 = vsel %vm1495, %v1490, %v1494
        %v1497 = vmul.f32 %v1489, %v1496
        %v1498 = vsub.f32 %v1484, %v1497
        %v1499 = vmul.f32 %v1498, %v1498
        %v1500 = vsel %vm967, %v1499, 0.0
        %1501 = vadd.xlane.f32.xlu0 %v1500
        %v1502 = vpop.xlane.xlu0 %1501
        %v1503 = vmul.f32 %v1502, %v1496
        %v1504 = vadd.f32 %v1503, 1e-05
        %v1505 = vrsqrt.pop %v1504
        %v1506 = vmul.f32 %v1505, %v1504
        %v1507 = vmul.f32 %v1506, %v1505
        %v1508 = vmul.f32 0.5, %v1507
        %v1509 = vsub.f32 1.5, %v1508
        %v1510 = vmul.f32 %v1505, %v1509
        %vm1511 = vweird.f32 %v1504
        %vm1512 = vweird.f32 %v1505
        %vm1513 = vmor %vm1511, %vm1512
        %v1514 = vsel %vm1513, %v1505, %v1510
        %v1515 = vmul.f32 %v1498, %v1514
        %v1517 = vperm.slane %v1485, 0
        %v1519 = vmul.f32 %v1515, %v1517
        %v1521 = vperm.slane %v1486, 0
        %v1523 = vadd.f32 %v1519, %v1521
        %v1524 = vpack.c.bf16 %v1523, %v1523
        %v1525 = vld [vmem:[#allocation9] sm:$0xf]
        %v1526 = vld [vmem:[#allocation9 + $0x4] sm:$0xf]
        %v1527 = vld [vmem:[#allocation9 + $0x8] sm:$0xf]
        %v1528 = vld [vmem:[#allocation9 + $0xc] sm:$0xf]
        %v1529 = vld [vmem:[%s12] sm:$0x1]
        %v1531 = vperm.slane %v1529, 0
        %v1537 = vunpack.c.l.b16 %v1525
        %v1538 = vunpack.c.l.b16 %v1526
        %v1539 = vunpack.c.l.b16 %v1527
        %v1540 = vunpack.c.l.b16 %v1528
        %v1541 = vpack.c.b16 %v1538, %v1537
        %v1542 = vpack.c.b16 %v1540, %v1539
        %v1546 = vsel %vm967, %v1524, 0
        %1548 = vmatpush.bf16.msra.mxu0 0
        %1549 = vmatpush.bf16.msra.mxu0 0
        %1550 = vmatpush.bf16.msra.mxu0 0
        %1551 = vmatpush.bf16.msra.mxu0 0
        %1552 = vmatpush.bf16.msra.mxu0 0
        %1553 = vmatpush.bf16.msra.mxu0 0
        %1554 = vmatpush.bf16.msra.mxu0 %v1542
        %1555 = vmatpush.bf16.msra.mxu0 %v1541
        %1556 = vmatmul.bf16.gmra.mxu0 %v1546
        %v1557 = vpop.f32.mrf.mxu0
        %v1558 = vadd.f32 %v1531, %v1557
        %v1559 = vpop.f32.mrf.mxu0
        %1560 = vdwg.mxu0
        %v1561 = vmax.f32 %v1558, 0.0
        %v1562 = vpack.c.bf16 %v1561, %v1561
        %v1563 = vld [vmem:[%s13] sm:$0xf]
        %v1564 = vld [vmem:[%s13 + $0x4] sm:$0xf]
        %v1565 = vld [vmem:[%s13 + $0x8] sm:$0xf]
        %v1566 = vld [vmem:[%s13 + $0xc] sm:$0xf]
        %v1567 = vld [vmem:[%s13 + $0x10] sm:$0xf]
        %v1568 = vld [vmem:[%s13 + $0x14] sm:$0xf]
        %v1569 = vld [vmem:[%s13 + $0x18] sm:$0xf]
        %v1570 = vld [vmem:[%s13 + $0x1c] sm:$0xf]
        %v1571 = vld [vmem:[%s14] sm:$0x1]
        %v1573 = vperm.slane %v1571, 0
        %v1583 = vunpack.c.l.b16 %v1563
        %v1584 = vunpack.c.l.b16 %v1564
        %v1585 = vunpack.c.l.b16 %v1565
        %v1586 = vunpack.c.l.b16 %v1566
        %v1587 = vunpack.c.l.b16 %v1567
        %v1588 = vunpack.c.l.b16 %v1568
        %v1589 = vunpack.c.l.b16 %v1569
        %v1590 = vunpack.c.l.b16 %v1570
        %v1591 = vpack.c.b16 %v1584, %v1583
        %v1592 = vpack.c.b16 %v1586, %v1585
        %v1593 = vpack.c.b16 %v1588, %v1587
        %v1594 = vpack.c.b16 %v1590, %v1589
        %vm1599 = vcmask 523264
        %v1601 = vsel %vm1599, %v1562, 0
        %1603 = vmatpush.bf16.msra.mxu0 0
        %1604 = vmatpush.bf16.msra.mxu0 0
        %1605 = vmatpush.bf16.msra.mxu0 0
        %1606 = vmatpush.bf16.msra.mxu0 0
        %1607 = vmatpush.bf16.msra.mxu0 %v1594
        %1608 = vmatpush.bf16.msra.mxu0 %v1593
        %1609 = vmatpush.bf16.msra.mxu0 %v1592
        %1610 = vmatpush.bf16.msra.mxu0 %v1591
        %1611 = vmatmul.bf16.gmra.mxu0 %v1601
        %v1612 = vpop.f32.mrf.mxu0
        %v1613 = vadd.f32 %v1573, %v1612
        %v1614 = vpop.f32.mrf.mxu0
        %1615 = vdwg.mxu0
        %v1616 = vadd.f32 %v1523, %v1613
        %v1617 = vld [vmem:[%s15] sm:$0x1]
        %v1618 = vld [vmem:[%s16] sm:$0x1]
        %v1619 = vsel %vm967, %v1616, 0.0
        %1620 = vadd.xlane.f32.xlu0 %v1619
        %v1621 = vpop.xlane.xlu0 %1620
        %v1622 = vmul.f32 %v1621, %v1496
        %v1623 = vsub.f32 %v1616, %v1622
        %v1624 = vmul.f32 %v1623, %v1623
        %v1625 = vsel %vm967, %v1624, 0.0
        %1626 = vadd.xlane.f32.xlu0 %v1625
        %v1627 = vpop.xlane.xlu0 %1626
        %v1628 = vmul.f32 %v1627, %v1496
        %v1629 = vadd.f32 %v1628, 1e-05
        %v1630 = vrsqrt.pop %v1629
        %v1631 = vmul.f32 %v1630, %v1629
        %v1632 = vmul.f32 %v1631, %v1630
        %v1633 = vmul.f32 0.5, %v1632
        %v1634 = vsub.f32 1.5, %v1633
        %v1635 = vmul.f32 %v1630, %v1634
        %vm1636 = vweird.f32 %v1629
        %vm1637 = vweird.f32 %v1630
        %vm1638 = vmor %vm1636, %vm1637
        %v1639 = vsel %vm1638, %v1630, %v1635
        %v1640 = vmul.f32 %v1623, %v1639
        %v1642 = vperm.slane %v1617, 0
        %v1644 = vmul.f32 %v1640, %v1642
        %v1646 = vperm.slane %v1618, 0
        %v1648 = vadd.f32 %v1644, %v1646
        %1649 = vst.msk [vmem:[%s603] sm:$0xff] %vm967, %v1648
        %s1650 = sand.u32 %s417, 1
        %s1651 = scalar_lea.sflag [#allocation6], %s1650
        %s1652 = sand.u32 %s417, 1
        %s1653 = smul.addr %s1652, 8
        %s1654 = scalar_lea.vmem [#allocation10], %s1653
        // Predicated region
        $region105: #{tpu_custom_call.1} parent=87 // pred_check
          %p1655 = pneg %p427
        $region106: #{tpu_custom_call.1} parent=87 // pred_check_branch
          %1657 = sbr.rel (%p1655) target = $region108
        $region107: #{tpu_custom_call.1} parent=87 // pred_region
          %1659 = vsyncadd %s1651, 0
          %s1660 = sadd.s32 %s38, %s37
          %s1661 = smul.addr %s1660, 8
          %s1662 = scalar_lea.hbm %s17, %s1661
          %s1664 = sshll.u32 %s1654, 4
          %s1665 = int_to_ptr.vmem [resolvable:$true] %s1664
          %s1666 = sshll.u32 %s1662, 4
          %s1667 = int_to_ptr.hbm [resolvable:$true] %s1666
          %1669 = dma.vmem_to_hbm [thread:$0]  %s1665, 128, %s1667, %s1651
        $region108: #{tpu_custom_call.1} parent=87 // pred_fallthru
          _
      $region88: #{tpu_custom_call.1} parent=5 // pred_fallthru
        _
      %p1670 = scmp.le.s32.totalorder 2, %s28
      // Predicated region
      $region109: #{tpu_custom_call.1} parent=5 // pred_check
        %p1671 = pneg %p1670
      $region110: #{tpu_custom_call.1} parent=5 // pred_check_branch
        %1673 = sbr.rel (%p1671) target = $region112
      $region111: #{tpu_custom_call.1} parent=5 // pred_region
        %s1674 = ssub.s32 %s28, 2
        // Predicated region
        $region113: #{tpu_custom_call.1} parent=111 // pred_check
          %p1675 = pneg %p433
        $region114: #{tpu_custom_call.1} parent=111 // pred_check_branch
          %1677 = sbr.rel (%p1675) target = $region116
        $region115: #{tpu_custom_call.1} parent=111 // pred_region
          %s1678 = sand.u32 %s418, 1
          %s1679 = scalar_lea.sflag [#allocation6], %s1678
          %s1680 = sand.u32 %s418, 1
          %s1681 = smul.addr %s1680, 8
          %s1682 = scalar_lea.vmem [#allocation10], %s1681
          %1684 = dma.done %s1679, 128
        $region116: #{tpu_custom_call.1} parent=111 // pred_fallthru
          _
      $region112: #{tpu_custom_call.1} parent=5 // pred_fallthru
        _
    $region6: #{tpu_custom_call.1} parent=1 // loop_footer
      %s32 = sadd.s32 1, %s28
    $region7: #{tpu_custom_call.1} parent=1 // loop_footer_branch
      %27 = sbr.rel target = $region3
    $region8: #{tpu_custom_call.1} parent=1 // loop_exit
      _
    %1685 = vsyncpa [#allocation5], 1
    %s1686 = scalar_lea.sflag [#allocation5], 1
    %1687 = vsyncpa %s1686, 1
    %1688 = vsyncpa [#allocation8], 1
    %1689 = vsyncpa [#allocation6], 1
    %s1690 = scalar_lea.sflag [#allocation6], 1
    %1691 = vsyncpa %s1690, 1

</llo_original>
